<compile_context>
chip_gen: v6e
topology: v6e:2x2x1
jax: 0.10.0
libtpu: 0.0.40
codegen_flags: <defaults>
</compile_context>

<pallas_src>
import numpy as np
import jax
import jax.numpy as jnp
from jax import lax
from jax.experimental import pallas as pl
from jax.experimental.pallas import tpu as pltpu

_EPS = 1e-5
_BT = 8      # images packed into the M / sublane dimension per grid step
_H = 16      # heatmap height the packed constants are specialized to
_W = 16      # heatmap width


# ---------------------------------------------------------------------------
# Fused kernel: conv1..3 (+BN+ReLU+maxpool) + avgpool + linear, 8 images/step
# ---------------------------------------------------------------------------
def _fused_kernel(x_ref, a1_ref, b1_ref, a2_ref, b2_ref, a3_ref, b3_ref,
                  hsel_ref, wh_ref, bl_ref, o_ref, p2_scr, p3_scr):
    f32, bf16 = jnp.float32, jnp.bfloat16
    bt = o_ref.shape[0]                      # images per grid step (8)
    h1 = x_ref.shape[0] // bt                # 16 rows / image at stage 1
    c1, c2, c3 = 16, 32, 64                  # per-stage output channel counts

    def col_pool(y, c):
        # MaxPool2d(2) along W on a lane-packed (rows, W*c) slab: pair-max of
        # adjacent column blocks (pure VPU, no MXU).  The every-other-block
        # compaction is folded into the next stage's conv matrix / head weight
        # (zero rows at odd "garbage" blocks), so no selection matmuls needed.
        return jnp.maximum(y[:, :-c], y[:, c:])

    def row_pool_into(scr, z, pairs):
        # MaxPool2d(2) along H: pair-max of adjacent rows (VPU), written into
        # the next stage's padded-input VMEM slab.  Row 0 and rows >= pairs+1
        # are the zero halo for that stage's padding=1 conv.  The small scratch
        # round-trip implements the required sublane re-layout.
        lanes = z.shape[2]
        scr[:, 0:1, :] = jnp.zeros((bt, 1, lanes), f32)
        scr[:, pairs + 1:10, :] = jnp.zeros((bt, 10 - pairs - 1, lanes), f32)
        for i in range(pairs):
            scr[:, i + 1:i + 2, :] = jnp.maximum(z[:, 2 * i:2 * i + 1, :],
                                                 z[:, 2 * i + 1:2 * i + 2, :])

    def conv_bn_relu(scr, a_ref, b_ref, rows):
        # 3x3 conv (padding=1) + folded BN + ReLU: three dense bf16 MXU matmuls
        # (one per kernel row dy) over the padded slab, f32 accumulation,
        # f32 elementwise epilogue (v5e-friendly).
        acc = jnp.dot(scr[:, 0:rows, :].reshape(bt * rows, -1).astype(bf16),
                      a_ref[0], preferred_element_type=f32)
        acc = acc + jnp.dot(scr[:, 1:rows + 1, :].reshape(bt * rows, -1).astype(bf16),
                            a_ref[1], preferred_element_type=f32)
        acc = acc + jnp.dot(scr[:, 2:rows + 2, :].reshape(bt * rows, -1).astype(bf16),
                            a_ref[2], preferred_element_type=f32)
        return jnp.maximum(acc + b_ref[...], 0.0)

    # ---- stage 1: conv(1->16)+BN+ReLU as ONE K=54 matmul (input im2col'd
    # wrapper-side over the 3 kernel rows), then 2x2 max-pool.
    acc1 = jnp.dot(x_ref[...].astype(bf16), a1_ref[...], preferred_element_type=f32)
    y1 = jnp.maximum(acc1 + b1_ref[...], 0.0)                    # (bt*16, 256) f32
    zc1 = col_pool(y1, c1)                                       # (bt*16, 240)
    row_pool_into(p2_scr, zc1.reshape(bt, h1, zc1.shape[1]), h1 // 2)

    # ---- stage 2: conv(16->32)+BN+ReLU (K=240, pool compaction folded in).
    y2 = conv_bn_relu(p2_scr, a2_ref, b2_ref, 8)                 # (bt*8, 256)
    zc2 = col_pool(y2, c2)                                       # (bt*8, 224)
    row_pool_into(p3_scr, zc2.reshape(bt, 8, zc2.shape[1]), 4)

    # ---- stage 3: conv(32->64)+BN+ReLU (K=224).  Per-image rows are padded
    # 4 -> 8 so every reshape stays on 8-sublane boundaries; rows 4..7 of each
    # image's group are junk and are ignored by the head selection below.
    y3 = conv_bn_relu(p3_scr, a3_ref, b3_ref, 8)                 # (bt*8, 256)
    zc3 = col_pool(y3, c3)                                       # (bt*8, 192)

    # ---- MaxPool2d(2) along H of the last stage + AdaptiveAvgPool2d(1) +
    # Linear, fused:  max(a,b) = 0.5*(a+b+|a-b|), so one tiny (3*bt, bt*8)
    # selection matmul yields the per-image row sums / differences, and the
    # head weight folds the 1/4 average, the valid-lane-block selection and
    # Linear(64, E).  Kept in f32 for final precision.
    r = jnp.dot(hsel_ref[...], zc3, preferred_element_type=f32)  # (3*bt, 192)
    s = 0.5 * (r[0:bt] + jnp.abs(r[bt:2 * bt]) + jnp.abs(r[2 * bt:3 * bt]))
    out = jnp.dot(s, wh_ref[...], preferred_element_type=f32) + bl_ref[...]
    o_ref[...] = out.astype(o_ref.dtype)


# ---------------------------------------------------------------------------
# Host-side constant folding (one-time, numpy)
# ---------------------------------------------------------------------------
def _fold_bn(w, b, gamma, beta, mean, var, eps=_EPS):
    scale = gamma / np.sqrt(var + eps)                      # (Cout,)
    ws = (w * scale[:, None, None, None]).astype(np.float32)
    bias = ((b - mean) * scale + beta).astype(np.float32)
    return ws, bias


def _build_a1(ws, bias, W):
    """Stage-1 folded conv matrix for the im2col'd (rows, 3*(W+2)) input."""
    cout = ws.shape[0]
    A = np.zeros((3 * (W + 2), W * cout), np.float32)
    for dy in range(3):
        for w in range(W):
            for dx in range(3):
                A[dy * (W + 2) + w + dx, w * cout:(w + 1) * cout] = ws[:, 0, dy, dx]
    return A, np.tile(bias, W)[None, :].astype(np.float32)


def _build_a_pooled(ws, bias, w_out, blocks_in):
    """Per-dy folded conv matrix reading the previous stage's UNcompacted
    column-pooled slab: valid pooled column j lives at lane block 2*j (size
    cin); odd/garbage blocks and out-of-range padding columns get zero rows."""
    cout, cin = ws.shape[0], ws.shape[1]
    A = np.zeros((3, blocks_in * cin, w_out * cout), np.float32)
    for dy in range(3):
        for w in range(w_out):
            for dx in range(3):
                j = w + dx - 1
                if 0 <= j < w_out:
                    A[dy, 2 * j * cin:(2 * j + 1) * cin,
                      w * cout:(w + 1) * cout] = ws[:, :, dy, dx].T
    return A, np.tile(bias, w_out)[None, :].astype(np.float32)


# ---------------------------------------------------------------------------
# Wrapper
# ---------------------------------------------------------------------------
def _const_spec(a):
    nz = (0,) * a.ndim
    return pl.BlockSpec(a.shape, lambda i, nz=nz: nz)


@jax.jit
def heatmap_feature_extractor(x_nchw, params):
    """x_nchw: (B, 1, 16, 16) float32  ->  (B, embedding_dim) float32."""
    a1, b1, a2, b2, a3, b3, hsel, wh, bl = params
    B = x_nchw.shape[0]
    E = wh.shape[1]
    H, W = x_nchw.shape[2], x_nchw.shape[3]
    assert x_nchw.shape[1] == 1 and H == _H and W == _W

    # Pad the batch to a multiple of the per-step image count.
    Bp = ((B + _BT - 1) // _BT) * _BT
    x = x_nchw[:, 0, :, :]
    if Bp != B:
        x = jnp.pad(x, ((0, Bp - B), (0, 0), (0, 0)))

    # One-time prologue: 1-pixel zero halo + im2col over the 3 kernel rows so
    # stage 1 is a single deep K=54 matmul; (Bp*16, 54) is sublane-dense.
    xp = jnp.pad(x, ((0, 0), (1, 1), (1, 1)))                       # (Bp, 18, 18)
    xi = jnp.concatenate([xp[:, 0:H, :], xp[:, 1:H + 1, :], xp[:, 2:H + 2, :]],
                         axis=2)                                    # (Bp, 16, 54)
    xi = xi.reshape(Bp * H, 3 * (W + 2))

    nb = Bp // _BT
    out = pl.pallas_call(
        _fused_kernel,
        out_shape=jax.ShapeDtypeStruct((Bp, E), jnp.float32),
        grid_spec=pltpu.PrefetchScalarGridSpec(
            num_scalar_prefetch=0,
            grid=(nb,),
            in_specs=[pl.BlockSpec((_BT * H, 3 * (W + 2)), lambda i: (i, 0)),
                      _const_spec(a1), _const_spec(b1),
                      _const_spec(a2), _const_spec(b2),
                      _const_spec(a3), _const_spec(b3),
                      _const_spec(hsel), _const_spec(wh), _const_spec(bl)],
            out_specs=pl.BlockSpec((_BT, E), lambda i: (i, 0)),
            scratch_shapes=[
                pltpu.VMEM((_BT, 10, W * 16 - 16), jnp.float32),         # (8,10,240)
                pltpu.VMEM((_BT, 10, (W // 2) * 32 - 32), jnp.float32),  # (8,10,224)
            ],
        ),
        compiler_params=pltpu.CompilerParams(
            dimension_semantics=("parallel",)),      # v7x megacore: step / TC
    )(xi, a1, b1, a2, b2, a3, b3, hsel, wh, bl)
    return out[:B]


# ---------------------------------------------------------------------------
# Parameter init (same tensor shapes as the PyTorch module) + kernel packing
# ---------------------------------------------------------------------------
def init_params(key, embedding_dim=256, H=_H, W=_W, eps=_EPS):
    assert H == _H and W == _W, "packed constants are specialized to 16x16 heatmaps"
    keys = jax.random.split(key, 20)
    chans = [(1, 16), (16, 32), (32, 64)]
    raw_convs = []
    idx = 0
    for cin, cout in chans:
        kw, kb, kg, kbe, km, kv = keys[idx:idx + 6]
        idx += 6
        w = jax.random.normal(kw, (cout, cin, 3, 3), jnp.float32) / jnp.sqrt(9.0 * cin)
        b = 0.05 * jax.random.normal(kb, (cout,), jnp.float32)
        gamma = 1.0 + 0.1 * jax.random.normal(kg, (cout,), jnp.float32)
        beta = 0.1 * jax.random.normal(kbe, (cout,), jnp.float32)
        mean = 0.1 * jax.random.normal(km, (cout,), jnp.float32)
        var = jax.random.uniform(kv, (cout,), jnp.float32, minval=0.5, maxval=1.5)
        raw_convs.append(dict(w=w, b=b, gamma=gamma, beta=beta, mean=mean, var=var))
    kl, klb = keys[idx], keys[idx + 1]
    w_lin = jax.random.normal(kl, (embedding_dim, 64), jnp.float32) / jnp.sqrt(64.0)
    b_lin = 0.05 * jax.random.normal(klb, (embedding_dim,), jnp.float32)
    raw = dict(convs=raw_convs, w_lin=w_lin, b_lin=b_lin)

    def fold(p):
        return _fold_bn(np.asarray(p["w"]), np.asarray(p["b"]), np.asarray(p["gamma"]),
                        np.asarray(p["beta"]), np.asarray(p["mean"]), np.asarray(p["var"]),
                        eps)

    ws1, bias1 = fold(raw_convs[0])
    ws2, bias2 = fold(raw_convs[1])
    ws3, bias3 = fold(raw_convs[2])

    a1, b1 = _build_a1(ws1, bias1, W)                              # (54,256), (1,256)
    a2, b2 = _build_a_pooled(ws2, bias2, w_out=W // 2, blocks_in=W - 1)        # K=240
    a3, b3 = _build_a_pooled(ws3, bias3, w_out=W // 4, blocks_in=W // 2 - 1)   # K=224

    # Head selection: per image b (8-row group of the stage-3 slab, rows 0..3
    # valid) build [sum(rows0..3); row0-row1; row2-row3] for max-via-abs.
    hsel = np.zeros((3 * _BT, _BT * 8), np.float32)
    for b_ in range(_BT):
        hsel[b_, 8 * b_:8 * b_ + 4] = 1.0
        hsel[_BT + b_, 8 * b_ + 0] = 1.0
        hsel[_BT + b_, 8 * b_ + 1] = -1.0
        hsel[2 * _BT + b_, 8 * b_ + 2] = 1.0
        hsel[2 * _BT + b_, 8 * b_ + 3] = -1.0

    # AdaptiveAvgPool2d(1) + Linear folded: valid pooled columns of the stage-3
    # column-pooled slab live at lane blocks 0 and 2 (64 ch each); each gets
    # (1/4) * W_lin^T, garbage blocks get zeros.
    wl = np.asarray(w_lin)
    wh = np.zeros((3 * 64, embedding_dim), np.float32)
    wh[0:64, :] = wl.T / 4.0
    wh[128:192, :] = wl.T / 4.0
    bl = np.asarray(b_lin, np.float32)[None, :]

    params = (jnp.asarray(a1, jnp.bfloat16), jnp.asarray(b1),
              jnp.asarray(a2, jnp.bfloat16), jnp.asarray(b2),
              jnp.asarray(a3, jnp.bfloat16), jnp.asarray(b3),
              jnp.asarray(hsel), jnp.asarray(wh), jnp.asarray(bl))
    return raw, params


# ---------------------------------------------------------------------------
# Pure-JAX reference (correctness check only)
# ---------------------------------------------------------------------------
def ref_forward(x_nchw, raw, eps=_EPS):
    x = jnp.transpose(x_nchw, (0, 2, 3, 1))
    for p in raw["convs"]:
        k = jnp.transpose(p["w"], (2, 3, 1, 0))                    # HWIO
        y = lax.conv_general_dilated(
            x, k, (1, 1), "SAME",
            dimension_numbers=("NHWC", "HWIO", "NHWC"),
            precision=lax.Precision.HIGHEST)
        y = y + p["b"]
        scale = p["gamma"] / jnp.sqrt(p["var"] + eps)
        y = (y - p["mean"]) * scale + p["beta"]
        y = jnp.maximum(y, 0.0)
        x = lax.reduce_window(y, -jnp.inf, lax.max,
                              (1, 2, 2, 1), (1, 2, 2, 1), "VALID")
    feat = jnp.mean(x, axis=(1, 2))                                # (B, 64)
    return feat @ raw["w_lin"].T + raw["b_lin"]


# ---------------------------------------------------------------------------
if __name__ == "__main__":
    key = jax.random.PRNGKey(0)
    kx, kp = jax.random.split(key)
    B, H, W = 30, 16, 16            # pads to 32 -> grid of 4 steps (8 imgs/step)
    EMB = 256

    x = jax.random.normal(kx, (B, 1, H, W), jnp.float32)           # NCHW like PyTorch
    raw, params = init_params(kp, embedding_dim=EMB, H=H, W=W)

    out = jax.block_until_ready(heatmap_feature_extractor(x, params))
    assert out.shape == (B, EMB), out.shape

    ref = ref_forward(x, raw)
    max_err = float(jnp.max(jnp.abs(out - ref)))
    # Tolerance loosened vs. the old all-f32 version: conv matmul operands are
    # bf16 (f32 accumulation), per the perf review.
    if not bool(jnp.allclose(out, ref, atol=5e-2, rtol=5e-2)):
        raise AssertionError(f"Pallas output mismatch vs reference, max|err|={max_err}")
    print("KERNEL_OK")
</pallas_src>

<mosaic_0001>
module attributes {stable_mosaic.version = 11 : i64} {
  func.func @_fused_kernel(%arg0: i32, %arg1: memref<128x54xf32, #tpu.memory_space<vmem>>, %arg2: memref<54x256xbf16, #tpu.memory_space<vmem>>, %arg3: memref<1x256xf32, #tpu.memory_space<vmem>>, %arg4: memref<3x240x256xbf16, #tpu.memory_space<vmem>>, %arg5: memref<1x256xf32, #tpu.memory_space<vmem>>, %arg6: memref<3x224x256xbf16, #tpu.memory_space<vmem>>, %arg7: memref<1x256xf32, #tpu.memory_space<vmem>>, %arg8: memref<24x64xf32, #tpu.memory_space<vmem>>, %arg9: memref<192x256xf32, #tpu.memory_space<vmem>>, %arg10: memref<1x256xf32, #tpu.memory_space<vmem>>, %arg11: memref<8x256xf32, #tpu.memory_space<vmem>>, %arg12: memref<8x10x240xf32, #tpu.memory_space<vmem>>, %arg13: memref<8x10x224xf32, #tpu.memory_space<vmem>>) attributes {dimension_semantics = [#tpu.dimension_semantics<parallel>], iteration_bounds = array<i64: 4>, scalar_prefetch = 0 : i64, scratch_operands = 2 : i64, tpu.core_type = #tpu.core_type<tc>, window_params = [{transform_indices = @transform_0, window_bounds = array<i64: 128, 54>}, {pipeline_mode = #tpu.pipeline_mode<synchronous>, transform_indices = @transform_1, window_bounds = array<i64: 54, 256>}, {pipeline_mode = #tpu.pipeline_mode<synchronous>, transform_indices = @transform_2, window_bounds = array<i64: 1, 256>}, {pipeline_mode = #tpu.pipeline_mode<synchronous>, transform_indices = @transform_3, window_bounds = array<i64: 3, 240, 256>}, {pipeline_mode = #tpu.pipeline_mode<synchronous>, transform_indices = @transform_4, window_bounds = array<i64: 1, 256>}, {pipeline_mode = #tpu.pipeline_mode<synchronous>, transform_indices = @transform_5, window_bounds = array<i64: 3, 224, 256>}, {pipeline_mode = #tpu.pipeline_mode<synchronous>, transform_indices = @transform_6, window_bounds = array<i64: 1, 256>}, {pipeline_mode = #tpu.pipeline_mode<synchronous>, transform_indices = @transform_7, window_bounds = array<i64: 24, 64>}, {pipeline_mode = #tpu.pipeline_mode<synchronous>, transform_indices = @transform_8, window_bounds = array<i64: 192, 256>}, {pipeline_mode = #tpu.pipeline_mode<synchronous>, transform_indices = @transform_9, window_bounds = array<i64: 1, 256>}, {transform_indices = @transform_10, window_bounds = array<i64: 8, 256>}]} {
    %c0 = arith.constant 0 : index
    %c0_0 = arith.constant 0 : index
    %0 = vector.load %arg1[%c0, %c0_0] : memref<128x54xf32, #tpu.memory_space<vmem>>, vector<128x54xf32>
    %1 = arith.truncf %0 : vector<128x54xf32> to vector<128x54xbf16>
    %c0_1 = arith.constant 0 : index
    %c0_2 = arith.constant 0 : index
    %2 = vector.load %arg2[%c0_1, %c0_2] : memref<54x256xbf16, #tpu.memory_space<vmem>>, vector<54x256xbf16>
    %cst = arith.constant dense<0.000000e+00> : vector<128x256xf32>
    %3 = tpu.matmul %1, %2, %cst {dimension_numbers = #tpu.dot_dimension_numbers<[1], [0], [0], [1], [0, 0, 1, 1], [], []>} : vector<128x54xbf16>, vector<54x256xbf16>, vector<128x256xf32> -> vector<128x256xf32>
    %c0_3 = arith.constant 0 : index
    %c0_4 = arith.constant 0 : index
    %4 = vector.load %arg3[%c0_3, %c0_4] : memref<1x256xf32, #tpu.memory_space<vmem>>, vector<1x256xf32>
    %5 = vector.broadcast %4 : vector<1x256xf32> to vector<128x256xf32>
    %6 = arith.addf %3, %5 : vector<128x256xf32>
    %cst_5 = arith.constant 0.000000e+00 : f32
    %7 = vector.broadcast %cst_5 : f32 to vector<128x256xf32>
    %8 = arith.maximumf %6, %7 : vector<128x256xf32>
    %9 = vector.extract_strided_slice %8 {offsets = [0, 0], sizes = [128, 240], strides = [1, 1]} : vector<128x256xf32> to vector<128x240xf32>
    %10 = vector.extract_strided_slice %8 {offsets = [0, 16], sizes = [128, 240], strides = [1, 1]} : vector<128x256xf32> to vector<128x240xf32>
    %11 = arith.maximumf %9, %10 : vector<128x240xf32>
    %12 = vector.shape_cast %11 : vector<128x240xf32> to vector<8x16x240xf32>
    %cst_6 = arith.constant 0.000000e+00 : f32
    %13 = vector.broadcast %cst_6 : f32 to vector<8x1x240xf32>
    %c0_7 = arith.constant 0 : index
    %c0_8 = arith.constant 0 : index
    %c0_9 = arith.constant 0 : index
    %14 = vector.load %arg12[%c0_7, %c0_8, %c0_9] : memref<8x10x240xf32, #tpu.memory_space<vmem>>, vector<8x1x240xf32>
    tpu.vector_store %arg12[%c0_7, %c0_8, %c0_9], %13 {strides = array<i32>} : memref<8x10x240xf32, #tpu.memory_space<vmem>>, vector<8x1x240xf32>,
    %cst_10 = arith.constant 0.000000e+00 : f32
    %15 = vector.broadcast %cst_10 : f32 to vector<8x1x240xf32>
    %c0_11 = arith.constant 0 : index
    %c9 = arith.constant 9 : index
    %c0_12 = arith.constant 0 : index
    %16 = vector.load %arg12[%c0_11, %c9, %c0_12] : memref<8x10x240xf32, #tpu.memory_space<vmem>>, vector<8x1x240xf32>
    tpu.vector_store %arg12[%c0_11, %c9, %c0_12], %15 {strides = array<i32>} : memref<8x10x240xf32, #tpu.memory_space<vmem>>, vector<8x1x240xf32>,
    %17 = vector.extract_strided_slice %12 {offsets = [0, 0, 0], sizes = [8, 1, 240], strides = [1, 1, 1]} : vector<8x16x240xf32> to vector<8x1x240xf32>
    %18 = vector.extract_strided_slice %12 {offsets = [0, 1, 0], sizes = [8, 1, 240], strides = [1, 1, 1]} : vector<8x16x240xf32> to vector<8x1x240xf32>
    %19 = arith.maximumf %17, %18 : vector<8x1x240xf32>
    %c0_13 = arith.constant 0 : index
    %c1 = arith.constant 1 : index
    %c0_14 = arith.constant 0 : index
    %20 = vector.load %arg12[%c0_13, %c1, %c0_14] : memref<8x10x240xf32, #tpu.memory_space<vmem>>, vector<8x1x240xf32>
    tpu.vector_store %arg12[%c0_13, %c1, %c0_14], %19 {strides = array<i32>} : memref<8x10x240xf32, #tpu.memory_space<vmem>>, vector<8x1x240xf32>,
    %21 = vector.extract_strided_slice %12 {offsets = [0, 2, 0], sizes = [8, 1, 240], strides = [1, 1, 1]} : vector<8x16x240xf32> to vector<8x1x240xf32>
    %22 = vector.extract_strided_slice %12 {offsets = [0, 3, 0], sizes = [8, 1, 240], strides = [1, 1, 1]} : vector<8x16x240xf32> to vector<8x1x240xf32>
    %23 = arith.maximumf %21, %22 : vector<8x1x240xf32>
    %c0_15 = arith.constant 0 : index
    %c2 = arith.constant 2 : index
    %c0_16 = arith.constant 0 : index
    %24 = vector.load %arg12[%c0_15, %c2, %c0_16] : memref<8x10x240xf32, #tpu.memory_space<vmem>>, vector<8x1x240xf32>
    tpu.vector_store %arg12[%c0_15, %c2, %c0_16], %23 {strides = array<i32>} : memref<8x10x240xf32, #tpu.memory_space<vmem>>, vector<8x1x240xf32>,
    %25 = vector.extract_strided_slice %12 {offsets = [0, 4, 0], sizes = [8, 1, 240], strides = [1, 1, 1]} : vector<8x16x240xf32> to vector<8x1x240xf32>
    %26 = vector.extract_strided_slice %12 {offsets = [0, 5, 0], sizes = [8, 1, 240], strides = [1, 1, 1]} : vector<8x16x240xf32> to vector<8x1x240xf32>
    %27 = arith.maximumf %25, %26 : vector<8x1x240xf32>
    %c0_17 = arith.constant 0 : index
    %c3 = arith.constant 3 : index
    %c0_18 = arith.constant 0 : index
    %28 = vector.load %arg12[%c0_17, %c3, %c0_18] : memref<8x10x240xf32, #tpu.memory_space<vmem>>, vector<8x1x240xf32>
    tpu.vector_store %arg12[%c0_17, %c3, %c0_18], %27 {strides = array<i32>} : memref<8x10x240xf32, #tpu.memory_space<vmem>>, vector<8x1x240xf32>,
    %29 = vector.extract_strided_slice %12 {offsets = [0, 6, 0], sizes = [8, 1, 240], strides = [1, 1, 1]} : vector<8x16x240xf32> to vector<8x1x240xf32>
    %30 = vector.extract_strided_slice %12 {offsets = [0, 7, 0], sizes = [8, 1, 240], strides = [1, 1, 1]} : vector<8x16x240xf32> to vector<8x1x240xf32>
    %31 = arith.maximumf %29, %30 : vector<8x1x240xf32>
    %c0_19 = arith.constant 0 : index
    %c4 = arith.constant 4 : index
    %c0_20 = arith.constant 0 : index
    %32 = vector.load %arg12[%c0_19, %c4, %c0_20] : memref<8x10x240xf32, #tpu.memory_space<vmem>>, vector<8x1x240xf32>
    tpu.vector_store %arg12[%c0_19, %c4, %c0_20], %31 {strides = array<i32>} : memref<8x10x240xf32, #tpu.memory_space<vmem>>, vector<8x1x240xf32>,
    %33 = vector.extract_strided_slice %12 {offsets = [0, 8, 0], sizes = [8, 1, 240], strides = [1, 1, 1]} : vector<8x16x240xf32> to vector<8x1x240xf32>
    %34 = vector.extract_strided_slice %12 {offsets = [0, 9, 0], sizes = [8, 1, 240], strides = [1, 1, 1]} : vector<8x16x240xf32> to vector<8x1x240xf32>
    %35 = arith.maximumf %33, %34 : vector<8x1x240xf32>
    %c0_21 = arith.constant 0 : index
    %c5 = arith.constant 5 : index
    %c0_22 = arith.constant 0 : index
    %36 = vector.load %arg12[%c0_21, %c5, %c0_22] : memref<8x10x240xf32, #tpu.memory_space<vmem>>, vector<8x1x240xf32>
    tpu.vector_store %arg12[%c0_21, %c5, %c0_22], %35 {strides = array<i32>} : memref<8x10x240xf32, #tpu.memory_space<vmem>>, vector<8x1x240xf32>,
    %37 = vector.extract_strided_slice %12 {offsets = [0, 10, 0], sizes = [8, 1, 240], strides = [1, 1, 1]} : vector<8x16x240xf32> to vector<8x1x240xf32>
    %38 = vector.extract_strided_slice %12 {offsets = [0, 11, 0], sizes = [8, 1, 240], strides = [1, 1, 1]} : vector<8x16x240xf32> to vector<8x1x240xf32>
    %39 = arith.maximumf %37, %38 : vector<8x1x240xf32>
    %c0_23 = arith.constant 0 : index
    %c6 = arith.constant 6 : index
    %c0_24 = arith.constant 0 : index
    %40 = vector.load %arg12[%c0_23, %c6, %c0_24] : memref<8x10x240xf32, #tpu.memory_space<vmem>>, vector<8x1x240xf32>
    tpu.vector_store %arg12[%c0_23, %c6, %c0_24], %39 {strides = array<i32>} : memref<8x10x240xf32, #tpu.memory_space<vmem>>, vector<8x1x240xf32>,
    %41 = vector.extract_strided_slice %12 {offsets = [0, 12, 0], sizes = [8, 1, 240], strides = [1, 1, 1]} : vector<8x16x240xf32> to vector<8x1x240xf32>
    %42 = vector.extract_strided_slice %12 {offsets = [0, 13, 0], sizes = [8, 1, 240], strides = [1, 1, 1]} : vector<8x16x240xf32> to vector<8x1x240xf32>
    %43 = arith.maximumf %41, %42 : vector<8x1x240xf32>
    %c0_25 = arith.constant 0 : index
    %c7 = arith.constant 7 : index
    %c0_26 = arith.constant 0 : index
    %44 = vector.load %arg12[%c0_25, %c7, %c0_26] : memref<8x10x240xf32, #tpu.memory_space<vmem>>, vector<8x1x240xf32>
    tpu.vector_store %arg12[%c0_25, %c7, %c0_26], %43 {strides = array<i32>} : memref<8x10x240xf32, #tpu.memory_space<vmem>>, vector<8x1x240xf32>,
    %45 = vector.extract_strided_slice %12 {offsets = [0, 14, 0], sizes = [8, 1, 240], strides = [1, 1, 1]} : vector<8x16x240xf32> to vector<8x1x240xf32>
    %46 = vector.extract_strided_slice %12 {offsets = [0, 15, 0], sizes = [8, 1, 240], strides = [1, 1, 1]} : vector<8x16x240xf32> to vector<8x1x240xf32>
    %47 = arith.maximumf %45, %46 : vector<8x1x240xf32>
    %c0_27 = arith.constant 0 : index
    %c8 = arith.constant 8 : index
    %c0_28 = arith.constant 0 : index
    %48 = vector.load %arg12[%c0_27, %c8, %c0_28] : memref<8x10x240xf32, #tpu.memory_space<vmem>>, vector<8x1x240xf32>
    tpu.vector_store %arg12[%c0_27, %c8, %c0_28], %47 {strides = array<i32>} : memref<8x10x240xf32, #tpu.memory_space<vmem>>, vector<8x1x240xf32>,
    %c0_29 = arith.constant 0 : index
    %c0_30 = arith.constant 0 : index
    %c0_31 = arith.constant 0 : index
    %49 = vector.load %arg12[%c0_29, %c0_30, %c0_31] : memref<8x10x240xf32, #tpu.memory_space<vmem>>, vector<8x8x240xf32>
    %50 = vector.shape_cast %49 : vector<8x8x240xf32> to vector<64x240xf32>
    %51 = arith.truncf %50 : vector<64x240xf32> to vector<64x240xbf16>
    %c0_32 = arith.constant 0 : index
    %c0_33 = arith.constant 0 : index
    %c0_34 = arith.constant 0 : index
    %52 = vector.load %arg4[%c0_32, %c0_33, %c0_34] : memref<3x240x256xbf16, #tpu.memory_space<vmem>>, vector<1x240x256xbf16>
    %53 = vector.shape_cast %52 : vector<1x240x256xbf16> to vector<240x256xbf16>
    %cst_35 = arith.constant dense<0.000000e+00> : vector<64x256xf32>
    %54 = tpu.matmul %51, %53, %cst_35 {dimension_numbers = #tpu.dot_dimension_numbers<[1], [0], [0], [1], [0, 0, 1, 1], [], []>} : vector<64x240xbf16>, vector<240x256xbf16>, vector<64x256xf32> -> vector<64x256xf32>
    %c0_36 = arith.constant 0 : index
    %c1_37 = arith.constant 1 : index
    %c0_38 = arith.constant 0 : index
    %55 = vector.load %arg12[%c0_36, %c1_37, %c0_38] : memref<8x10x240xf32, #tpu.memory_space<vmem>>, vector<8x8x240xf32>
    %56 = vector.shape_cast %55 : vector<8x8x240xf32> to vector<64x240xf32>
    %57 = arith.truncf %56 : vector<64x240xf32> to vector<64x240xbf16>
    %c1_39 = arith.constant 1 : index
    %c0_40 = arith.constant 0 : index
    %c0_41 = arith.constant 0 : index
    %58 = vector.load %arg4[%c1_39, %c0_40, %c0_41] : memref<3x240x256xbf16, #tpu.memory_space<vmem>>, vector<1x240x256xbf16>
    %59 = vector.shape_cast %58 : vector<1x240x256xbf16> to vector<240x256xbf16>
    %cst_42 = arith.constant dense<0.000000e+00> : vector<64x256xf32>
    %60 = tpu.matmul %57, %59, %cst_42 {dimension_numbers = #tpu.dot_dimension_numbers<[1], [0], [0], [1], [0, 0, 1, 1], [], []>} : vector<64x240xbf16>, vector<240x256xbf16>, vector<64x256xf32> -> vector<64x256xf32>
    %61 = arith.addf %54, %60 : vector<64x256xf32>
    %c0_43 = arith.constant 0 : index
    %c2_44 = arith.constant 2 : index
    %c0_45 = arith.constant 0 : index
    %62 = vector.load %arg12[%c0_43, %c2_44, %c0_45] : memref<8x10x240xf32, #tpu.memory_space<vmem>>, vector<8x8x240xf32>
    %63 = vector.shape_cast %62 : vector<8x8x240xf32> to vector<64x240xf32>
    %64 = arith.truncf %63 : vector<64x240xf32> to vector<64x240xbf16>
    %c2_46 = arith.constant 2 : index
    %c0_47 = arith.constant 0 : index
    %c0_48 = arith.constant 0 : index
    %65 = vector.load %arg4[%c2_46, %c0_47, %c0_48] : memref<3x240x256xbf16, #tpu.memory_space<vmem>>, vector<1x240x256xbf16>
    %66 = vector.shape_cast %65 : vector<1x240x256xbf16> to vector<240x256xbf16>
    %cst_49 = arith.constant dense<0.000000e+00> : vector<64x256xf32>
    %67 = tpu.matmul %64, %66, %cst_49 {dimension_numbers = #tpu.dot_dimension_numbers<[1], [0], [0], [1], [0, 0, 1, 1], [], []>} : vector<64x240xbf16>, vector<240x256xbf16>, vector<64x256xf32> -> vector<64x256xf32>
    %68 = arith.addf %61, %67 : vector<64x256xf32>
    %c0_50 = arith.constant 0 : index
    %c0_51 = arith.constant 0 : index
    %69 = vector.load %arg5[%c0_50, %c0_51] : memref<1x256xf32, #tpu.memory_space<vmem>>, vector<1x256xf32>
    %70 = vector.broadcast %69 : vector<1x256xf32> to vector<64x256xf32>
    %71 = arith.addf %68, %70 : vector<64x256xf32>
    %cst_52 = arith.constant 0.000000e+00 : f32
    %72 = vector.broadcast %cst_52 : f32 to vector<64x256xf32>
    %73 = arith.maximumf %71, %72 : vector<64x256xf32>
    %74 = vector.extract_strided_slice %73 {offsets = [0, 0], sizes = [64, 224], strides = [1, 1]} : vector<64x256xf32> to vector<64x224xf32>
    %75 = vector.extract_strided_slice %73 {offsets = [0, 32], sizes = [64, 224], strides = [1, 1]} : vector<64x256xf32> to vector<64x224xf32>
    %76 = arith.maximumf %74, %75 : vector<64x224xf32>
    %77 = vector.shape_cast %76 : vector<64x224xf32> to vector<8x8x224xf32>
    %cst_53 = arith.constant 0.000000e+00 : f32
    %78 = vector.broadcast %cst_53 : f32 to vector<8x1x224xf32>
    %c0_54 = arith.constant 0 : index
    %c0_55 = arith.constant 0 : index
    %c0_56 = arith.constant 0 : index
    %79 = vector.load %arg13[%c0_54, %c0_55, %c0_56] : memref<8x10x224xf32, #tpu.memory_space<vmem>>, vector<8x1x224xf32>
    tpu.vector_store %arg13[%c0_54, %c0_55, %c0_56], %78 {strides = array<i32>} : memref<8x10x224xf32, #tpu.memory_space<vmem>>, vector<8x1x224xf32>,
    %cst_57 = arith.constant 0.000000e+00 : f32
    %80 = vector.broadcast %cst_57 : f32 to vector<8x5x224xf32>
    %c0_58 = arith.constant 0 : index
    %c5_59 = arith.constant 5 : index
    %c0_60 = arith.constant 0 : index
    %81 = vector.load %arg13[%c0_58, %c5_59, %c0_60] : memref<8x10x224xf32, #tpu.memory_space<vmem>>, vector<8x5x224xf32>
    tpu.vector_store %arg13[%c0_58, %c5_59, %c0_60], %80 {strides = array<i32>} : memref<8x10x224xf32, #tpu.memory_space<vmem>>, vector<8x5x224xf32>,
    %82 = vector.extract_strided_slice %77 {offsets = [0, 0, 0], sizes = [8, 1, 224], strides = [1, 1, 1]} : vector<8x8x224xf32> to vector<8x1x224xf32>
    %83 = vector.extract_strided_slice %77 {offsets = [0, 1, 0], sizes = [8, 1, 224], strides = [1, 1, 1]} : vector<8x8x224xf32> to vector<8x1x224xf32>
    %84 = arith.maximumf %82, %83 : vector<8x1x224xf32>
    %c0_61 = arith.constant 0 : index
    %c1_62 = arith.constant 1 : index
    %c0_63 = arith.constant 0 : index
    %85 = vector.load %arg13[%c0_61, %c1_62, %c0_63] : memref<8x10x224xf32, #tpu.memory_space<vmem>>, vector<8x1x224xf32>
    tpu.vector_store %arg13[%c0_61, %c1_62, %c0_63], %84 {strides = array<i32>} : memref<8x10x224xf32, #tpu.memory_space<vmem>>, vector<8x1x224xf32>,
    %86 = vector.extract_strided_slice %77 {offsets = [0, 2, 0], sizes = [8, 1, 224], strides = [1, 1, 1]} : vector<8x8x224xf32> to vector<8x1x224xf32>
    %87 = vector.extract_strided_slice %77 {offsets = [0, 3, 0], sizes = [8, 1, 224], strides = [1, 1, 1]} : vector<8x8x224xf32> to vector<8x1x224xf32>
    %88 = arith.maximumf %86, %87 : vector<8x1x224xf32>
    %c0_64 = arith.constant 0 : index
    %c2_65 = arith.constant 2 : index
    %c0_66 = arith.constant 0 : index
    %89 = vector.load %arg13[%c0_64, %c2_65, %c0_66] : memref<8x10x224xf32, #tpu.memory_space<vmem>>, vector<8x1x224xf32>
    tpu.vector_store %arg13[%c0_64, %c2_65, %c0_66], %88 {strides = array<i32>} : memref<8x10x224xf32, #tpu.memory_space<vmem>>, vector<8x1x224xf32>,
    %90 = vector.extract_strided_slice %77 {offsets = [0, 4, 0], sizes = [8, 1, 224], strides = [1, 1, 1]} : vector<8x8x224xf32> to vector<8x1x224xf32>
    %91 = vector.extract_strided_slice %77 {offsets = [0, 5, 0], sizes = [8, 1, 224], strides = [1, 1, 1]} : vector<8x8x224xf32> to vector<8x1x224xf32>
    %92 = arith.maximumf %90, %91 : vector<8x1x224xf32>
    %c0_67 = arith.constant 0 : index
    %c3_68 = arith.constant 3 : index
    %c0_69 = arith.constant 0 : index
    %93 = vector.load %arg13[%c0_67, %c3_68, %c0_69] : memref<8x10x224xf32, #tpu.memory_space<vmem>>, vector<8x1x224xf32>
    tpu.vector_store %arg13[%c0_67, %c3_68, %c0_69], %92 {strides = array<i32>} : memref<8x10x224xf32, #tpu.memory_space<vmem>>, vector<8x1x224xf32>,
    %94 = vector.extract_strided_slice %77 {offsets = [0, 6, 0], sizes = [8, 1, 224], strides = [1, 1, 1]} : vector<8x8x224xf32> to vector<8x1x224xf32>
    %95 = vector.extract_strided_slice %77 {offsets = [0, 7, 0], sizes = [8, 1, 224], strides = [1, 1, 1]} : vector<8x8x224xf32> to vector<8x1x224xf32>
    %96 = arith.maximumf %94, %95 : vector<8x1x224xf32>
    %c0_70 = arith.constant 0 : index
    %c4_71 = arith.constant 4 : index
    %c0_72 = arith.constant 0 : index
    %97 = vector.load %arg13[%c0_70, %c4_71, %c0_72] : memref<8x10x224xf32, #tpu.memory_space<vmem>>, vector<8x1x224xf32>
    tpu.vector_store %arg13[%c0_70, %c4_71, %c0_72], %96 {strides = array<i32>} : memref<8x10x224xf32, #tpu.memory_space<vmem>>, vector<8x1x224xf32>,
    %c0_73 = arith.constant 0 : index
    %c0_74 = arith.constant 0 : index
    %c0_75 = arith.constant 0 : index
    %98 = vector.load %arg13[%c0_73, %c0_74, %c0_75] : memref<8x10x224xf32, #tpu.memory_space<vmem>>, vector<8x8x224xf32>
    %99 = vector.shape_cast %98 : vector<8x8x224xf32> to vector<64x224xf32>
    %100 = arith.truncf %99 : vector<64x224xf32> to vector<64x224xbf16>
    %c0_76 = arith.constant 0 : index
    %c0_77 = arith.constant 0 : index
    %c0_78 = arith.constant 0 : index
    %101 = vector.load %arg6[%c0_76, %c0_77, %c0_78] : memref<3x224x256xbf16, #tpu.memory_space<vmem>>, vector<1x224x256xbf16>
    %102 = vector.shape_cast %101 : vector<1x224x256xbf16> to vector<224x256xbf16>
    %cst_79 = arith.constant dense<0.000000e+00> : vector<64x256xf32>
    %103 = tpu.matmul %100, %102, %cst_79 {dimension_numbers = #tpu.dot_dimension_numbers<[1], [0], [0], [1], [0, 0, 1, 1], [], []>} : vector<64x224xbf16>, vector<224x256xbf16>, vector<64x256xf32> -> vector<64x256xf32>
    %c0_80 = arith.constant 0 : index
    %c1_81 = arith.constant 1 : index
    %c0_82 = arith.constant 0 : index
    %104 = vector.load %arg13[%c0_80, %c1_81, %c0_82] : memref<8x10x224xf32, #tpu.memory_space<vmem>>, vector<8x8x224xf32>
    %105 = vector.shape_cast %104 : vector<8x8x224xf32> to vector<64x224xf32>
    %106 = arith.truncf %105 : vector<64x224xf32> to vector<64x224xbf16>
    %c1_83 = arith.constant 1 : index
    %c0_84 = arith.constant 0 : index
    %c0_85 = arith.constant 0 : index
    %107 = vector.load %arg6[%c1_83, %c0_84, %c0_85] : memref<3x224x256xbf16, #tpu.memory_space<vmem>>, vector<1x224x256xbf16>
    %108 = vector.shape_cast %107 : vector<1x224x256xbf16> to vector<224x256xbf16>
    %cst_86 = arith.constant dense<0.000000e+00> : vector<64x256xf32>
    %109 = tpu.matmul %106, %108, %cst_86 {dimension_numbers = #tpu.dot_dimension_numbers<[1], [0], [0], [1], [0, 0, 1, 1], [], []>} : vector<64x224xbf16>, vector<224x256xbf16>, vector<64x256xf32> -> vector<64x256xf32>
    %110 = arith.addf %103, %109 : vector<64x256xf32>
    %c0_87 = arith.constant 0 : index
    %c2_88 = arith.constant 2 : index
    %c0_89 = arith.constant 0 : index
    %111 = vector.load %arg13[%c0_87, %c2_88, %c0_89] : memref<8x10x224xf32, #tpu.memory_space<vmem>>, vector<8x8x224xf32>
    %112 = vector.shape_cast %111 : vector<8x8x224xf32> to vector<64x224xf32>
    %113 = arith.truncf %112 : vector<64x224xf32> to vector<64x224xbf16>
    %c2_90 = arith.constant 2 : index
    %c0_91 = arith.constant 0 : index
    %c0_92 = arith.constant 0 : index
    %114 = vector.load %arg6[%c2_90, %c0_91, %c0_92] : memref<3x224x256xbf16, #tpu.memory_space<vmem>>, vector<1x224x256xbf16>
    %115 = vector.shape_cast %114 : vector<1x224x256xbf16> to vector<224x256xbf16>
    %cst_93 = arith.constant dense<0.000000e+00> : vector<64x256xf32>
    %116 = tpu.matmul %113, %115, %cst_93 {dimension_numbers = #tpu.dot_dimension_numbers<[1], [0], [0], [1], [0, 0, 1, 1], [], []>} : vector<64x224xbf16>, vector<224x256xbf16>, vector<64x256xf32> -> vector<64x256xf32>
    %117 = arith.addf %110, %116 : vector<64x256xf32>
    %c0_94 = arith.constant 0 : index
    %c0_95 = arith.constant 0 : index
    %118 = vector.load %arg7[%c0_94, %c0_95] : memref<1x256xf32, #tpu.memory_space<vmem>>, vector<1x256xf32>
    %119 = vector.broadcast %118 : vector<1x256xf32> to vector<64x256xf32>
    %120 = arith.addf %117, %119 : vector<64x256xf32>
    %cst_96 = arith.constant 0.000000e+00 : f32
    %121 = vector.broadcast %cst_96 : f32 to vector<64x256xf32>
    %122 = arith.maximumf %120, %121 : vector<64x256xf32>
    %123 = vector.extract_strided_slice %122 {offsets = [0, 0], sizes = [64, 192], strides = [1, 1]} : vector<64x256xf32> to vector<64x192xf32>
    %124 = vector.extract_strided_slice %122 {offsets = [0, 64], sizes = [64, 192], strides = [1, 1]} : vector<64x256xf32> to vector<64x192xf32>
    %125 = arith.maximumf %123, %124 : vector<64x192xf32>
    %c0_97 = arith.constant 0 : index
    %c0_98 = arith.constant 0 : index
    %126 = vector.load %arg8[%c0_97, %c0_98] : memref<24x64xf32, #tpu.memory_space<vmem>>, vector<24x64xf32>
    %cst_99 = arith.constant dense<0.000000e+00> : vector<24x192xf32>
    %127 = tpu.matmul %126, %125, %cst_99 {dimension_numbers = #tpu.dot_dimension_numbers<[1], [0], [0], [1], [0, 0, 1, 1], [], []>} : vector<24x64xf32>, vector<64x192xf32>, vector<24x192xf32> -> vector<24x192xf32>
    %128 = vector.extract_strided_slice %127 {offsets = [0, 0], sizes = [8, 192], strides = [1, 1]} : vector<24x192xf32> to vector<8x192xf32>
    %129 = vector.extract_strided_slice %127 {offsets = [8, 0], sizes = [8, 192], strides = [1, 1]} : vector<24x192xf32> to vector<8x192xf32>
    %130 = math.absf %129 : vector<8x192xf32>
    %131 = arith.addf %128, %130 : vector<8x192xf32>
    %132 = vector.extract_strided_slice %127 {offsets = [16, 0], sizes = [8, 192], strides = [1, 1]} : vector<24x192xf32> to vector<8x192xf32>
    %133 = math.absf %132 : vector<8x192xf32>
    %134 = arith.addf %131, %133 : vector<8x192xf32>
    %cst_100 = arith.constant 5.000000e-01 : f32
    %135 = vector.broadcast %cst_100 : f32 to vector<8x192xf32>
    %136 = arith.mulf %135, %134 : vector<8x192xf32>
    %c0_101 = arith.constant 0 : index
    %c0_102 = arith.constant 0 : index
    %137 = vector.load %arg9[%c0_101, %c0_102] : memref<192x256xf32, #tpu.memory_space<vmem>>, vector<192x256xf32>
    %cst_103 = arith.constant dense<0.000000e+00> : vector<8x256xf32>
    %138 = tpu.matmul %136, %137, %cst_103 {dimension_numbers = #tpu.dot_dimension_numbers<[1], [0], [0], [1], [0, 0, 1, 1], [], []>} : vector<8x192xf32>, vector<192x256xf32>, vector<8x256xf32> -> vector<8x256xf32>
    %c0_104 = arith.constant 0 : index
    %c0_105 = arith.constant 0 : index
    %139 = vector.load %arg10[%c0_104, %c0_105] : memref<1x256xf32, #tpu.memory_space<vmem>>, vector<1x256xf32>
    %140 = vector.broadcast %139 : vector<1x256xf32> to vector<8x256xf32>
    %141 = arith.addf %138, %140 : vector<8x256xf32>
    %c0_106 = arith.constant 0 : index
    %c0_107 = arith.constant 0 : index
    %142 = vector.load %arg11[%c0_106, %c0_107] : memref<8x256xf32, #tpu.memory_space<vmem>>, vector<8x256xf32>
    tpu.vector_store %arg11[%c0_106, %c0_107], %141 {strides = array<i32>} : memref<8x256xf32, #tpu.memory_space<vmem>>, vector<8x256xf32>,
    return
  }
  func.func @transform_0(%arg0: i32) -> (i32, i32) {
    %c0_i32 = arith.constant 0 : i32
    %c0_i32_0 = arith.constant 0 : i32
    return %arg0, %c0_i32 : i32, i32
  }
  func.func @transform_1(%arg0: i32) -> (i32, i32) {
    %c0_i32 = arith.constant 0 : i32
    %c0_i32_0 = arith.constant 0 : i32
    %c0_i32_1 = arith.constant 0 : i32
    return %c0_i32, %c0_i32_0 : i32, i32
  }
  func.func @transform_2(%arg0: i32) -> (i32, i32) {
    %c0_i32 = arith.constant 0 : i32
    %c0_i32_0 = arith.constant 0 : i32
    %c0_i32_1 = arith.constant 0 : i32
    return %c0_i32, %c0_i32_0 : i32, i32
  }
  func.func @transform_3(%arg0: i32) -> (i32, i32, i32) {
    %c0_i32 = arith.constant 0 : i32
    %c0_i32_0 = arith.constant 0 : i32
    %c0_i32_1 = arith.constant 0 : i32
    %c0_i32_2 = arith.constant 0 : i32
    return %c0_i32, %c0_i32_0, %c0_i32_1 : i32, i32, i32
  }
  func.func @transform_4(%arg0: i32) -> (i32, i32) {
    %c0_i32 = arith.constant 0 : i32
    %c0_i32_0 = arith.constant 0 : i32
    %c0_i32_1 = arith.constant 0 : i32
    return %c0_i32, %c0_i32_0 : i32, i32
  }
  func.func @transform_5(%arg0: i32) -> (i32, i32, i32) {
    %c0_i32 = arith.constant 0 : i32
    %c0_i32_0 = arith.constant 0 : i32
    %c0_i32_1 = arith.constant 0 : i32
    %c0_i32_2 = arith.constant 0 : i32
    return %c0_i32, %c0_i32_0, %c0_i32_1 : i32, i32, i32
  }
  func.func @transform_6(%arg0: i32) -> (i32, i32) {
    %c0_i32 = arith.constant 0 : i32
    %c0_i32_0 = arith.constant 0 : i32
    %c0_i32_1 = arith.constant 0 : i32
    return %c0_i32, %c0_i32_0 : i32, i32
  }
  func.func @transform_7(%arg0: i32) -> (i32, i32) {
    %c0_i32 = arith.constant 0 : i32
    %c0_i32_0 = arith.constant 0 : i32
    %c0_i32_1 = arith.constant 0 : i32
    return %c0_i32, %c0_i32_0 : i32, i32
  }
  func.func @transform_8(%arg0: i32) -> (i32, i32) {
    %c0_i32 = arith.constant 0 : i32
    %c0_i32_0 = arith.constant 0 : i32
    %c0_i32_1 = arith.constant 0 : i32
    return %c0_i32, %c0_i32_0 : i32, i32
  }
  func.func @transform_9(%arg0: i32) -> (i32, i32) {
    %c0_i32 = arith.constant 0 : i32
    %c0_i32_0 = arith.constant 0 : i32
    %c0_i32_1 = arith.constant 0 : i32
    return %c0_i32, %c0_i32_0 : i32, i32
  }
  func.func @transform_10(%arg0: i32) -> (i32, i32) {
    %c0_i32 = arith.constant 0 : i32
    %c0_i32_0 = arith.constant 0 : i32
    return %arg0, %c0_i32 : i32, i32
  }
}

</mosaic_0001>

<llo_original>
// kernel: heatmap_feature_extractor.1
$region0: #{heatmap_feature_extractor.1}
  #allocation0 [shape = 'u32[]', space=smem, size = 0x4, offset = 0x4, fixed_abs, tag = 'smem constant byte address 0x4 - core index']
  #allocation1 [shape = 'u32[144,128]{1,0:T(1,128)}', space=vmem, size = 0x12000, scoped, tag = 'internal scratch']
  #allocation2 [shape = 'f32[8,10,240]{2,1,0:T(8,128)}', space=vmem, size = 0x20000, scoped, tag = 'scratch operand']
  #allocation3 [shape = 'f32[8,10,224]{2,1,0:T(8,128)}', space=vmem, size = 0x20000, scoped, tag = 'scratch operand']
  %s0 = inlined_call_operand.vmem [shape: f32[512,54], index: 0, kind: input, shape index: {}]
  %s1 = inlined_call_operand.vmem [shape: bf16[54,256], index: 1, kind: input, shape index: {}]
  %s2 = inlined_call_operand.vmem [shape: f32[1,256], index: 2, kind: input, shape index: {}]
  %s3 = inlined_call_operand.vmem [shape: bf16[3,240,256], index: 3, kind: input, shape index: {}]
  %s4 = inlined_call_operand.vmem [shape: f32[1,256], index: 4, kind: input, shape index: {}]
  %s5 = inlined_call_operand.vmem [shape: bf16[3,224,256], index: 5, kind: input, shape index: {}]
  %s6 = inlined_call_operand.vmem [shape: f32[1,256], index: 6, kind: input, shape index: {}]
  %s7 = inlined_call_operand.vmem [shape: f32[24,64], index: 7, kind: input, shape index: {}]
  %s8 = inlined_call_operand.vmem [shape: f32[192,256], index: 8, kind: input, shape index: {}]
  %s9 = inlined_call_operand.vmem [shape: f32[1,256], index: 9, kind: input, shape index: {}]
  %s10 = inlined_call_operand.hbm [shape: f32[32,256], index: 10, kind: output, shape index: {}]
  %s11 = sld [smem:[#allocation0]]
  $region73: #{heatmap_feature_extractor.1} parent=0
    _
  %s13 = ssub.s32 1, %s11
  %s14 = scalar_select 0, %s13, %s11
  $region1: #{heatmap_feature_extractor.1} parent=0
    #allocation4 [shape = 'u8[16384]{0}', space=vmem, size = 0x4000, scoped, tag = 'output window, operand 0']
    #allocation5 [shape = 's32[2]{0}', space=sflag, size = 0x8, scoped, tag = 'scoped memory for heatmap_feature_extractor.1']
    %15 = vsyncpa [#allocation5], 0
    %s16 = scalar_lea.sflag [#allocation5], 1
    %17 = vsyncpa %s16, 0
    loop: start=0, step=1, limit=6
    $region2: #{heatmap_feature_extractor.1} parent=1 // loop_pre_header
      _
    $region3: #{heatmap_feature_extractor.1} parent=1 // loop_header
      %s19 = sphi 0, %s23
      %p20 = scmp.ge.s32.totalorder %s19, 6
      %s29 = sphi 0, %s31
      %s32 = sphi 0, %s29
      %s33 = sphi 0, %s32
      %s49 = sphi 0, %s33
      %s53 = sphi 0, %s53
      %s55 = sphi 0, %s53
      %s56 = sphi 0, %s55
      %s70 = sphi 0, %s56
      %s74 = sphi 0, %s74
      %s76 = sphi 0, %s74
      %s77 = sphi 0, %s76
      %s91 = sphi 0, %s77
      %s95 = sphi 0, %s95
      %s97 = sphi 0, %s95
      %s98 = sphi 0, %s97
      %s112 = sphi 0, %s98
      %s116 = sphi 0, %s116
      %s118 = sphi 0, %s116
      %s119 = sphi 0, %s118
      %s133 = sphi 0, %s119
      %s137 = sphi 0, %s137
      %s139 = sphi 0, %s137
      %s140 = sphi 0, %s139
      %s154 = sphi 0, %s140
      %s158 = sphi 0, %s158
      %s160 = sphi 0, %s158
      %s161 = sphi 0, %s160
      %s175 = sphi 0, %s161
      %s179 = sphi 0, %s179
      %s181 = sphi 0, %s179
      %s182 = sphi 0, %s181
      %s196 = sphi 0, %s182
      %s200 = sphi 0, %s200
      %s202 = sphi 0, %s200
      %s203 = sphi 0, %s202
      %s217 = sphi 0, %s203
      %s221 = sphi 0, %s221
      %s223 = sphi 0, %s221
      %s224 = sphi 0, %s223
      %s238 = sphi 0, %s224
      %s244 = sphi 0, %s246
      %s247 = sphi 0, %s244
      %s248 = sphi 0, %s247
      %s264 = sphi 0, %s248
    $region4: #{heatmap_feature_extractor.1} parent=1 // loop_header_branch
      %22 = sbr.rel (%p20) target = $region8
    $region5: #{heatmap_feature_extractor.1} parent=1 // loop_body
      %s24 = ssub.s32 %s19, 1
      %s25 = ssub.s32 %s19, 2
      %s26 = sadd.s32 %s19, 1
      %s27 = ssub.s32 %s19, %s26
      %p28 = scmp.eq.s32.totalorder %s27, 0
      %s30 = sadd.s32 %s29, 1
      %s31 = scalar_select %p28, %s29, %s30
      %p34 = pneg %p28
      %p35 = scmp.eq.s32.totalorder %s19, 3
      %p36 = por %p34, %p35
      %p37 = scmp.ne.s32.totalorder %s29, %s32
      %p38 = scmp.eq.s32.totalorder %s19, 0
      %p39 = por %p37, %p38
      %p40 = scmp.ne.s32.totalorder %s29, %s32
      %p41 = scmp.eq.s32.totalorder %s24, 3
      %p42 = por %p40, %p41
      %p43 = scmp.ne.s32.totalorder %s32, %s33
      %p44 = scmp.eq.s32.totalorder %s24, 0
      %p45 = por %p43, %p44
      %p46 = scmp.ne.s32.totalorder %s32, %s33
      %p47 = scmp.eq.s32.totalorder %s25, 3
      %p48 = por %p46, %p47
      %p50 = scmp.ne.s32.totalorder %s33, %s49
      %p51 = scmp.eq.s32.totalorder %s25, 0
      %p52 = por %p50, %p51
      %s54 = sadd.s32 %s53, 1
      %p57 = scmp.eq.s32.totalorder %s19, 3
      %p58 = scmp.ne.s32.totalorder %s53, %s55
      %p59 = scmp.eq.s32.totalorder %s19, 0
      %p60 = por %p58, %p59
      %p61 = scmp.ne.s32.totalorder %s53, %s55
      %p62 = scmp.eq.s32.totalorder %s24, 3
      %p63 = por %p61, %p62
      %p64 = scmp.ne.s32.totalorder %s55, %s56
      %p65 = scmp.eq.s32.totalorder %s24, 0
      %p66 = por %p64, %p65
      %p67 = scmp.ne.s32.totalorder %s55, %s56
      %p68 = scmp.eq.s32.totalorder %s25, 3
      %p69 = por %p67, %p68
      %p71 = scmp.ne.s32.totalorder %s56, %s70
      %p72 = scmp.eq.s32.totalorder %s25, 0
      %p73 = por %p71, %p72
      %s75 = sadd.s32 %s74, 1
      %p78 = scmp.eq.s32.totalorder %s19, 3
      %p79 = scmp.ne.s32.totalorder %s74, %s76
      %p80 = scmp.eq.s32.totalorder %s19, 0
      %p81 = por %p79, %p80
      %p82 = scmp.ne.s32.totalorder %s74, %s76
      %p83 = scmp.eq.s32.totalorder %s24, 3
      %p84 = por %p82, %p83
      %p85 = scmp.ne.s32.totalorder %s76, %s77
      %p86 = scmp.eq.s32.totalorder %s24, 0
      %p87 = por %p85, %p86
      %p88 = scmp.ne.s32.totalorder %s76, %s77
      %p89 = scmp.eq.s32.totalorder %s25, 3
      %p90 = por %p88, %p89
      %p92 = scmp.ne.s32.totalorder %s77, %s91
      %p93 = scmp.eq.s32.totalorder %s25, 0
      %p94 = por %p92, %p93
      %s96 = sadd.s32 %s95, 1
      %p99 = scmp.eq.s32.totalorder %s19, 3
      %p100 = scmp.ne.s32.totalorder %s95, %s97
      %p101 = scmp.eq.s32.totalorder %s19, 0
      %p102 = por %p100, %p101
      %p103 = scmp.ne.s32.totalorder %s95, %s97
      %p104 = scmp.eq.s32.totalorder %s24, 3
      %p105 = por %p103, %p104
      %p106 = scmp.ne.s32.totalorder %s97, %s98
      %p107 = scmp.eq.s32.totalorder %s24, 0
      %p108 = por %p106, %p107
      %p109 = scmp.ne.s32.totalorder %s97, %s98
      %p110 = scmp.eq.s32.totalorder %s25, 3
      %p111 = por %p109, %p110
      %p113 = scmp.ne.s32.totalorder %s98, %s112
      %p114 = scmp.eq.s32.totalorder %s25, 0
      %p115 = por %p113, %p114
      %s117 = sadd.s32 %s116, 1
      %p120 = scmp.eq.s32.totalorder %s19, 3
      %p121 = scmp.ne.s32.totalorder %s116, %s118
      %p122 = scmp.eq.s32.totalorder %s19, 0
      %p123 = por %p121, %p122
      %p124 = scmp.ne.s32.totalorder %s116, %s118
      %p125 = scmp.eq.s32.totalorder %s24, 3
      %p126 = por %p124, %p125
      %p127 = scmp.ne.s32.totalorder %s118, %s119
      %p128 = scmp.eq.s32.totalorder %s24, 0
      %p129 = por %p127, %p128
      %p130 = scmp.ne.s32.totalorder %s118, %s119
      %p131 = scmp.eq.s32.totalorder %s25, 3
      %p132 = por %p130, %p131
      %p134 = scmp.ne.s32.totalorder %s119, %s133
      %p135 = scmp.eq.s32.totalorder %s25, 0
      %p136 = por %p134, %p135
      %s138 = sadd.s32 %s137, 1
      %p141 = scmp.eq.s32.totalorder %s19, 3
      %p142 = scmp.ne.s32.totalorder %s137, %s139
      %p143 = scmp.eq.s32.totalorder %s19, 0
      %p144 = por %p142, %p143
      %p145 = scmp.ne.s32.totalorder %s137, %s139
      %p146 = scmp.eq.s32.totalorder %s24, 3
      %p147 = por %p145, %p146
      %p148 = scmp.ne.s32.totalorder %s139, %s140
      %p149 = scmp.eq.s32.totalorder %s24, 0
      %p150 = por %p148, %p149
      %p151 = scmp.ne.s32.totalorder %s139, %s140
      %p152 = scmp.eq.s32.totalorder %s25, 3
      %p153 = por %p151, %p152
      %p155 = scmp.ne.s32.totalorder %s140, %s154
      %p156 = scmp.eq.s32.totalorder %s25, 0
      %p157 = por %p155, %p156
      %s159 = sadd.s32 %s158, 1
      %p162 = scmp.eq.s32.totalorder %s19, 3
      %p163 = scmp.ne.s32.totalorder %s158, %s160
      %p164 = scmp.eq.s32.totalorder %s19, 0
      %p165 = por %p163, %p164
      %p166 = scmp.ne.s32.totalorder %s158, %s160
      %p167 = scmp.eq.s32.totalorder %s24, 3
      %p168 = por %p166, %p167
      %p169 = scmp.ne.s32.totalorder %s160, %s161
      %p170 = scmp.eq.s32.totalorder %s24, 0
      %p171 = por %p169, %p170
      %p172 = scmp.ne.s32.totalorder %s160, %s161
      %p173 = scmp.eq.s32.totalorder %s25, 3
      %p174 = por %p172, %p173
      %p176 = scmp.ne.s32.totalorder %s161, %s175
      %p177 = scmp.eq.s32.totalorder %s25, 0
      %p178 = por %p176, %p177
      %s180 = sadd.s32 %s179, 1
      %p183 = scmp.eq.s32.totalorder %s19, 3
      %p184 = scmp.ne.s32.totalorder %s179, %s181
      %p185 = scmp.eq.s32.totalorder %s19, 0
      %p186 = por %p184, %p185
      %p187 = scmp.ne.s32.totalorder %s179, %s181
      %p188 = scmp.eq.s32.totalorder %s24, 3
      %p189 = por %p187, %p188
      %p190 = scmp.ne.s32.totalorder %s181, %s182
      %p191 = scmp.eq.s32.totalorder %s24, 0
      %p192 = por %p190, %p191
      %p193 = scmp.ne.s32.totalorder %s181, %s182
      %p194 = scmp.eq.s32.totalorder %s25, 3
      %p195 = por %p193, %p194
      %p197 = scmp.ne.s32.totalorder %s182, %s196
      %p198 = scmp.eq.s32.totalorder %s25, 0
      %p199 = por %p197, %p198
      %s201 = sadd.s32 %s200, 1
      %p204 = scmp.eq.s32.totalorder %s19, 3
      %p205 = scmp.ne.s32.totalorder %s200, %s202
      %p206 = scmp.eq.s32.totalorder %s19, 0
      %p207 = por %p205, %p206
      %p208 = scmp.ne.s32.totalorder %s200, %s202
      %p209 = scmp.eq.s32.totalorder %s24, 3
      %p210 = por %p208, %p209
      %p211 = scmp.ne.s32.totalorder %s202, %s203
      %p212 = scmp.eq.s32.totalorder %s24, 0
      %p213 = por %p211, %p212
      %p214 = scmp.ne.s32.totalorder %s202, %s203
      %p215 = scmp.eq.s32.totalorder %s25, 3
      %p216 = por %p214, %p215
      %p218 = scmp.ne.s32.totalorder %s203, %s217
      %p219 = scmp.eq.s32.totalorder %s25, 0
      %p220 = por %p218, %p219
      %s222 = sadd.s32 %s221, 1
      %p225 = scmp.eq.s32.totalorder %s19, 3
      %p226 = scmp.ne.s32.totalorder %s221, %s223
      %p227 = scmp.eq.s32.totalorder %s19, 0
      %p228 = por %p226, %p227
      %p229 = scmp.ne.s32.totalorder %s221, %s223
      %p230 = scmp.eq.s32.totalorder %s24, 3
      %p231 = por %p229, %p230
      %p232 = scmp.ne.s32.totalorder %s223, %s224
      %p233 = scmp.eq.s32.totalorder %s24, 0
      %p234 = por %p232, %p233
      %p235 = scmp.ne.s32.totalorder %s223, %s224
      %p236 = scmp.eq.s32.totalorder %s25, 3
      %p237 = por %p235, %p236
      %p239 = scmp.ne.s32.totalorder %s224, %s238
      %p240 = scmp.eq.s32.totalorder %s25, 0
      %p241 = por %p239, %p240
      %s242 = ssub.s32 %s19, %s26
      %p243 = scmp.eq.s32.totalorder %s242, 0
      %s245 = sadd.s32 %s244, 1
      %s246 = scalar_select %p243, %s244, %s245
      %p249 = pneg %p243
      %p250 = scmp.eq.s32.totalorder %s19, 3
      %p251 = por %p249, %p250
      %p252 = scmp.ne.s32.totalorder %s244, %s247
      %p253 = scmp.eq.s32.totalorder %s19, 0
      %p254 = por %p252, %p253
      %p255 = scmp.ne.s32.totalorder %s244, %s247
      %p256 = scmp.eq.s32.totalorder %s24, 3
      %p257 = por %p255, %p256
      %p258 = scmp.ne.s32.totalorder %s247, %s248
      %p259 = scmp.eq.s32.totalorder %s24, 0
      %p260 = por %p258, %p259
      %p261 = scmp.ne.s32.totalorder %s247, %s248
      %p262 = scmp.eq.s32.totalorder %s25, 3
      %p263 = por %p261, %p262
      %p265 = scmp.ne.s32.totalorder %s248, %s264
      %p266 = scmp.eq.s32.totalorder %s25, 0
      %p267 = por %p265, %p266
      %p268 = scmp.le.s32.totalorder 1, %s19
      %p269 = scmp.lt.s32.totalorder %s19, 5
      %p270 = pnand %p268, %p269
      %p271 = pneg %p270
      // Predicated region
      $region9: #{heatmap_feature_extractor.1} parent=5 // pred_check
        _
      $region10: #{heatmap_feature_extractor.1} parent=5 // pred_check_branch
        %273 = sbr.rel (%p270) target = $region12
      $region11: #{heatmap_feature_extractor.1} parent=5 // pred_region
        %s274 = ssub.s32 %s19, 1
        // Predicated region
        $region13: #{heatmap_feature_extractor.1} parent=11 // pred_check
          %p275 = pneg %p66
        $region14: #{heatmap_feature_extractor.1} parent=11 // pred_check_branch
          %277 = sbr.rel (%p275) target = $region16
        $region15: #{heatmap_feature_extractor.1} parent=11 // pred_region
          _
        $region16: #{heatmap_feature_extractor.1} parent=11 // pred_fallthru
          _
        // Predicated region
        $region17: #{heatmap_feature_extractor.1} parent=11 // pred_check
          %p278 = pneg %p87
        $region18: #{heatmap_feature_extractor.1} parent=11 // pred_check_branch
          %280 = sbr.rel (%p278) target = $region20
        $region19: #{heatmap_feature_extractor.1} parent=11 // pred_region
          _
        $region20: #{heatmap_feature_extractor.1} parent=11 // pred_fallthru
          _
        // Predicated region
        $region21: #{heatmap_feature_extractor.1} parent=11 // pred_check
          %p281 = pneg %p108
        $region22: #{heatmap_feature_extractor.1} parent=11 // pred_check_branch
          %283 = sbr.rel (%p281) target = $region24
        $region23: #{heatmap_feature_extractor.1} parent=11 // pred_region
          _
        $region24: #{heatmap_feature_extractor.1} parent=11 // pred_fallthru
          _
        // Predicated region
        $region25: #{heatmap_feature_extractor.1} parent=11 // pred_check
          %p284 = pneg %p129
        $region26: #{heatmap_feature_extractor.1} parent=11 // pred_check_branch
          %286 = sbr.rel (%p284) target = $region28
        $region27: #{heatmap_feature_extractor.1} parent=11 // pred_region
          _
        $region28: #{heatmap_feature_extractor.1} parent=11 // pred_fallthru
          _
        // Predicated region
        $region29: #{heatmap_feature_extractor.1} parent=11 // pred_check
          %p287 = pneg %p150
        $region30: #{heatmap_feature_extractor.1} parent=11 // pred_check_branch
          %289 = sbr.rel (%p287) target = $region32
        $region31: #{heatmap_feature_extractor.1} parent=11 // pred_region
          _
        $region32: #{heatmap_feature_extractor.1} parent=11 // pred_fallthru
          _
        // Predicated region
        $region33: #{heatmap_feature_extractor.1} parent=11 // pred_check
          %p290 = pneg %p171
        $region34: #{heatmap_feature_extractor.1} parent=11 // pred_check_branch
          %292 = sbr.rel (%p290) target = $region36
        $region35: #{heatmap_feature_extractor.1} parent=11 // pred_region
          _
        $region36: #{heatmap_feature_extractor.1} parent=11 // pred_fallthru
          _
        // Predicated region
        $region37: #{heatmap_feature_extractor.1} parent=11 // pred_check
          %p293 = pneg %p192
        $region38: #{heatmap_feature_extractor.1} parent=11 // pred_check_branch
          %295 = sbr.rel (%p293) target = $region40
        $region39: #{heatmap_feature_extractor.1} parent=11 // pred_region
          _
        $region40: #{heatmap_feature_extractor.1} parent=11 // pred_fallthru
          _
        // Predicated region
        $region41: #{heatmap_feature_extractor.1} parent=11 // pred_check
          %p296 = pneg %p213
        $region42: #{heatmap_feature_extractor.1} parent=11 // pred_check_branch
          %298 = sbr.rel (%p296) target = $region44
        $region43: #{heatmap_feature_extractor.1} parent=11 // pred_region
          _
        $region44: #{heatmap_feature_extractor.1} parent=11 // pred_fallthru
          _
        // Predicated region
        $region45: #{heatmap_feature_extractor.1} parent=11 // pred_check
          %p299 = pneg %p234
        $region46: #{heatmap_feature_extractor.1} parent=11 // pred_check_branch
          %301 = sbr.rel (%p299) target = $region48
        $region47: #{heatmap_feature_extractor.1} parent=11 // pred_region
          _
        $region48: #{heatmap_feature_extractor.1} parent=11 // pred_fallthru
          _
      $region12: #{heatmap_feature_extractor.1} parent=5 // pred_fallthru
        _
      %p302 = scmp.lt.s32.totalorder %s19, 4
      // Predicated region
      $region49: #{heatmap_feature_extractor.1} parent=5 // pred_check
        %p303 = pneg %p302
      $region50: #{heatmap_feature_extractor.1} parent=5 // pred_check_branch
        %305 = sbr.rel (%p303) target = $region52
      $region51: #{heatmap_feature_extractor.1} parent=5 // pred_region
        // Predicated region
        $region53: #{heatmap_feature_extractor.1} parent=51 // pred_check
          %p306 = pneg %p39
        $region54: #{heatmap_feature_extractor.1} parent=51 // pred_check_branch
          %308 = sbr.rel (%p306) target = $region56
        $region55: #{heatmap_feature_extractor.1} parent=51 // pred_region
          %s309 = smul.u32 16, %s19
          %p310 = scmp.lt.s32.totalorder %s309, 63
          %s311 = scalar_select %p310, %s309, 63
          %s312 = smul.addr %s311, 8
          %s313 = scalar_lea.vmem %s0, %s312
          %s314 = smul.u32 16, %s19
        $region56: #{heatmap_feature_extractor.1} parent=51 // pred_fallthru
          _
      $region52: #{heatmap_feature_extractor.1} parent=5 // pred_fallthru
        _
      %p315 = scmp.le.s32.totalorder 1, %s19
      %p316 = scmp.lt.s32.totalorder %s19, 5
      %p317 = pnand %p315, %p316
      %p318 = pneg %p317
      // Predicated region
      $region57: #{heatmap_feature_extractor.1} parent=5 // pred_check
        _
      $region58: #{heatmap_feature_extractor.1} parent=5 // pred_check_branch
        %320 = sbr.rel (%p317) target = $region60
      $region59: #{heatmap_feature_extractor.1} parent=5 // pred_region
        %s321 = ssub.s32 %s19, 1
        %s322 = smul.u32 16, %s24
        %p323 = scmp.lt.s32.totalorder %s322, 63
        %s324 = scalar_select %p323, %s322, 63
        %s325 = smul.addr %s324, 8
        %s326 = scalar_lea.vmem %s0, %s325
        %p327 = pneg %p45
        %p328 = pneg %p42
        %p329 = pneg %p66
        %p330 = pneg %p63
        %p331 = pneg %p87
        %p332 = pneg %p84
        %p333 = pneg %p108
        %p334 = pneg %p105
        %p335 = pneg %p129
        %p336 = pneg %p126
        %p337 = pneg %p150
        %p338 = pneg %p147
        %p339 = pneg %p171
        %p340 = pneg %p168
        %p341 = pneg %p192
        %p342 = pneg %p189
        %p343 = pneg %p213
        %p344 = pneg %p210
        %p345 = pneg %p234
        %p346 = pneg %p231
        %p347 = pneg %p260
        %p348 = pneg %p257
        %s349 = sand.u32 %s247, 1
        %s350 = scalar_lea.sflag [#allocation5], %s349
        %s351 = sand.u32 %s247, 1
        %s352 = smul.addr %s351, 16
        %s353 = scalar_lea.vmem [#allocation4], %s352
        %s354 = smul.u32 16, %s24
        %p355 = scmp.lt.s32.totalorder %s354, 63
        %s356 = scalar_select %p355, %s354, 63
        %s357 = smul.addr %s356, 8
        %s358 = scalar_lea.vmem %s0, %s357
        %s359 = smul.u32 16, %s24
        %v361 = vld [vmem:[%s358] sm:$0xff]
        %v362 = vld [vmem:[%s358 + $0x8] sm:$0xff]
        %v363 = vld [vmem:[%s358 + $0x10] sm:$0xff]
        %v364 = vld [vmem:[%s358 + $0x18] sm:$0xff]
        %v365 = vld [vmem:[%s358 + $0x20] sm:$0xff]
        %v366 = vld [vmem:[%s358 + $0x28] sm:$0xff]
        %v367 = vld [vmem:[%s358 + $0x30] sm:$0xff]
        %v368 = vld [vmem:[%s358 + $0x38] sm:$0xff]
        %v369 = vld [vmem:[%s358 + $0x40] sm:$0xff]
        %v370 = vld [vmem:[%s358 + $0x48] sm:$0xff]
        %v371 = vld [vmem:[%s358 + $0x50] sm:$0xff]
        %v372 = vld [vmem:[%s358 + $0x58] sm:$0xff]
        %v373 = vld [vmem:[%s358 + $0x60] sm:$0xff]
        %v374 = vld [vmem:[%s358 + $0x68] sm:$0xff]
        %v375 = vld [vmem:[%s358 + $0x70] sm:$0xff]
        %v376 = vld [vmem:[%s358 + $0x78] sm:$0xff]
        %v377 = vpack.c.bf16 %v362, %v361
        %v378 = vpack.c.bf16 %v364, %v363
        %v379 = vpack.c.bf16 %v366, %v365
        %v380 = vpack.c.bf16 %v368, %v367
        %v381 = vpack.c.bf16 %v370, %v369
        %v382 = vpack.c.bf16 %v372, %v371
        %v383 = vpack.c.bf16 %v374, %v373
        %v384 = vpack.c.bf16 %v376, %v375
        %v385 = vld [vmem:[%s1] sm:$0xff]
        %v386 = vld [vmem:[%s1 + $0x8] sm:$0xff]
        %v387 = vld [vmem:[%s1 + $0x10] sm:$0xff]
        %v388 = vld [vmem:[%s1 + $0x18] sm:$0xff]
        %v389 = vld [vmem:[%s1 + $0x20] sm:$0xff]
        %v390 = vld [vmem:[%s1 + $0x28] sm:$0xff]
        %v391 = vld [vmem:[%s1 + $0x30] sm:$0x77]
        %v392 = vld [vmem:[%s2] sm:$0x3]
        %v394 = vlaneseq
        %v395 = vshrl.u32 %v394, 7
        %v396 = vsub.s32 0, %v395
        %v397 = vrot.slane %v392, %v396
        %v398 = vlaneseq
        %v399 = vshrl.u32 %v398, 7
        %v400 = vsub.s32 1, %v399
        %v401 = vrot.slane %v392, %v400
        %v411 = vunpack.c.l.b16 %v385
        %v412 = vunpack.c.h.b16 %v385
        %v413 = vunpack.c.l.b16 %v386
        %v414 = vunpack.c.h.b16 %v386
        %v415 = vunpack.c.l.b16 %v387
        %v416 = vunpack.c.h.b16 %v387
        %v417 = vunpack.c.l.b16 %v388
        %v418 = vunpack.c.h.b16 %v388
        %v419 = vunpack.c.l.b16 %v389
        %v420 = vunpack.c.h.b16 %v389
        %v421 = vunpack.c.l.b16 %v390
        %v422 = vunpack.c.h.b16 %v390
        %v423 = vunpack.c.l.b16 %v391
        %v424 = vunpack.c.h.b16 %v391
        %v425 = vpack.c.b16 %v413, %v411
        %v426 = vpack.c.b16 %v414, %v412
        %v427 = vpack.c.b16 %v417, %v415
        %v428 = vpack.c.b16 %v418, %v416
        %v429 = vpack.c.b16 %v421, %v419
        %v430 = vpack.c.b16 %v422, %v420
        %v431 = vpack.c.b16 %v423, %v423
        %v432 = vpack.c.b16 %v424, %v424
        %vm439 = vcmask 441344
        %v441 = vsel %vm439, %v377, 0
        %v444 = vsel %vm439, %v378, 0
        %v447 = vsel %vm439, %v379, 0
        %v450 = vsel %vm439, %v380, 0
        %v453 = vsel %vm439, %v381, 0
        %v456 = vsel %vm439, %v382, 0
        %v459 = vsel %vm439, %v383, 0
        %v462 = vsel %vm439, %v384, 0
        %vm464 = vcmask 1042432
        %v466 = vsel %vm464, %v431, 0
        %v469 = vsel %vm464, %v432, 0
        %471 = vmatprep.subr.bf16.mxu0 0
        %472 = vmatpush1.bf16.msra.mxu0 0
        %473 = vmatprep.subr.bf16.mxu0 0
        %474 = vmatpush1.bf16.msra.mxu0 0
        %475 = vmatprep.subr.bf16.mxu0 0
        %476 = vmatpush1.bf16.msra.mxu0 0
        %477 = vmatprep.subr.bf16.mxu0 0
        %478 = vmatpush1.bf16.msra.mxu0 0
        %479 = vmatprep.subr.bf16.mxu0 %v469
        %480 = vmatpush1.bf16.msra.mxu0 %v466
        %481 = vmatprep.subr.bf16.mxu0 %v430
        %482 = vmatpush1.bf16.msra.mxu0 %v429
        %483 = vmatprep.subr.bf16.mxu0 %v428
        %484 = vmatpush1.bf16.msra.mxu0 %v427
        %485 = vmatprep.subr.bf16.mxu0 %v426
        %486 = vmatpush1.bf16.msra.mxu0 %v425
        %487 = vmatprep.subr.bf16.mxu0 0
        %488 = vmatpush2.bf16.msra.mxu0 0
        %489 = vmatprep.subr.bf16.mxu0 0
        %490 = vmatpush2.bf16.msra.mxu0 0
        %491 = vmatprep.subr.bf16.mxu0 0
        %492 = vmatpush2.bf16.msra.mxu0 0
        %493 = vmatprep.subr.bf16.mxu0 0
        %494 = vmatpush2.bf16.msra.mxu0 0
        %495 = vmatprep.subr.bf16.mxu0 0
        %496 = vmatpush2.bf16.msra.mxu0 0
        %497 = vmatprep.subr.bf16.mxu0 0
        %498 = vmatpush2.bf16.msra.mxu0 0
        %499 = vmatprep.subr.bf16.mxu0 0
        %500 = vmatpush2.bf16.msra.mxu0 0
        %501 = vmatprep.subr.bf16.mxu0 0
        %502 = vmatpush2.bf16.msra.mxu0 0
        %503 = vmatprep.mubr.bf16.mxu0 0
        %504 = vmatmul.mubr.bf16.gmra.mxu0 %v441
        %v505 = vpop.f32.mrf.mxu0
        %v506 = vadd.f32 %v397, %v505
        %v507 = vpop.f32.mrf.mxu0
        %v508 = vadd.f32 %v401, %v507
        %v509 = vpop.f32.mrf.mxu0
        %v510 = vadd.f32 %v397, %v509
        %v511 = vpop.f32.mrf.mxu0
        %v512 = vadd.f32 %v401, %v511
        %513 = vmatprep.mubr.bf16.mxu0 0
        %514 = vmatmul.mubr.bf16.gmra.mxu0 %v444
        %v515 = vpop.f32.mrf.mxu0
        %v516 = vadd.f32 %v397, %v515
        %v517 = vpop.f32.mrf.mxu0
        %v518 = vadd.f32 %v401, %v517
        %v519 = vpop.f32.mrf.mxu0
        %v520 = vadd.f32 %v397, %v519
        %v521 = vpop.f32.mrf.mxu0
        %v522 = vadd.f32 %v401, %v521
        %523 = vmatprep.mubr.bf16.mxu0 0
        %524 = vmatmul.mubr.bf16.gmra.mxu0 %v447
        %v525 = vpop.f32.mrf.mxu0
        %v526 = vadd.f32 %v397, %v525
        %v527 = vpop.f32.mrf.mxu0
        %v528 = vadd.f32 %v401, %v527
        %v529 = vpop.f32.mrf.mxu0
        %v530 = vadd.f32 %v397, %v529
        %v531 = vpop.f32.mrf.mxu0
        %v532 = vadd.f32 %v401, %v531
        %533 = vmatprep.mubr.bf16.mxu0 0
        %534 = vmatmul.mubr.bf16.gmra.mxu0 %v450
        %v535 = vpop.f32.mrf.mxu0
        %v536 = vadd.f32 %v397, %v535
        %v537 = vpop.f32.mrf.mxu0
        %v538 = vadd.f32 %v401, %v537
        %v539 = vpop.f32.mrf.mxu0
        %v540 = vadd.f32 %v397, %v539
        %v541 = vpop.f32.mrf.mxu0
        %v542 = vadd.f32 %v401, %v541
        %543 = vmatprep.mubr.bf16.mxu0 0
        %544 = vmatmul.mubr.bf16.gmra.mxu0 %v453
        %v545 = vpop.f32.mrf.mxu0
        %v546 = vadd.f32 %v397, %v545
        %v547 = vpop.f32.mrf.mxu0
        %v548 = vadd.f32 %v401, %v547
        %v549 = vpop.f32.mrf.mxu0
        %v550 = vadd.f32 %v397, %v549
        %v551 = vpop.f32.mrf.mxu0
        %v552 = vadd.f32 %v401, %v551
        %553 = vmatprep.mubr.bf16.mxu0 0
        %554 = vmatmul.mubr.bf16.gmra.mxu0 %v456
        %v555 = vpop.f32.mrf.mxu0
        %v556 = vadd.f32 %v397, %v555
        %v557 = vpop.f32.mrf.mxu0
        %v558 = vadd.f32 %v401, %v557
        %v559 = vpop.f32.mrf.mxu0
        %v560 = vadd.f32 %v397, %v559
        %v561 = vpop.f32.mrf.mxu0
        %v562 = vadd.f32 %v401, %v561
        %563 = vmatprep.mubr.bf16.mxu0 0
        %564 = vmatmul.mubr.bf16.gmra.mxu0 %v459
        %v565 = vpop.f32.mrf.mxu0
        %v566 = vadd.f32 %v397, %v565
        %v567 = vpop.f32.mrf.mxu0
        %v568 = vadd.f32 %v401, %v567
        %v569 = vpop.f32.mrf.mxu0
        %v570 = vadd.f32 %v397, %v569
        %v571 = vpop.f32.mrf.mxu0
        %v572 = vadd.f32 %v401, %v571
        %573 = vmatprep.mubr.bf16.mxu0 0
        %574 = vmatmul.mubr.bf16.gmra.mxu0 %v462
        %v575 = vpop.f32.mrf.mxu0
        %v576 = vadd.f32 %v397, %v575
        %v577 = vpop.f32.mrf.mxu0
        %v578 = vadd.f32 %v401, %v577
        %v579 = vpop.f32.mrf.mxu0
        %v580 = vadd.f32 %v397, %v579
        %v581 = vpop.f32.mrf.mxu0
        %v582 = vadd.f32 %v401, %v581
        %583 = vdwg.mxu0
        %v584 = vmax.f32 %v506, 0.0
        %v585 = vmax.f32 %v508, 0.0
        %v586 = vmax.f32 %v510, 0.0
        %v587 = vmax.f32 %v512, 0.0
        %v588 = vmax.f32 %v516, 0.0
        %v589 = vmax.f32 %v518, 0.0
        %v590 = vmax.f32 %v520, 0.0
        %v591 = vmax.f32 %v522, 0.0
        %v592 = vmax.f32 %v526, 0.0
        %v593 = vmax.f32 %v528, 0.0
        %v594 = vmax.f32 %v530, 0.0
        %v595 = vmax.f32 %v532, 0.0
        %v596 = vmax.f32 %v536, 0.0
        %v597 = vmax.f32 %v538, 0.0
        %v598 = vmax.f32 %v540, 0.0
        %v599 = vmax.f32 %v542, 0.0
        %v600 = vmax.f32 %v546, 0.0
        %v601 = vmax.f32 %v548, 0.0
        %v602 = vmax.f32 %v550, 0.0
        %v603 = vmax.f32 %v552, 0.0
        %v604 = vmax.f32 %v556, 0.0
        %v605 = vmax.f32 %v558, 0.0
        %v606 = vmax.f32 %v560, 0.0
        %v607 = vmax.f32 %v562, 0.0
        %v608 = vmax.f32 %v566, 0.0
        %v609 = vmax.f32 %v568, 0.0
        %v610 = vmax.f32 %v570, 0.0
        %v611 = vmax.f32 %v572, 0.0
        %v612 = vmax.f32 %v576, 0.0
        %v613 = vmax.f32 %v578, 0.0
        %v614 = vmax.f32 %v580, 0.0
        %v615 = vmax.f32 %v582, 0.0
        %648 = vrot.lane.b32.xlu0 %v584, 112
        %v649 = vpop.permute.xlu0 %648
        %650 = vrot.lane.b32.xlu0 %v585, 112
        %v651 = vpop.permute.xlu0 %650
        %652 = vrot.lane.b32.xlu0 %v586, 112
        %v653 = vpop.permute.xlu0 %652
        %654 = vrot.lane.b32.xlu0 %v587, 112
        %v655 = vpop.permute.xlu0 %654
        %656 = vrot.lane.b32.xlu0 %v588, 112
        %v657 = vpop.permute.xlu0 %656
        %658 = vrot.lane.b32.xlu0 %v589, 112
        %v659 = vpop.permute.xlu0 %658
        %660 = vrot.lane.b32.xlu0 %v590, 112
        %v661 = vpop.permute.xlu0 %660
        %662 = vrot.lane.b32.xlu0 %v591, 112
        %v663 = vpop.permute.xlu0 %662
        %664 = vrot.lane.b32.xlu0 %v592, 112
        %v665 = vpop.permute.xlu0 %664
        %666 = vrot.lane.b32.xlu0 %v593, 112
        %v667 = vpop.permute.xlu0 %666
        %668 = vrot.lane.b32.xlu0 %v594, 112
        %v669 = vpop.permute.xlu0 %668
        %670 = vrot.lane.b32.xlu0 %v595, 112
        %v671 = vpop.permute.xlu0 %670
        %672 = vrot.lane.b32.xlu0 %v596, 112
        %v673 = vpop.permute.xlu0 %672
        %674 = vrot.lane.b32.xlu0 %v597, 112
        %v675 = vpop.permute.xlu0 %674
        %676 = vrot.lane.b32.xlu0 %v598, 112
        %v677 = vpop.permute.xlu0 %676
        %678 = vrot.lane.b32.xlu0 %v599, 112
        %v679 = vpop.permute.xlu0 %678
        %680 = vrot.lane.b32.xlu0 %v600, 112
        %v681 = vpop.permute.xlu0 %680
        %682 = vrot.lane.b32.xlu0 %v601, 112
        %v683 = vpop.permute.xlu0 %682
        %684 = vrot.lane.b32.xlu0 %v602, 112
        %v685 = vpop.permute.xlu0 %684
        %686 = vrot.lane.b32.xlu0 %v603, 112
        %v687 = vpop.permute.xlu0 %686
        %688 = vrot.lane.b32.xlu0 %v604, 112
        %v689 = vpop.permute.xlu0 %688
        %690 = vrot.lane.b32.xlu0 %v605, 112
        %v691 = vpop.permute.xlu0 %690
        %692 = vrot.lane.b32.xlu0 %v606, 112
        %v693 = vpop.permute.xlu0 %692
        %694 = vrot.lane.b32.xlu0 %v607, 112
        %v695 = vpop.permute.xlu0 %694
        %696 = vrot.lane.b32.xlu0 %v608, 112
        %v697 = vpop.permute.xlu0 %696
        %698 = vrot.lane.b32.xlu0 %v609, 112
        %v699 = vpop.permute.xlu0 %698
        %700 = vrot.lane.b32.xlu0 %v610, 112
        %v701 = vpop.permute.xlu0 %700
        %702 = vrot.lane.b32.xlu0 %v611, 112
        %v703 = vpop.permute.xlu0 %702
        %704 = vrot.lane.b32.xlu0 %v612, 112
        %v705 = vpop.permute.xlu0 %704
        %706 = vrot.lane.b32.xlu0 %v613, 112
        %v707 = vpop.permute.xlu0 %706
        %708 = vrot.lane.b32.xlu0 %v614, 112
        %v709 = vpop.permute.xlu0 %708
        %710 = vrot.lane.b32.xlu0 %v615, 112
        %v711 = vpop.permute.xlu0 %710
        %vm712 = vcmask 916480
        %v713 = vsel %vm712, %v649, %v651
        %v714 = vsel %vm712, %v653, %v655
        %v715 = vsel %vm712, %v657, %v659
        %v716 = vsel %vm712, %v661, %v663
        %v717 = vsel %vm712, %v665, %v667
        %v718 = vsel %vm712, %v669, %v671
        %v719 = vsel %vm712, %v673, %v675
        %v720 = vsel %vm712, %v677, %v679
        %v721 = vsel %vm712, %v681, %v683
        %v722 = vsel %vm712, %v685, %v687
        %v723 = vsel %vm712, %v689, %v691
        %v724 = vsel %vm712, %v693, %v695
        %v725 = vsel %vm712, %v697, %v699
        %v726 = vsel %vm712, %v701, %v703
        %v727 = vsel %vm712, %v705, %v707
        %v728 = vsel %vm712, %v709, %v711
        %v761 = vmax.f32 %v584, %v713
        %v762 = vmax.f32 %v585, %v651
        %v763 = vmax.f32 %v586, %v714
        %v764 = vmax.f32 %v587, %v655
        %v765 = vmax.f32 %v588, %v715
        %v766 = vmax.f32 %v589, %v659
        %v767 = vmax.f32 %v590, %v716
        %v768 = vmax.f32 %v591, %v663
        %v769 = vmax.f32 %v592, %v717
        %v770 = vmax.f32 %v593, %v667
        %v771 = vmax.f32 %v594, %v718
        %v772 = vmax.f32 %v595, %v671
        %v773 = vmax.f32 %v596, %v719
        %v774 = vmax.f32 %v597, %v675
        %v775 = vmax.f32 %v598, %v720
        %v776 = vmax.f32 %v599, %v679
        %v777 = vmax.f32 %v600, %v721
        %v778 = vmax.f32 %v601, %v683
        %v779 = vmax.f32 %v602, %v722
        %v780 = vmax.f32 %v603, %v687
        %v781 = vmax.f32 %v604, %v723
        %v782 = vmax.f32 %v605, %v691
        %v783 = vmax.f32 %v606, %v724
        %v784 = vmax.f32 %v607, %v695
        %v785 = vmax.f32 %v608, %v725
        %v786 = vmax.f32 %v609, %v699
        %v787 = vmax.f32 %v610, %v726
        %v788 = vmax.f32 %v611, %v703
        %v789 = vmax.f32 %v612, %v727
        %v790 = vmax.f32 %v613, %v707
        %v791 = vmax.f32 %v614, %v728
        %v792 = vmax.f32 %v615, %v711
        %v793 = vlaneseq
        %vm794 = vcmp.ge.s32.totalorder %v793, 0
        %vm795 = vcmp.lt.s32.totalorder %v793, 240
        %vm796 = vmand %vm794, %vm795
        %797 = vst.msk [vmem:[#allocation2] ss:$8 sm:$0x3] %vm796, 0.0
        %798 = vst.msk [vmem:[#allocation2] ss:$8 sm:$0x0] %vm796, 0.0
        %s799 = scalar_lea.vmem [#allocation2], 32
        %800 = vst.msk [vmem:[%s799] ss:$8 sm:$0x3] %vm796, 0.0
        %801 = vst.msk [vmem:[%s799] ss:$8 sm:$0x0] %vm796, 0.0
        %s802 = scalar_lea.vmem [#allocation2], 64
        %803 = vst.msk [vmem:[%s802] ss:$8 sm:$0x3] %vm796, 0.0
        %804 = vst.msk [vmem:[%s802] ss:$8 sm:$0x0] %vm796, 0.0
        %s805 = scalar_lea.vmem [#allocation2], 96
        %806 = vst.msk [vmem:[%s805] ss:$8 sm:$0x3] %vm796, 0.0
        %807 = vst.msk [vmem:[%s805] ss:$8 sm:$0x0] %vm796, 0.0
        %s808 = scalar_lea.vmem [#allocation2], 128
        %809 = vst.msk [vmem:[%s808] ss:$8 sm:$0x3] %vm796, 0.0
        %810 = vst.msk [vmem:[%s808] ss:$8 sm:$0x0] %vm796, 0.0
        %s811 = scalar_lea.vmem [#allocation2], 160
        %812 = vst.msk [vmem:[%s811] ss:$8 sm:$0x3] %vm796, 0.0
        %813 = vst.msk [vmem:[%s811] ss:$8 sm:$0x0] %vm796, 0.0
        %s814 = scalar_lea.vmem [#allocation2], 192
        %815 = vst.msk [vmem:[%s814] ss:$8 sm:$0x3] %vm796, 0.0
        %816 = vst.msk [vmem:[%s814] ss:$8 sm:$0x0] %vm796, 0.0
        %s817 = scalar_lea.vmem [#allocation2], 224
        %818 = vst.msk [vmem:[%s817] ss:$8 sm:$0x3] %vm796, 0.0
        %819 = vst.msk [vmem:[%s817] ss:$8 sm:$0x0] %vm796, 0.0
        %s820 = scalar_lea.vmem [#allocation2], 17
        %821 = vst.msk [vmem:[%s820] ss:$8 sm:$0x3] %vm796, 0.0
        %822 = vst.msk [vmem:[%s820] ss:$8 sm:$0x0] %vm796, 0.0
        %s823 = scalar_lea.vmem [#allocation2], 49
        %824 = vst.msk [vmem:[%s823] ss:$8 sm:$0x3] %vm796, 0.0
        %825 = vst.msk [vmem:[%s823] ss:$8 sm:$0x0] %vm796, 0.0
        %s826 = scalar_lea.vmem [#allocation2], 81
        %827 = vst.msk [vmem:[%s826] ss:$8 sm:$0x3] %vm796, 0.0
        %828 = vst.msk [vmem:[%s826] ss:$8 sm:$0x0] %vm796, 0.0
        %s829 = scalar_lea.vmem [#allocation2], 113
        %830 = vst.msk [vmem:[%s829] ss:$8 sm:$0x3] %vm796, 0.0
        %831 = vst.msk [vmem:[%s829] ss:$8 sm:$0x0] %vm796, 0.0
        %s832 = scalar_lea.vmem [#allocation2], 145
        %833 = vst.msk [vmem:[%s832] ss:$8 sm:$0x3] %vm796, 0.0
        %834 = vst.msk [vmem:[%s832] ss:$8 sm:$0x0] %vm796, 0.0
        %s835 = scalar_lea.vmem [#allocation2], 177
        %836 = vst.msk [vmem:[%s835] ss:$8 sm:$0x3] %vm796, 0.0
        %837 = vst.msk [vmem:[%s835] ss:$8 sm:$0x0] %vm796, 0.0
        %s838 = scalar_lea.vmem [#allocation2], 209
        %839 = vst.msk [vmem:[%s838] ss:$8 sm:$0x3] %vm796, 0.0
        %840 = vst.msk [vmem:[%s838] ss:$8 sm:$0x0] %vm796, 0.0
        %s841 = scalar_lea.vmem [#allocation2], 241
        %842 = vst.msk [vmem:[%s841] ss:$8 sm:$0x3] %vm796, 0.0
        %843 = vst.msk [vmem:[%s841] ss:$8 sm:$0x0] %vm796, 0.0
        %v860 = vrot.slane %v761, 1
        %v861 = vrot.slane %v762, 1
        %v862 = vrot.slane %v765, 1
        %v863 = vrot.slane %v766, 1
        %v864 = vrot.slane %v769, 1
        %v865 = vrot.slane %v770, 1
        %v866 = vrot.slane %v773, 1
        %v867 = vrot.slane %v774, 1
        %v868 = vrot.slane %v777, 1
        %v869 = vrot.slane %v778, 1
        %v870 = vrot.slane %v781, 1
        %v871 = vrot.slane %v782, 1
        %v872 = vrot.slane %v785, 1
        %v873 = vrot.slane %v786, 1
        %v874 = vrot.slane %v789, 1
        %v875 = vrot.slane %v790, 1
        %v892 = vmax.f32 %v761, %v860
        %v893 = vmax.f32 %v762, %v861
        %v894 = vmax.f32 %v765, %v862
        %v895 = vmax.f32 %v766, %v863
        %v896 = vmax.f32 %v769, %v864
        %v897 = vmax.f32 %v770, %v865
        %v898 = vmax.f32 %v773, %v866
        %v899 = vmax.f32 %v774, %v867
        %v900 = vmax.f32 %v777, %v868
        %v901 = vmax.f32 %v778, %v869
        %v902 = vmax.f32 %v781, %v870
        %v903 = vmax.f32 %v782, %v871
        %v904 = vmax.f32 %v785, %v872
        %v905 = vmax.f32 %v786, %v873
        %v906 = vmax.f32 %v789, %v874
        %v907 = vmax.f32 %v790, %v875
        %v924 = vcombine.low %v892, %v893
        %v926 = vunpack.c.l.s4 1966171168
        %v927 = vunpack.c.0.s8 %v926
        %v928 = vlaneseq
        %v929 = vshrl.u32 %v928, 7
        %v930 = vsub.s32 %v927, %v929
        %v931 = vrot.slane %v924, %v930
        %v933 = vunpack.c.l.s4 1966171168
        %v934 = vunpack.c.0.s8 %v933
        %v935 = vlaneseq
        %v936 = vshrl.u32 %v935, 7
        %v937 = vsub.s32 %v934, %v936
        %v938 = vrot.slane %v931, %v937
        %v939 = vcombine.low %v894, %v895
        %v941 = vunpack.c.l.s4 1966171168
        %v942 = vunpack.c.0.s8 %v941
        %v943 = vlaneseq
        %v944 = vshrl.u32 %v943, 7
        %v945 = vsub.s32 %v942, %v944
        %v946 = vrot.slane %v939, %v945
        %v948 = vunpack.c.l.s4 1966171168
        %v949 = vunpack.c.0.s8 %v948
        %v950 = vlaneseq
        %v951 = vshrl.u32 %v950, 7
        %v952 = vsub.s32 %v949, %v951
        %v953 = vrot.slane %v946, %v952
        %v954 = vcombine.low %v896, %v897
        %v956 = vunpack.c.l.s4 1966171168
        %v957 = vunpack.c.0.s8 %v956
        %v958 = vlaneseq
        %v959 = vshrl.u32 %v958, 7
        %v960 = vsub.s32 %v957, %v959
        %v961 = vrot.slane %v954, %v960
        %v963 = vunpack.c.l.s4 1966171168
        %v964 = vunpack.c.0.s8 %v963
        %v965 = vlaneseq
        %v966 = vshrl.u32 %v965, 7
        %v967 = vsub.s32 %v964, %v966
        %v968 = vrot.slane %v961, %v967
        %v969 = vcombine.low %v898, %v899
        %v971 = vunpack.c.l.s4 1966171168
        %v972 = vunpack.c.0.s8 %v971
        %v973 = vlaneseq
        %v974 = vshrl.u32 %v973, 7
        %v975 = vsub.s32 %v972, %v974
        %v976 = vrot.slane %v969, %v975
        %v978 = vunpack.c.l.s4 1966171168
        %v979 = vunpack.c.0.s8 %v978
        %v980 = vlaneseq
        %v981 = vshrl.u32 %v980, 7
        %v982 = vsub.s32 %v979, %v981
        %v983 = vrot.slane %v976, %v982
        %v984 = vcombine.low %v900, %v901
        %v986 = vunpack.c.l.s4 1966171168
        %v987 = vunpack.c.0.s8 %v986
        %v988 = vlaneseq
        %v989 = vshrl.u32 %v988, 7
        %v990 = vsub.s32 %v987, %v989
        %v991 = vrot.slane %v984, %v990
        %v993 = vunpack.c.l.s4 1966171168
        %v994 = vunpack.c.0.s8 %v993
        %v995 = vlaneseq
        %v996 = vshrl.u32 %v995, 7
        %v997 = vsub.s32 %v994, %v996
        %v998 = vrot.slane %v991, %v997
        %v999 = vcombine.low %v902, %v903
        %v1001 = vunpack.c.l.s4 1966171168
        %v1002 = vunpack.c.0.s8 %v1001
        %v1003 = vlaneseq
        %v1004 = vshrl.u32 %v1003, 7
        %v1005 = vsub.s32 %v1002, %v1004
        %v1006 = vrot.slane %v999, %v1005
        %v1008 = vunpack.c.l.s4 1966171168
        %v1009 = vunpack.c.0.s8 %v1008
        %v1010 = vlaneseq
        %v1011 = vshrl.u32 %v1010, 7
        %v1012 = vsub.s32 %v1009, %v1011
        %v1013 = vrot.slane %v1006, %v1012
        %v1014 = vcombine.low %v904, %v905
        %v1016 = vunpack.c.l.s4 1966171168
        %v1017 = vunpack.c.0.s8 %v1016
        %v1018 = vlaneseq
        %v1019 = vshrl.u32 %v1018, 7
        %v1020 = vsub.s32 %v1017, %v1019
        %v1021 = vrot.slane %v1014, %v1020
        %v1023 = vunpack.c.l.s4 1966171168
        %v1024 = vunpack.c.0.s8 %v1023
        %v1025 = vlaneseq
        %v1026 = vshrl.u32 %v1025, 7
        %v1027 = vsub.s32 %v1024, %v1026
        %v1028 = vrot.slane %v1021, %v1027
        %v1029 = vcombine.low %v906, %v907
        %v1031 = vunpack.c.l.s4 1966171168
        %v1032 = vunpack.c.0.s8 %v1031
        %v1033 = vlaneseq
        %v1034 = vshrl.u32 %v1033, 7
        %v1035 = vsub.s32 %v1032, %v1034
        %v1036 = vrot.slane %v1029, %v1035
        %v1038 = vunpack.c.l.s4 1966171168
        %v1039 = vunpack.c.0.s8 %v1038
        %v1040 = vlaneseq
        %v1041 = vshrl.u32 %v1040, 7
        %v1042 = vsub.s32 %v1039, %v1041
        %v1043 = vrot.slane %v1036, %v1042
        %s1052 = scalar_lea.vmem [#allocation2], 1
        %1053 = vst.msk [vmem:[%s1052] ss:$8 sm:$0x3] %vm796, %v938
        %1054 = vst.msk [vmem:[%s1052] ss:$8 sm:$0x0] %vm796, %v938
        %s1055 = scalar_lea.vmem [#allocation2], 33
        %1056 = vst.msk [vmem:[%s1055] ss:$8 sm:$0x3] %vm796, %v953
        %1057 = vst.msk [vmem:[%s1055] ss:$8 sm:$0x0] %vm796, %v953
        %s1058 = scalar_lea.vmem [#allocation2], 65
        %1059 = vst.msk [vmem:[%s1058] ss:$8 sm:$0x3] %vm796, %v968
        %1060 = vst.msk [vmem:[%s1058] ss:$8 sm:$0x0] %vm796, %v968
        %s1061 = scalar_lea.vmem [#allocation2], 97
        %1062 = vst.msk [vmem:[%s1061] ss:$8 sm:$0x3] %vm796, %v983
        %1063 = vst.msk [vmem:[%s1061] ss:$8 sm:$0x0] %vm796, %v983
        %s1064 = scalar_lea.vmem [#allocation2], 129
        %1065 = vst.msk [vmem:[%s1064] ss:$8 sm:$0x3] %vm796, %v998
        %1066 = vst.msk [vmem:[%s1064] ss:$8 sm:$0x0] %vm796, %v998
        %s1067 = scalar_lea.vmem [#allocation2], 161
        %1068 = vst.msk [vmem:[%s1067] ss:$8 sm:$0x3] %vm796, %v1013
        %1069 = vst.msk [vmem:[%s1067] ss:$8 sm:$0x0] %vm796, %v1013
        %s1070 = scalar_lea.vmem [#allocation2], 193
        %1071 = vst.msk [vmem:[%s1070] ss:$8 sm:$0x3] %vm796, %v1028
        %1072 = vst.msk [vmem:[%s1070] ss:$8 sm:$0x0] %vm796, %v1028
        %s1073 = scalar_lea.vmem [#allocation2], 225
        %1074 = vst.msk [vmem:[%s1073] ss:$8 sm:$0x3] %vm796, %v1043
        %1075 = vst.msk [vmem:[%s1073] ss:$8 sm:$0x0] %vm796, %v1043
        %v1076 = vcombine.high %v938, %v938
        %v1077 = vcombine.high %v953, %v953
        %v1078 = vcombine.high %v968, %v968
        %v1079 = vcombine.high %v983, %v983
        %v1080 = vcombine.high %v998, %v998
        %v1081 = vcombine.high %v1013, %v1013
        %v1082 = vcombine.high %v1028, %v1028
        %v1083 = vcombine.high %v1043, %v1043
        %s1092 = scalar_lea.vmem [#allocation2], 2
        %1093 = vst.msk [vmem:[%s1092] ss:$8 sm:$0x3] %vm796, %v1076
        %1094 = vst.msk [vmem:[%s1092] ss:$8 sm:$0x0] %vm796, %v1076
        %s1095 = scalar_lea.vmem [#allocation2], 34
        %1096 = vst.msk [vmem:[%s1095] ss:$8 sm:$0x3] %vm796, %v1077
        %1097 = vst.msk [vmem:[%s1095] ss:$8 sm:$0x0] %vm796, %v1077
        %s1098 = scalar_lea.vmem [#allocation2], 66
        %1099 = vst.msk [vmem:[%s1098] ss:$8 sm:$0x3] %vm796, %v1078
        %1100 = vst.msk [vmem:[%s1098] ss:$8 sm:$0x0] %vm796, %v1078
        %s1101 = scalar_lea.vmem [#allocation2], 98
        %1102 = vst.msk [vmem:[%s1101] ss:$8 sm:$0x3] %vm796, %v1079
        %1103 = vst.msk [vmem:[%s1101] ss:$8 sm:$0x0] %vm796, %v1079
        %s1104 = scalar_lea.vmem [#allocation2], 130
        %1105 = vst.msk [vmem:[%s1104] ss:$8 sm:$0x3] %vm796, %v1080
        %1106 = vst.msk [vmem:[%s1104] ss:$8 sm:$0x0] %vm796, %v1080
        %s1107 = scalar_lea.vmem [#allocation2], 162
        %1108 = vst.msk [vmem:[%s1107] ss:$8 sm:$0x3] %vm796, %v1081
        %1109 = vst.msk [vmem:[%s1107] ss:$8 sm:$0x0] %vm796, %v1081
        %s1110 = scalar_lea.vmem [#allocation2], 194
        %1111 = vst.msk [vmem:[%s1110] ss:$8 sm:$0x3] %vm796, %v1082
        %1112 = vst.msk [vmem:[%s1110] ss:$8 sm:$0x0] %vm796, %v1082
        %s1113 = scalar_lea.vmem [#allocation2], 226
        %1114 = vst.msk [vmem:[%s1113] ss:$8 sm:$0x3] %vm796, %v1083
        %1115 = vst.msk [vmem:[%s1113] ss:$8 sm:$0x0] %vm796, %v1083
        %v1116 = vcombine.high %v892, %v893
        %v1118 = vunpack.c.l.s4 1966171168
        %v1119 = vunpack.c.0.s8 %v1118
        %v1120 = vlaneseq
        %v1121 = vshrl.u32 %v1120, 7
        %v1122 = vsub.s32 %v1119, %v1121
        %v1123 = vrot.slane %v1116, %v1122
        %v1125 = vunpack.c.l.s4 1966171168
        %v1126 = vunpack.c.0.s8 %v1125
        %v1127 = vlaneseq
        %v1128 = vshrl.u32 %v1127, 7
        %v1129 = vsub.s32 %v1126, %v1128
        %v1130 = vrot.slane %v1123, %v1129
        %v1131 = vcombine.high %v894, %v895
        %v1133 = vunpack.c.l.s4 1966171168
        %v1134 = vunpack.c.0.s8 %v1133
        %v1135 = vlaneseq
        %v1136 = vshrl.u32 %v1135, 7
        %v1137 = vsub.s32 %v1134, %v1136
        %v1138 = vrot.slane %v1131, %v1137
        %v1140 = vunpack.c.l.s4 1966171168
        %v1141 = vunpack.c.0.s8 %v1140
        %v1142 = vlaneseq
        %v1143 = vshrl.u32 %v1142, 7
        %v1144 = vsub.s32 %v1141, %v1143
        %v1145 = vrot.slane %v1138, %v1144
        %v1146 = vcombine.high %v896, %v897
        %v1148 = vunpack.c.l.s4 1966171168
        %v1149 = vunpack.c.0.s8 %v1148
        %v1150 = vlaneseq
        %v1151 = vshrl.u32 %v1150, 7
        %v1152 = vsub.s32 %v1149, %v1151
        %v1153 = vrot.slane %v1146, %v1152
        %v1155 = vunpack.c.l.s4 1966171168
        %v1156 = vunpack.c.0.s8 %v1155
        %v1157 = vlaneseq
        %v1158 = vshrl.u32 %v1157, 7
        %v1159 = vsub.s32 %v1156, %v1158
        %v1160 = vrot.slane %v1153, %v1159
        %v1161 = vcombine.high %v898, %v899
        %v1163 = vunpack.c.l.s4 1966171168
        %v1164 = vunpack.c.0.s8 %v1163
        %v1165 = vlaneseq
        %v1166 = vshrl.u32 %v1165, 7
        %v1167 = vsub.s32 %v1164, %v1166
        %v1168 = vrot.slane %v1161, %v1167
        %v1170 = vunpack.c.l.s4 1966171168
        %v1171 = vunpack.c.0.s8 %v1170
        %v1172 = vlaneseq
        %v1173 = vshrl.u32 %v1172, 7
        %v1174 = vsub.s32 %v1171, %v1173
        %v1175 = vrot.slane %v1168, %v1174
        %v1176 = vcombine.high %v900, %v901
        %v1178 = vunpack.c.l.s4 1966171168
        %v1179 = vunpack.c.0.s8 %v1178
        %v1180 = vlaneseq
        %v1181 = vshrl.u32 %v1180, 7
        %v1182 = vsub.s32 %v1179, %v1181
        %v1183 = vrot.slane %v1176, %v1182
        %v1185 = vunpack.c.l.s4 1966171168
        %v1186 = vunpack.c.0.s8 %v1185
        %v1187 = vlaneseq
        %v1188 = vshrl.u32 %v1187, 7
        %v1189 = vsub.s32 %v1186, %v1188
        %v1190 = vrot.slane %v1183, %v1189
        %v1191 = vcombine.high %v902, %v903
        %v1193 = vunpack.c.l.s4 1966171168
        %v1194 = vunpack.c.0.s8 %v1193
        %v1195 = vlaneseq
        %v1196 = vshrl.u32 %v1195, 7
        %v1197 = vsub.s32 %v1194, %v1196
        %v1198 = vrot.slane %v1191, %v1197
        %v1200 = vunpack.c.l.s4 1966171168
        %v1201 = vunpack.c.0.s8 %v1200
        %v1202 = vlaneseq
        %v1203 = vshrl.u32 %v1202, 7
        %v1204 = vsub.s32 %v1201, %v1203
        %v1205 = vrot.slane %v1198, %v1204
        %v1206 = vcombine.high %v904, %v905
        %v1208 = vunpack.c.l.s4 1966171168
        %v1209 = vunpack.c.0.s8 %v1208
        %v1210 = vlaneseq
        %v1211 = vshrl.u32 %v1210, 7
        %v1212 = vsub.s32 %v1209, %v1211
        %v1213 = vrot.slane %v1206, %v1212
        %v1215 = vunpack.c.l.s4 1966171168
        %v1216 = vunpack.c.0.s8 %v1215
        %v1217 = vlaneseq
        %v1218 = vshrl.u32 %v1217, 7
        %v1219 = vsub.s32 %v1216, %v1218
        %v1220 = vrot.slane %v1213, %v1219
        %v1221 = vcombine.high %v906, %v907
        %v1223 = vunpack.c.l.s4 1966171168
        %v1224 = vunpack.c.0.s8 %v1223
        %v1225 = vlaneseq
        %v1226 = vshrl.u32 %v1225, 7
        %v1227 = vsub.s32 %v1224, %v1226
        %v1228 = vrot.slane %v1221, %v1227
        %v1230 = vunpack.c.l.s4 1966171168
        %v1231 = vunpack.c.0.s8 %v1230
        %v1232 = vlaneseq
        %v1233 = vshrl.u32 %v1232, 7
        %v1234 = vsub.s32 %v1231, %v1233
        %v1235 = vrot.slane %v1228, %v1234
        %s1244 = scalar_lea.vmem [#allocation2], 3
        %1245 = vst.msk [vmem:[%s1244] ss:$8 sm:$0x3] %vm796, %v1130
        %1246 = vst.msk [vmem:[%s1244] ss:$8 sm:$0x0] %vm796, %v1130
        %s1247 = scalar_lea.vmem [#allocation2], 35
        %1248 = vst.msk [vmem:[%s1247] ss:$8 sm:$0x3] %vm796, %v1145
        %1249 = vst.msk [vmem:[%s1247] ss:$8 sm:$0x0] %vm796, %v1145
        %s1250 = scalar_lea.vmem [#allocation2], 67
        %1251 = vst.msk [vmem:[%s1250] ss:$8 sm:$0x3] %vm796, %v1160
        %1252 = vst.msk [vmem:[%s1250] ss:$8 sm:$0x0] %vm796, %v1160
        %s1253 = scalar_lea.vmem [#allocation2], 99
        %1254 = vst.msk [vmem:[%s1253] ss:$8 sm:$0x3] %vm796, %v1175
        %1255 = vst.msk [vmem:[%s1253] ss:$8 sm:$0x0] %vm796, %v1175
        %s1256 = scalar_lea.vmem [#allocation2], 131
        %1257 = vst.msk [vmem:[%s1256] ss:$8 sm:$0x3] %vm796, %v1190
        %1258 = vst.msk [vmem:[%s1256] ss:$8 sm:$0x0] %vm796, %v1190
        %s1259 = scalar_lea.vmem [#allocation2], 163
        %1260 = vst.msk [vmem:[%s1259] ss:$8 sm:$0x3] %vm796, %v1205
        %1261 = vst.msk [vmem:[%s1259] ss:$8 sm:$0x0] %vm796, %v1205
        %s1262 = scalar_lea.vmem [#allocation2], 195
        %1263 = vst.msk [vmem:[%s1262] ss:$8 sm:$0x3] %vm796, %v1220
        %1264 = vst.msk [vmem:[%s1262] ss:$8 sm:$0x0] %vm796, %v1220
        %s1265 = scalar_lea.vmem [#allocation2], 227
        %1266 = vst.msk [vmem:[%s1265] ss:$8 sm:$0x3] %vm796, %v1235
        %1267 = vst.msk [vmem:[%s1265] ss:$8 sm:$0x0] %vm796, %v1235
        %v1268 = vcombine.high %v1130, %v1130
        %v1269 = vcombine.high %v1145, %v1145
        %v1270 = vcombine.high %v1160, %v1160
        %v1271 = vcombine.high %v1175, %v1175
        %v1272 = vcombine.high %v1190, %v1190
        %v1273 = vcombine.high %v1205, %v1205
        %v1274 = vcombine.high %v1220, %v1220
        %v1275 = vcombine.high %v1235, %v1235
        %s1284 = scalar_lea.vmem [#allocation2], 4
        %1285 = vst.msk [vmem:[%s1284] ss:$8 sm:$0x3] %vm796, %v1268
        %1286 = vst.msk [vmem:[%s1284] ss:$8 sm:$0x0] %vm796, %v1268
        %s1287 = scalar_lea.vmem [#allocation2], 36
        %1288 = vst.msk [vmem:[%s1287] ss:$8 sm:$0x3] %vm796, %v1269
        %1289 = vst.msk [vmem:[%s1287] ss:$8 sm:$0x0] %vm796, %v1269
        %s1290 = scalar_lea.vmem [#allocation2], 68
        %1291 = vst.msk [vmem:[%s1290] ss:$8 sm:$0x3] %vm796, %v1270
        %1292 = vst.msk [vmem:[%s1290] ss:$8 sm:$0x0] %vm796, %v1270
        %s1293 = scalar_lea.vmem [#allocation2], 100
        %1294 = vst.msk [vmem:[%s1293] ss:$8 sm:$0x3] %vm796, %v1271
        %1295 = vst.msk [vmem:[%s1293] ss:$8 sm:$0x0] %vm796, %v1271
        %s1296 = scalar_lea.vmem [#allocation2], 132
        %1297 = vst.msk [vmem:[%s1296] ss:$8 sm:$0x3] %vm796, %v1272
        %1298 = vst.msk [vmem:[%s1296] ss:$8 sm:$0x0] %vm796, %v1272
        %s1299 = scalar_lea.vmem [#allocation2], 164
        %1300 = vst.msk [vmem:[%s1299] ss:$8 sm:$0x3] %vm796, %v1273
        %1301 = vst.msk [vmem:[%s1299] ss:$8 sm:$0x0] %vm796, %v1273
        %s1302 = scalar_lea.vmem [#allocation2], 196
        %1303 = vst.msk [vmem:[%s1302] ss:$8 sm:$0x3] %vm796, %v1274
        %1304 = vst.msk [vmem:[%s1302] ss:$8 sm:$0x0] %vm796, %v1274
        %s1305 = scalar_lea.vmem [#allocation2], 228
        %1306 = vst.msk [vmem:[%s1305] ss:$8 sm:$0x3] %vm796, %v1275
        %1307 = vst.msk [vmem:[%s1305] ss:$8 sm:$0x0] %vm796, %v1275
        %v1324 = vrot.slane %v763, 1
        %v1325 = vrot.slane %v764, 1
        %v1326 = vrot.slane %v767, 1
        %v1327 = vrot.slane %v768, 1
        %v1328 = vrot.slane %v771, 1
        %v1329 = vrot.slane %v772, 1
        %v1330 = vrot.slane %v775, 1
        %v1331 = vrot.slane %v776, 1
        %v1332 = vrot.slane %v779, 1
        %v1333 = vrot.slane %v780, 1
        %v1334 = vrot.slane %v783, 1
        %v1335 = vrot.slane %v784, 1
        %v1336 = vrot.slane %v787, 1
        %v1337 = vrot.slane %v788, 1
        %v1338 = vrot.slane %v791, 1
        %v1339 = vrot.slane %v792, 1
        %v1356 = vmax.f32 %v763, %v1324
        %v1357 = vmax.f32 %v764, %v1325
        %v1358 = vmax.f32 %v767, %v1326
        %v1359 = vmax.f32 %v768, %v1327
        %v1360 = vmax.f32 %v771, %v1328
        %v1361 = vmax.f32 %v772, %v1329
        %v1362 = vmax.f32 %v775, %v1330
        %v1363 = vmax.f32 %v776, %v1331
        %v1364 = vmax.f32 %v779, %v1332
        %v1365 = vmax.f32 %v780, %v1333
        %v1366 = vmax.f32 %v783, %v1334
        %v1367 = vmax.f32 %v784, %v1335
        %v1368 = vmax.f32 %v787, %v1336
        %v1369 = vmax.f32 %v788, %v1337
        %v1370 = vmax.f32 %v791, %v1338
        %v1371 = vmax.f32 %v792, %v1339
        %v1388 = vcombine.low %v1356, %v1357
        %v1390 = vunpack.c.l.s4 1966171168
        %v1391 = vunpack.c.0.s8 %v1390
        %v1392 = vlaneseq
        %v1393 = vshrl.u32 %v1392, 7
        %v1394 = vsub.s32 %v1391, %v1393
        %v1395 = vrot.slane %v1388, %v1394
        %v1397 = vunpack.c.l.s4 1966171168
        %v1398 = vunpack.c.0.s8 %v1397
        %v1399 = vlaneseq
        %v1400 = vshrl.u32 %v1399, 7
        %v1401 = vsub.s32 %v1398, %v1400
        %v1402 = vrot.slane %v1395, %v1401
        %v1403 = vcombine.low %v1358, %v1359
        %v1405 = vunpack.c.l.s4 1966171168
        %v1406 = vunpack.c.0.s8 %v1405
        %v1407 = vlaneseq
        %v1408 = vshrl.u32 %v1407, 7
        %v1409 = vsub.s32 %v1406, %v1408
        %v1410 = vrot.slane %v1403, %v1409
        %v1412 = vunpack.c.l.s4 1966171168
        %v1413 = vunpack.c.0.s8 %v1412
        %v1414 = vlaneseq
        %v1415 = vshrl.u32 %v1414, 7
        %v1416 = vsub.s32 %v1413, %v1415
        %v1417 = vrot.slane %v1410, %v1416
        %v1418 = vcombine.low %v1360, %v1361
        %v1420 = vunpack.c.l.s4 1966171168
        %v1421 = vunpack.c.0.s8 %v1420
        %v1422 = vlaneseq
        %v1423 = vshrl.u32 %v1422, 7
        %v1424 = vsub.s32 %v1421, %v1423
        %v1425 = vrot.slane %v1418, %v1424
        %v1427 = vunpack.c.l.s4 1966171168
        %v1428 = vunpack.c.0.s8 %v1427
        %v1429 = vlaneseq
        %v1430 = vshrl.u32 %v1429, 7
        %v1431 = vsub.s32 %v1428, %v1430
        %v1432 = vrot.slane %v1425, %v1431
        %v1433 = vcombine.low %v1362, %v1363
        %v1435 = vunpack.c.l.s4 1966171168
        %v1436 = vunpack.c.0.s8 %v1435
        %v1437 = vlaneseq
        %v1438 = vshrl.u32 %v1437, 7
        %v1439 = vsub.s32 %v1436, %v1438
        %v1440 = vrot.slane %v1433, %v1439
        %v1442 = vunpack.c.l.s4 1966171168
        %v1443 = vunpack.c.0.s8 %v1442
        %v1444 = vlaneseq
        %v1445 = vshrl.u32 %v1444, 7
        %v1446 = vsub.s32 %v1443, %v1445
        %v1447 = vrot.slane %v1440, %v1446
        %v1448 = vcombine.low %v1364, %v1365
        %v1450 = vunpack.c.l.s4 1966171168
        %v1451 = vunpack.c.0.s8 %v1450
        %v1452 = vlaneseq
        %v1453 = vshrl.u32 %v1452, 7
        %v1454 = vsub.s32 %v1451, %v1453
        %v1455 = vrot.slane %v1448, %v1454
        %v1457 = vunpack.c.l.s4 1966171168
        %v1458 = vunpack.c.0.s8 %v1457
        %v1459 = vlaneseq
        %v1460 = vshrl.u32 %v1459, 7
        %v1461 = vsub.s32 %v1458, %v1460
        %v1462 = vrot.slane %v1455, %v1461
        %v1463 = vcombine.low %v1366, %v1367
        %v1465 = vunpack.c.l.s4 1966171168
        %v1466 = vunpack.c.0.s8 %v1465
        %v1467 = vlaneseq
        %v1468 = vshrl.u32 %v1467, 7
        %v1469 = vsub.s32 %v1466, %v1468
        %v1470 = vrot.slane %v1463, %v1469
        %v1472 = vunpack.c.l.s4 1966171168
        %v1473 = vunpack.c.0.s8 %v1472
        %v1474 = vlaneseq
        %v1475 = vshrl.u32 %v1474, 7
        %v1476 = vsub.s32 %v1473, %v1475
        %v1477 = vrot.slane %v1470, %v1476
        %v1478 = vcombine.low %v1368, %v1369
        %v1480 = vunpack.c.l.s4 1966171168
        %v1481 = vunpack.c.0.s8 %v1480
        %v1482 = vlaneseq
        %v1483 = vshrl.u32 %v1482, 7
        %v1484 = vsub.s32 %v1481, %v1483
        %v1485 = vrot.slane %v1478, %v1484
        %v1487 = vunpack.c.l.s4 1966171168
        %v1488 = vunpack.c.0.s8 %v1487
        %v1489 = vlaneseq
        %v1490 = vshrl.u32 %v1489, 7
        %v1491 = vsub.s32 %v1488, %v1490
        %v1492 = vrot.slane %v1485, %v1491
        %v1493 = vcombine.low %v1370, %v1371
        %v1495 = vunpack.c.l.s4 1966171168
        %v1496 = vunpack.c.0.s8 %v1495
        %v1497 = vlaneseq
        %v1498 = vshrl.u32 %v1497, 7
        %v1499 = vsub.s32 %v1496, %v1498
        %v1500 = vrot.slane %v1493, %v1499
        %v1502 = vunpack.c.l.s4 1966171168
        %v1503 = vunpack.c.0.s8 %v1502
        %v1504 = vlaneseq
        %v1505 = vshrl.u32 %v1504, 7
        %v1506 = vsub.s32 %v1503, %v1505
        %v1507 = vrot.slane %v1500, %v1506
        %s1516 = scalar_lea.vmem [#allocation2], 5
        %1517 = vst.msk [vmem:[%s1516] ss:$8 sm:$0x3] %vm796, %v1402
        %1518 = vst.msk [vmem:[%s1516] ss:$8 sm:$0x0] %vm796, %v1402
        %s1519 = scalar_lea.vmem [#allocation2], 37
        %1520 = vst.msk [vmem:[%s1519] ss:$8 sm:$0x3] %vm796, %v1417
        %1521 = vst.msk [vmem:[%s1519] ss:$8 sm:$0x0] %vm796, %v1417
        %s1522 = scalar_lea.vmem [#allocation2], 69
        %1523 = vst.msk [vmem:[%s1522] ss:$8 sm:$0x3] %vm796, %v1432
        %1524 = vst.msk [vmem:[%s1522] ss:$8 sm:$0x0] %vm796, %v1432
        %s1525 = scalar_lea.vmem [#allocation2], 101
        %1526 = vst.msk [vmem:[%s1525] ss:$8 sm:$0x3] %vm796, %v1447
        %1527 = vst.msk [vmem:[%s1525] ss:$8 sm:$0x0] %vm796, %v1447
        %s1528 = scalar_lea.vmem [#allocation2], 133
        %1529 = vst.msk [vmem:[%s1528] ss:$8 sm:$0x3] %vm796, %v1462
        %1530 = vst.msk [vmem:[%s1528] ss:$8 sm:$0x0] %vm796, %v1462
        %s1531 = scalar_lea.vmem [#allocation2], 165
        %1532 = vst.msk [vmem:[%s1531] ss:$8 sm:$0x3] %vm796, %v1477
        %1533 = vst.msk [vmem:[%s1531] ss:$8 sm:$0x0] %vm796, %v1477
        %s1534 = scalar_lea.vmem [#allocation2], 197
        %1535 = vst.msk [vmem:[%s1534] ss:$8 sm:$0x3] %vm796, %v1492
        %1536 = vst.msk [vmem:[%s1534] ss:$8 sm:$0x0] %vm796, %v1492
        %s1537 = scalar_lea.vmem [#allocation2], 229
        %1538 = vst.msk [vmem:[%s1537] ss:$8 sm:$0x3] %vm796, %v1507
        %1539 = vst.msk [vmem:[%s1537] ss:$8 sm:$0x0] %vm796, %v1507
        %v1540 = vcombine.high %v1402, %v1402
        %v1541 = vcombine.high %v1417, %v1417
        %v1542 = vcombine.high %v1432, %v1432
        %v1543 = vcombine.high %v1447, %v1447
        %v1544 = vcombine.high %v1462, %v1462
        %v1545 = vcombine.high %v1477, %v1477
        %v1546 = vcombine.high %v1492, %v1492
        %v1547 = vcombine.high %v1507, %v1507
        %s1556 = scalar_lea.vmem [#allocation2], 6
        %1557 = vst.msk [vmem:[%s1556] ss:$8 sm:$0x3] %vm796, %v1540
        %1558 = vst.msk [vmem:[%s1556] ss:$8 sm:$0x0] %vm796, %v1540
        %s1559 = scalar_lea.vmem [#allocation2], 38
        %1560 = vst.msk [vmem:[%s1559] ss:$8 sm:$0x3] %vm796, %v1541
        %1561 = vst.msk [vmem:[%s1559] ss:$8 sm:$0x0] %vm796, %v1541
        %s1562 = scalar_lea.vmem [#allocation2], 70
        %1563 = vst.msk [vmem:[%s1562] ss:$8 sm:$0x3] %vm796, %v1542
        %1564 = vst.msk [vmem:[%s1562] ss:$8 sm:$0x0] %vm796, %v1542
        %s1565 = scalar_lea.vmem [#allocation2], 102
        %1566 = vst.msk [vmem:[%s1565] ss:$8 sm:$0x3] %vm796, %v1543
        %1567 = vst.msk [vmem:[%s1565] ss:$8 sm:$0x0] %vm796, %v1543
        %s1568 = scalar_lea.vmem [#allocation2], 134
        %1569 = vst.msk [vmem:[%s1568] ss:$8 sm:$0x3] %vm796, %v1544
        %1570 = vst.msk [vmem:[%s1568] ss:$8 sm:$0x0] %vm796, %v1544
        %s1571 = scalar_lea.vmem [#allocation2], 166
        %1572 = vst.msk [vmem:[%s1571] ss:$8 sm:$0x3] %vm796, %v1545
        %1573 = vst.msk [vmem:[%s1571] ss:$8 sm:$0x0] %vm796, %v1545
        %s1574 = scalar_lea.vmem [#allocation2], 198
        %1575 = vst.msk [vmem:[%s1574] ss:$8 sm:$0x3] %vm796, %v1546
        %1576 = vst.msk [vmem:[%s1574] ss:$8 sm:$0x0] %vm796, %v1546
        %s1577 = scalar_lea.vmem [#allocation2], 230
        %1578 = vst.msk [vmem:[%s1577] ss:$8 sm:$0x3] %vm796, %v1547
        %1579 = vst.msk [vmem:[%s1577] ss:$8 sm:$0x0] %vm796, %v1547
        %v1580 = vcombine.high %v1356, %v1357
        %v1582 = vunpack.c.l.s4 1966171168
        %v1583 = vunpack.c.0.s8 %v1582
        %v1584 = vlaneseq
        %v1585 = vshrl.u32 %v1584, 7
        %v1586 = vsub.s32 %v1583, %v1585
        %v1587 = vrot.slane %v1580, %v1586
        %v1589 = vunpack.c.l.s4 1966171168
        %v1590 = vunpack.c.0.s8 %v1589
        %v1591 = vlaneseq
        %v1592 = vshrl.u32 %v1591, 7
        %v1593 = vsub.s32 %v1590, %v1592
        %v1594 = vrot.slane %v1587, %v1593
        %v1595 = vcombine.high %v1358, %v1359
        %v1597 = vunpack.c.l.s4 1966171168
        %v1598 = vunpack.c.0.s8 %v1597
        %v1599 = vlaneseq
        %v1600 = vshrl.u32 %v1599, 7
        %v1601 = vsub.s32 %v1598, %v1600
        %v1602 = vrot.slane %v1595, %v1601
        %v1604 = vunpack.c.l.s4 1966171168
        %v1605 = vunpack.c.0.s8 %v1604
        %v1606 = vlaneseq
        %v1607 = vshrl.u32 %v1606, 7
        %v1608 = vsub.s32 %v1605, %v1607
        %v1609 = vrot.slane %v1602, %v1608
        %v1610 = vcombine.high %v1360, %v1361
        %v1612 = vunpack.c.l.s4 1966171168
        %v1613 = vunpack.c.0.s8 %v1612
        %v1614 = vlaneseq
        %v1615 = vshrl.u32 %v1614, 7
        %v1616 = vsub.s32 %v1613, %v1615
        %v1617 = vrot.slane %v1610, %v1616
        %v1619 = vunpack.c.l.s4 1966171168
        %v1620 = vunpack.c.0.s8 %v1619
        %v1621 = vlaneseq
        %v1622 = vshrl.u32 %v1621, 7
        %v1623 = vsub.s32 %v1620, %v1622
        %v1624 = vrot.slane %v1617, %v1623
        %v1625 = vcombine.high %v1362, %v1363
        %v1627 = vunpack.c.l.s4 1966171168
        %v1628 = vunpack.c.0.s8 %v1627
        %v1629 = vlaneseq
        %v1630 = vshrl.u32 %v1629, 7
        %v1631 = vsub.s32 %v1628, %v1630
        %v1632 = vrot.slane %v1625, %v1631
        %v1634 = vunpack.c.l.s4 1966171168
        %v1635 = vunpack.c.0.s8 %v1634
        %v1636 = vlaneseq
        %v1637 = vshrl.u32 %v1636, 7
        %v1638 = vsub.s32 %v1635, %v1637
        %v1639 = vrot.slane %v1632, %v1638
        %v1640 = vcombine.high %v1364, %v1365
        %v1642 = vunpack.c.l.s4 1966171168
        %v1643 = vunpack.c.0.s8 %v1642
        %v1644 = vlaneseq
        %v1645 = vshrl.u32 %v1644, 7
        %v1646 = vsub.s32 %v1643, %v1645
        %v1647 = vrot.slane %v1640, %v1646
        %v1649 = vunpack.c.l.s4 1966171168
        %v1650 = vunpack.c.0.s8 %v1649
        %v1651 = vlaneseq
        %v1652 = vshrl.u32 %v1651, 7
        %v1653 = vsub.s32 %v1650, %v1652
        %v1654 = vrot.slane %v1647, %v1653
        %v1655 = vcombine.high %v1366, %v1367
        %v1657 = vunpack.c.l.s4 1966171168
        %v1658 = vunpack.c.0.s8 %v1657
        %v1659 = vlaneseq
        %v1660 = vshrl.u32 %v1659, 7
        %v1661 = vsub.s32 %v1658, %v1660
        %v1662 = vrot.slane %v1655, %v1661
        %v1664 = vunpack.c.l.s4 1966171168
        %v1665 = vunpack.c.0.s8 %v1664
        %v1666 = vlaneseq
        %v1667 = vshrl.u32 %v1666, 7
        %v1668 = vsub.s32 %v1665, %v1667
        %v1669 = vrot.slane %v1662, %v1668
        %v1670 = vcombine.high %v1368, %v1369
        %v1672 = vunpack.c.l.s4 1966171168
        %v1673 = vunpack.c.0.s8 %v1672
        %v1674 = vlaneseq
        %v1675 = vshrl.u32 %v1674, 7
        %v1676 = vsub.s32 %v1673, %v1675
        %v1677 = vrot.slane %v1670, %v1676
        %v1679 = vunpack.c.l.s4 1966171168
        %v1680 = vunpack.c.0.s8 %v1679
        %v1681 = vlaneseq
        %v1682 = vshrl.u32 %v1681, 7
        %v1683 = vsub.s32 %v1680, %v1682
        %v1684 = vrot.slane %v1677, %v1683
        %v1685 = vcombine.high %v1370, %v1371
        %v1687 = vunpack.c.l.s4 1966171168
        %v1688 = vunpack.c.0.s8 %v1687
        %v1689 = vlaneseq
        %v1690 = vshrl.u32 %v1689, 7
        %v1691 = vsub.s32 %v1688, %v1690
        %v1692 = vrot.slane %v1685, %v1691
        %v1694 = vunpack.c.l.s4 1966171168
        %v1695 = vunpack.c.0.s8 %v1694
        %v1696 = vlaneseq
        %v1697 = vshrl.u32 %v1696, 7
        %v1698 = vsub.s32 %v1695, %v1697
        %v1699 = vrot.slane %v1692, %v1698
        %s1708 = scalar_lea.vmem [#allocation2], 7
        %1709 = vst.msk [vmem:[%s1708] ss:$8 sm:$0x3] %vm796, %v1594
        %1710 = vst.msk [vmem:[%s1708] ss:$8 sm:$0x0] %vm796, %v1594
        %s1711 = scalar_lea.vmem [#allocation2], 39
        %1712 = vst.msk [vmem:[%s1711] ss:$8 sm:$0x3] %vm796, %v1609
        %1713 = vst.msk [vmem:[%s1711] ss:$8 sm:$0x0] %vm796, %v1609
        %s1714 = scalar_lea.vmem [#allocation2], 71
        %1715 = vst.msk [vmem:[%s1714] ss:$8 sm:$0x3] %vm796, %v1624
        %1716 = vst.msk [vmem:[%s1714] ss:$8 sm:$0x0] %vm796, %v1624
        %s1717 = scalar_lea.vmem [#allocation2], 103
        %1718 = vst.msk [vmem:[%s1717] ss:$8 sm:$0x3] %vm796, %v1639
        %1719 = vst.msk [vmem:[%s1717] ss:$8 sm:$0x0] %vm796, %v1639
        %s1720 = scalar_lea.vmem [#allocation2], 135
        %1721 = vst.msk [vmem:[%s1720] ss:$8 sm:$0x3] %vm796, %v1654
        %1722 = vst.msk [vmem:[%s1720] ss:$8 sm:$0x0] %vm796, %v1654
        %s1723 = scalar_lea.vmem [#allocation2], 167
        %1724 = vst.msk [vmem:[%s1723] ss:$8 sm:$0x3] %vm796, %v1669
        %1725 = vst.msk [vmem:[%s1723] ss:$8 sm:$0x0] %vm796, %v1669
        %s1726 = scalar_lea.vmem [#allocation2], 199
        %1727 = vst.msk [vmem:[%s1726] ss:$8 sm:$0x3] %vm796, %v1684
        %1728 = vst.msk [vmem:[%s1726] ss:$8 sm:$0x0] %vm796, %v1684
        %s1729 = scalar_lea.vmem [#allocation2], 231
        %1730 = vst.msk [vmem:[%s1729] ss:$8 sm:$0x3] %vm796, %v1699
        %1731 = vst.msk [vmem:[%s1729] ss:$8 sm:$0x0] %vm796, %v1699
        %v1732 = vcombine.high %v1594, %v1594
        %v1733 = vcombine.high %v1609, %v1609
        %v1734 = vcombine.high %v1624, %v1624
        %v1735 = vcombine.high %v1639, %v1639
        %v1736 = vcombine.high %v1654, %v1654
        %v1737 = vcombine.high %v1669, %v1669
        %v1738 = vcombine.high %v1684, %v1684
        %v1739 = vcombine.high %v1699, %v1699
        %s1748 = scalar_lea.vmem [#allocation2], 16
        %1749 = vst.msk [vmem:[%s1748] ss:$8 sm:$0x3] %vm796, %v1732
        %1750 = vst.msk [vmem:[%s1748] ss:$8 sm:$0x0] %vm796, %v1732
        %s1751 = scalar_lea.vmem [#allocation2], 48
        %1752 = vst.msk [vmem:[%s1751] ss:$8 sm:$0x3] %vm796, %v1733
        %1753 = vst.msk [vmem:[%s1751] ss:$8 sm:$0x0] %vm796, %v1733
        %s1754 = scalar_lea.vmem [#allocation2], 80
        %1755 = vst.msk [vmem:[%s1754] ss:$8 sm:$0x3] %vm796, %v1734
        %1756 = vst.msk [vmem:[%s1754] ss:$8 sm:$0x0] %vm796, %v1734
        %s1757 = scalar_lea.vmem [#allocation2], 112
        %1758 = vst.msk [vmem:[%s1757] ss:$8 sm:$0x3] %vm796, %v1735
        %1759 = vst.msk [vmem:[%s1757] ss:$8 sm:$0x0] %vm796, %v1735
        %s1760 = scalar_lea.vmem [#allocation2], 144
        %1761 = vst.msk [vmem:[%s1760] ss:$8 sm:$0x3] %vm796, %v1736
        %1762 = vst.msk [vmem:[%s1760] ss:$8 sm:$0x0] %vm796, %v1736
        %s1763 = scalar_lea.vmem [#allocation2], 176
        %1764 = vst.msk [vmem:[%s1763] ss:$8 sm:$0x3] %vm796, %v1737
        %1765 = vst.msk [vmem:[%s1763] ss:$8 sm:$0x0] %vm796, %v1737
        %s1766 = scalar_lea.vmem [#allocation2], 208
        %1767 = vst.msk [vmem:[%s1766] ss:$8 sm:$0x3] %vm796, %v1738
        %1768 = vst.msk [vmem:[%s1766] ss:$8 sm:$0x0] %vm796, %v1738
        %s1769 = scalar_lea.vmem [#allocation2], 240
        %1770 = vst.msk [vmem:[%s1769] ss:$8 sm:$0x3] %vm796, %v1739
        %1771 = vst.msk [vmem:[%s1769] ss:$8 sm:$0x0] %vm796, %v1739
        %v1772 = vld [vmem:[#allocation2] sm:$0xff]
        %v1773 = vld [vmem:[#allocation2 + $0x8] sm:$0xff]
        %v1774 = vld [vmem:[#allocation2 + $0x20] sm:$0xff]
        %v1775 = vld [vmem:[#allocation2 + $0x28] sm:$0xff]
        %v1776 = vld [vmem:[#allocation2 + $0x40] sm:$0xff]
        %v1777 = vld [vmem:[#allocation2 + $0x48] sm:$0xff]
        %v1778 = vld [vmem:[#allocation2 + $0x60] sm:$0xff]
        %v1779 = vld [vmem:[#allocation2 + $0x68] sm:$0xff]
        %v1780 = vld [vmem:[#allocation2 + $0x80] sm:$0xff]
        %v1781 = vld [vmem:[#allocation2 + $0x88] sm:$0xff]
        %v1782 = vld [vmem:[#allocation2 + $0xa0] sm:$0xff]
        %v1783 = vld [vmem:[#allocation2 + $0xa8] sm:$0xff]
        %v1784 = vld [vmem:[#allocation2 + $0xc0] sm:$0xff]
        %v1785 = vld [vmem:[#allocation2 + $0xc8] sm:$0xff]
        %v1786 = vld [vmem:[#allocation2 + $0xe0] sm:$0xff]
        %v1787 = vld [vmem:[#allocation2 + $0xe8] sm:$0xff]
        %v1788 = vpack.c.bf16 %v1774, %v1772
        %v1789 = vpack.c.bf16 %v1775, %v1773
        %v1790 = vpack.c.bf16 %v1778, %v1776
        %v1791 = vpack.c.bf16 %v1779, %v1777
        %v1792 = vpack.c.bf16 %v1782, %v1780
        %v1793 = vpack.c.bf16 %v1783, %v1781
        %v1794 = vpack.c.bf16 %v1786, %v1784
        %v1795 = vpack.c.bf16 %v1787, %v1785
        %v1796 = vld [vmem:[%s3] sm:$0xff]
        %v1797 = vld [vmem:[%s3 + $0x8] sm:$0xff]
        %v1798 = vld [vmem:[%s3 + $0x10] sm:$0xff]
        %v1799 = vld [vmem:[%s3 + $0x18] sm:$0xff]
        %v1800 = vld [vmem:[%s3 + $0x20] sm:$0xff]
        %v1801 = vld [vmem:[%s3 + $0x28] sm:$0xff]
        %v1802 = vld [vmem:[%s3 + $0x30] sm:$0xff]
        %v1803 = vld [vmem:[%s3 + $0x38] sm:$0xff]
        %v1804 = vld [vmem:[%s3 + $0x40] sm:$0xff]
        %v1805 = vld [vmem:[%s3 + $0x48] sm:$0xff]
        %v1806 = vld [vmem:[%s3 + $0x50] sm:$0xff]
        %v1807 = vld [vmem:[%s3 + $0x58] sm:$0xff]
        %v1808 = vld [vmem:[%s3 + $0x60] sm:$0xff]
        %v1809 = vld [vmem:[%s3 + $0x68] sm:$0xff]
        %v1810 = vld [vmem:[%s3 + $0x70] sm:$0xff]
        %v1811 = vld [vmem:[%s3 + $0x78] sm:$0xff]
        %v1812 = vld [vmem:[%s3 + $0x80] sm:$0xff]
        %v1813 = vld [vmem:[%s3 + $0x88] sm:$0xff]
        %v1814 = vld [vmem:[%s3 + $0x90] sm:$0xff]
        %v1815 = vld [vmem:[%s3 + $0x98] sm:$0xff]
        %v1816 = vld [vmem:[%s3 + $0xa0] sm:$0xff]
        %v1817 = vld [vmem:[%s3 + $0xa8] sm:$0xff]
        %v1818 = vld [vmem:[%s3 + $0xb0] sm:$0xff]
        %v1819 = vld [vmem:[%s3 + $0xb8] sm:$0xff]
        %v1820 = vld [vmem:[%s3 + $0xc0] sm:$0xff]
        %v1821 = vld [vmem:[%s3 + $0xc8] sm:$0xff]
        %v1822 = vld [vmem:[%s3 + $0xd0] sm:$0xff]
        %v1823 = vld [vmem:[%s3 + $0xd8] sm:$0xff]
        %v1824 = vld [vmem:[%s3 + $0xe0] sm:$0xff]
        %v1825 = vld [vmem:[%s3 + $0xe8] sm:$0xff]
        %v1826 = vld [vmem:[#allocation2] sm:$0xfe]
        %v1827 = vld [vmem:[#allocation2 + $0x8] sm:$0xfe]
        %v1828 = vld [vmem:[#allocation2 + $0x10] sm:$0x1]
        %v1829 = vld [vmem:[#allocation2 + $0x18] sm:$0x1]
        %v1830 = vld [vmem:[#allocation2 + $0x20] sm:$0xfe]
        %v1831 = vld [vmem:[#allocation2 + $0x28] sm:$0xfe]
        %v1832 = vld [vmem:[#allocation2 + $0x30] sm:$0x1]
        %v1833 = vld [vmem:[#allocation2 + $0x38] sm:$0x1]
        %v1834 = vld [vmem:[#allocation2 + $0x40] sm:$0xfe]
        %v1835 = vld [vmem:[#allocation2 + $0x48] sm:$0xfe]
        %v1836 = vld [vmem:[#allocation2 + $0x50] sm:$0x1]
        %v1837 = vld [vmem:[#allocation2 + $0x58] sm:$0x1]
        %v1838 = vld [vmem:[#allocation2 + $0x60] sm:$0xfe]
        %v1839 = vld [vmem:[#allocation2 + $0x68] sm:$0xfe]
        %v1840 = vld [vmem:[#allocation2 + $0x70] sm:$0x1]
        %v1841 = vld [vmem:[#allocation2 + $0x78] sm:$0x1]
        %v1842 = vld [vmem:[#allocation2 + $0x80] sm:$0xfe]
        %v1843 = vld [vmem:[#allocation2 + $0x88] sm:$0xfe]
        %v1844 = vld [vmem:[#allocation2 + $0x90] sm:$0x1]
        %v1845 = vld [vmem:[#allocation2 + $0x98] sm:$0x1]
        %v1846 = vld [vmem:[#allocation2 + $0xa0] sm:$0xfe]
        %v1847 = vld [vmem:[#allocation2 + $0xa8] sm:$0xfe]
        %v1848 = vld [vmem:[#allocation2 + $0xb0] sm:$0x1]
        %v1849 = vld [vmem:[#allocation2 + $0xb8] sm:$0x1]
        %v1850 = vld [vmem:[#allocation2 + $0xc0] sm:$0xfe]
        %v1851 = vld [vmem:[#allocation2 + $0xc8] sm:$0xfe]
        %v1852 = vld [vmem:[#allocation2 + $0xd0] sm:$0x1]
        %v1853 = vld [vmem:[#allocation2 + $0xd8] sm:$0x1]
        %v1854 = vld [vmem:[#allocation2 + $0xe0] sm:$0xfe]
        %v1855 = vld [vmem:[#allocation2 + $0xe8] sm:$0xfe]
        %v1856 = vld [vmem:[#allocation2 + $0xf0] sm:$0x1]
        %v1857 = vld [vmem:[#allocation2 + $0xf8] sm:$0x1]
        %vm1890 = vcmask 1046528
        %v1891 = vrot.slane %v1826, 1
        %v1892 = vrot.slane %v1828, 1
        %v1893 = vsel %vm1890, %v1891, %v1892
        %v1894 = vrot.slane %v1827, 1
        %v1895 = vrot.slane %v1829, 1
        %v1896 = vsel %vm1890, %v1894, %v1895
        %v1897 = vrot.slane %v1830, 1
        %v1898 = vrot.slane %v1832, 1
        %v1899 = vsel %vm1890, %v1897, %v1898
        %v1900 = vrot.slane %v1831, 1
        %v1901 = vrot.slane %v1833, 1
        %v1902 = vsel %vm1890, %v1900, %v1901
        %v1903 = vrot.slane %v1834, 1
        %v1904 = vrot.slane %v1836, 1
        %v1905 = vsel %vm1890, %v1903, %v1904
        %v1906 = vrot.slane %v1835, 1
        %v1907 = vrot.slane %v1837, 1
        %v1908 = vsel %vm1890, %v1906, %v1907
        %v1909 = vrot.slane %v1838, 1
        %v1910 = vrot.slane %v1840, 1
        %v1911 = vsel %vm1890, %v1909, %v1910
        %v1912 = vrot.slane %v1839, 1
        %v1913 = vrot.slane %v1841, 1
        %v1914 = vsel %vm1890, %v1912, %v1913
        %v1915 = vrot.slane %v1842, 1
        %v1916 = vrot.slane %v1844, 1
        %v1917 = vsel %vm1890, %v1915, %v1916
        %v1918 = vrot.slane %v1843, 1
        %v1919 = vrot.slane %v1845, 1
        %v1920 = vsel %vm1890, %v1918, %v1919
        %v1921 = vrot.slane %v1846, 1
        %v1922 = vrot.slane %v1848, 1
        %v1923 = vsel %vm1890, %v1921, %v1922
        %v1924 = vrot.slane %v1847, 1
        %v1925 = vrot.slane %v1849, 1
        %v1926 = vsel %vm1890, %v1924, %v1925
        %v1927 = vrot.slane %v1850, 1
        %v1928 = vrot.slane %v1852, 1
        %v1929 = vsel %vm1890, %v1927, %v1928
        %v1930 = vrot.slane %v1851, 1
        %v1931 = vrot.slane %v1853, 1
        %v1932 = vsel %vm1890, %v1930, %v1931
        %v1933 = vrot.slane %v1854, 1
        %v1934 = vrot.slane %v1856, 1
        %v1935 = vsel %vm1890, %v1933, %v1934
        %v1936 = vrot.slane %v1855, 1
        %v1937 = vrot.slane %v1857, 1
        %v1938 = vsel %vm1890, %v1936, %v1937
        %v1955 = vpack.c.bf16 %v1899, %v1893
        %v1956 = vpack.c.bf16 %v1902, %v1896
        %v1957 = vpack.c.bf16 %v1911, %v1905
        %v1958 = vpack.c.bf16 %v1914, %v1908
        %v1959 = vpack.c.bf16 %v1923, %v1917
        %v1960 = vpack.c.bf16 %v1926, %v1920
        %v1961 = vpack.c.bf16 %v1935, %v1929
        %v1962 = vpack.c.bf16 %v1938, %v1932
        %s1963 = scalar_lea.vmem %s3, 240
        %v1964 = vld [vmem:[%s1963] sm:$0xff]
        %v1965 = vld [vmem:[%s1963 + $0x8] sm:$0xff]
        %v1966 = vld [vmem:[%s1963 + $0x10] sm:$0xff]
        %v1967 = vld [vmem:[%s1963 + $0x18] sm:$0xff]
        %v1968 = vld [vmem:[%s1963 + $0x20] sm:$0xff]
        %v1969 = vld [vmem:[%s1963 + $0x28] sm:$0xff]
        %v1970 = vld [vmem:[%s1963 + $0x30] sm:$0xff]
        %v1971 = vld [vmem:[%s1963 + $0x38] sm:$0xff]
        %v1972 = vld [vmem:[%s1963 + $0x40] sm:$0xff]
        %v1973 = vld [vmem:[%s1963 + $0x48] sm:$0xff]
        %v1974 = vld [vmem:[%s1963 + $0x50] sm:$0xff]
        %v1975 = vld [vmem:[%s1963 + $0x58] sm:$0xff]
        %v1976 = vld [vmem:[%s1963 + $0x60] sm:$0xff]
        %v1977 = vld [vmem:[%s1963 + $0x68] sm:$0xff]
        %v1978 = vld [vmem:[%s1963 + $0x70] sm:$0xff]
        %v1979 = vld [vmem:[%s1963 + $0x78] sm:$0xff]
        %v1980 = vld [vmem:[%s1963 + $0x80] sm:$0xff]
        %v1981 = vld [vmem:[%s1963 + $0x88] sm:$0xff]
        %v1982 = vld [vmem:[%s1963 + $0x90] sm:$0xff]
        %v1983 = vld [vmem:[%s1963 + $0x98] sm:$0xff]
        %v1984 = vld [vmem:[%s1963 + $0xa0] sm:$0xff]
        %v1985 = vld [vmem:[%s1963 + $0xa8] sm:$0xff]
        %v1986 = vld [vmem:[%s1963 + $0xb0] sm:$0xff]
        %v1987 = vld [vmem:[%s1963 + $0xb8] sm:$0xff]
        %v1988 = vld [vmem:[%s1963 + $0xc0] sm:$0xff]
        %v1989 = vld [vmem:[%s1963 + $0xc8] sm:$0xff]
        %v1990 = vld [vmem:[%s1963 + $0xd0] sm:$0xff]
        %v1991 = vld [vmem:[%s1963 + $0xd8] sm:$0xff]
        %v1992 = vld [vmem:[%s1963 + $0xe0] sm:$0xff]
        %v1993 = vld [vmem:[%s1963 + $0xe8] sm:$0xff]
        %v2024 = vunpack.c.l.b16 %v1964
        %v2025 = vunpack.c.h.b16 %v1964
        %v2026 = vunpack.c.l.b16 %v1965
        %v2027 = vunpack.c.h.b16 %v1965
        %v2028 = vunpack.c.l.b16 %v1966
        %v2029 = vunpack.c.h.b16 %v1966
        %v2030 = vunpack.c.l.b16 %v1967
        %v2031 = vunpack.c.h.b16 %v1967
        %v2032 = vunpack.c.l.b16 %v1968
        %v2033 = vunpack.c.h.b16 %v1968
        %v2034 = vunpack.c.l.b16 %v1969
        %v2035 = vunpack.c.h.b16 %v1969
        %v2036 = vunpack.c.l.b16 %v1970
        %v2037 = vunpack.c.h.b16 %v1970
        %v2038 = vunpack.c.l.b16 %v1971
        %v2039 = vunpack.c.h.b16 %v1971
        %v2040 = vunpack.c.l.b16 %v1972
        %v2041 = vunpack.c.h.b16 %v1972
        %v2042 = vunpack.c.l.b16 %v1973
        %v2043 = vunpack.c.h.b16 %v1973
        %v2044 = vunpack.c.l.b16 %v1974
        %v2045 = vunpack.c.h.b16 %v1974
        %v2046 = vunpack.c.l.b16 %v1975
        %v2047 = vunpack.c.h.b16 %v1975
        %v2048 = vunpack.c.l.b16 %v1976
        %v2049 = vunpack.c.h.b16 %v1976
        %v2050 = vunpack.c.l.b16 %v1977
        %v2051 = vunpack.c.h.b16 %v1977
        %v2052 = vunpack.c.l.b16 %v1978
        %v2053 = vunpack.c.h.b16 %v1978
        %v2054 = vunpack.c.l.b16 %v1979
        %v2055 = vunpack.c.h.b16 %v1979
        %v2056 = vunpack.c.l.b16 %v1980
        %v2057 = vunpack.c.h.b16 %v1980
        %v2058 = vunpack.c.l.b16 %v1981
        %v2059 = vunpack.c.h.b16 %v1981
        %v2060 = vunpack.c.l.b16 %v1982
        %v2061 = vunpack.c.h.b16 %v1982
        %v2062 = vunpack.c.l.b16 %v1983
        %v2063 = vunpack.c.h.b16 %v1983
        %v2064 = vunpack.c.l.b16 %v1984
        %v2065 = vunpack.c.h.b16 %v1984
        %v2066 = vunpack.c.l.b16 %v1985
        %v2067 = vunpack.c.h.b16 %v1985
        %v2068 = vunpack.c.l.b16 %v1986
        %v2069 = vunpack.c.h.b16 %v1986
        %v2070 = vunpack.c.l.b16 %v1987
        %v2071 = vunpack.c.h.b16 %v1987
        %v2072 = vunpack.c.l.b16 %v1988
        %v2073 = vunpack.c.h.b16 %v1988
        %v2074 = vunpack.c.l.b16 %v1989
        %v2075 = vunpack.c.h.b16 %v1989
        %v2076 = vunpack.c.l.b16 %v1990
        %v2077 = vunpack.c.h.b16 %v1990
        %v2078 = vunpack.c.l.b16 %v1991
        %v2079 = vunpack.c.h.b16 %v1991
        %v2080 = vunpack.c.l.b16 %v1992
        %v2081 = vunpack.c.h.b16 %v1992
        %v2082 = vunpack.c.l.b16 %v1993
        %v2083 = vunpack.c.h.b16 %v1993
        %v2084 = vpack.c.b16 %v2026, %v2024
        %v2085 = vpack.c.b16 %v2027, %v2025
        %v2086 = vpack.c.b16 %v2030, %v2028
        %v2087 = vpack.c.b16 %v2031, %v2029
        %v2088 = vpack.c.b16 %v2034, %v2032
        %v2089 = vpack.c.b16 %v2035, %v2033
        %v2090 = vpack.c.b16 %v2038, %v2036
        %v2091 = vpack.c.b16 %v2039, %v2037
        %v2092 = vpack.c.b16 %v2042, %v2040
        %v2093 = vpack.c.b16 %v2043, %v2041
        %v2094 = vpack.c.b16 %v2046, %v2044
        %v2095 = vpack.c.b16 %v2047, %v2045
        %v2096 = vpack.c.b16 %v2050, %v2048
        %v2097 = vpack.c.b16 %v2051, %v2049
        %v2098 = vpack.c.b16 %v2054, %v2052
        %v2099 = vpack.c.b16 %v2055, %v2053
        %v2100 = vpack.c.b16 %v2058, %v2056
        %v2101 = vpack.c.b16 %v2059, %v2057
        %v2102 = vpack.c.b16 %v2062, %v2060
        %v2103 = vpack.c.b16 %v2063, %v2061
        %v2104 = vpack.c.b16 %v2066, %v2064
        %v2105 = vpack.c.b16 %v2067, %v2065
        %v2106 = vpack.c.b16 %v2070, %v2068
        %v2107 = vpack.c.b16 %v2071, %v2069
        %v2108 = vpack.c.b16 %v2074, %v2072
        %v2109 = vpack.c.b16 %v2075, %v2073
        %v2110 = vpack.c.b16 %v2078, %v2076
        %v2111 = vpack.c.b16 %v2079, %v2077
        %v2112 = vpack.c.b16 %v2082, %v2080
        %v2113 = vpack.c.b16 %v2083, %v2081
        %v2145 = vsel %vm712, %v1956, 0
        %v2148 = vsel %vm712, %v1958, 0
        %v2151 = vsel %vm712, %v1960, 0
        %v2154 = vsel %vm712, %v1962, 0
        %2156 = vmatprep.subr.bf16.mxu0 %v2099
        %2157 = vmatpush1.bf16.msra.mxu0 %v2098
        %2158 = vmatprep.subr.bf16.mxu0 %v2097
        %2159 = vmatpush1.bf16.msra.mxu0 %v2096
        %2160 = vmatprep.subr.bf16.mxu0 %v2095
        %2161 = vmatpush1.bf16.msra.mxu0 %v2094
        %2162 = vmatprep.subr.bf16.mxu0 %v2093
        %2163 = vmatpush1.bf16.msra.mxu0 %v2092
        %2164 = vmatprep.subr.bf16.mxu0 %v2091
        %2165 = vmatpush1.bf16.msra.mxu0 %v2090
        %2166 = vmatprep.subr.bf16.mxu0 %v2089
        %2167 = vmatpush1.bf16.msra.mxu0 %v2088
        %2168 = vmatprep.subr.bf16.mxu0 %v2087
        %2169 = vmatpush1.bf16.msra.mxu0 %v2086
        %2170 = vmatprep.subr.bf16.mxu0 %v2085
        %2171 = vmatpush1.bf16.msra.mxu0 %v2084
        %2172 = vmatprep.subr.bf16.mxu0 0
        %2173 = vmatpush2.bf16.msra.mxu0 0
        %2174 = vmatprep.subr.bf16.mxu0 %v2113
        %2175 = vmatpush2.bf16.msra.mxu0 %v2112
        %2176 = vmatprep.subr.bf16.mxu0 %v2111
        %2177 = vmatpush2.bf16.msra.mxu0 %v2110
        %2178 = vmatprep.subr.bf16.mxu0 %v2109
        %2179 = vmatpush2.bf16.msra.mxu0 %v2108
        %2180 = vmatprep.subr.bf16.mxu0 %v2107
        %2181 = vmatpush2.bf16.msra.mxu0 %v2106
        %2182 = vmatprep.subr.bf16.mxu0 %v2105
        %2183 = vmatpush2.bf16.msra.mxu0 %v2104
        %2184 = vmatprep.subr.bf16.mxu0 %v2103
        %2185 = vmatpush2.bf16.msra.mxu0 %v2102
        %2186 = vmatprep.subr.bf16.mxu0 %v2101
        %2187 = vmatpush2.bf16.msra.mxu0 %v2100
        %2188 = vmatprep.mubr.bf16.mxu0 %v2145
        %2189 = vmatmul.mubr.bf16.gmra.mxu0 %v1955
        %v2190 = vpop.f32.mrf.mxu0
        %v2191 = vadd.f32 0.0, %v2190
        %v2192 = vpop.f32.mrf.mxu0
        %v2193 = vadd.f32 0.0, %v2192
        %v2194 = vpop.f32.mrf.mxu0
        %v2195 = vadd.f32 0.0, %v2194
        %v2196 = vpop.f32.mrf.mxu0
        %v2197 = vadd.f32 0.0, %v2196
        %2198 = vmatprep.mubr.bf16.mxu0 %v2148
        %2199 = vmatmul.mubr.bf16.gmra.mxu0 %v1957
        %v2200 = vpop.f32.mrf.mxu0
        %v2201 = vadd.f32 0.0, %v2200
        %v2202 = vpop.f32.mrf.mxu0
        %v2203 = vadd.f32 0.0, %v2202
        %v2204 = vpop.f32.mrf.mxu0
        %v2205 = vadd.f32 0.0, %v2204
        %v2206 = vpop.f32.mrf.mxu0
        %v2207 = vadd.f32 0.0, %v2206
        %2208 = vmatprep.mubr.bf16.mxu0 %v2151
        %2209 = vmatmul.mubr.bf16.gmra.mxu0 %v1959
        %v2210 = vpop.f32.mrf.mxu0
        %v2211 = vadd.f32 0.0, %v2210
        %v2212 = vpop.f32.mrf.mxu0
        %v2213 = vadd.f32 0.0, %v2212
        %v2214 = vpop.f32.mrf.mxu0
        %v2215 = vadd.f32 0.0, %v2214
        %v2216 = vpop.f32.mrf.mxu0
        %v2217 = vadd.f32 0.0, %v2216
        %2218 = vmatprep.mubr.bf16.mxu0 %v2154
        %2219 = vmatmul.mubr.bf16.gmra.mxu0 %v1961
        %v2220 = vpop.f32.mrf.mxu0
        %v2221 = vadd.f32 0.0, %v2220
        %v2222 = vpop.f32.mrf.mxu0
        %v2223 = vadd.f32 0.0, %v2222
        %v2224 = vpop.f32.mrf.mxu0
        %v2225 = vadd.f32 0.0, %v2224
        %v2226 = vpop.f32.mrf.mxu0
        %v2227 = vadd.f32 0.0, %v2226
        %2228 = vdwg.mxu0
        %v2259 = vunpack.c.l.b16 %v1796
        %v2260 = vunpack.c.h.b16 %v1796
        %v2261 = vunpack.c.l.b16 %v1797
        %v2262 = vunpack.c.h.b16 %v1797
        %v2263 = vunpack.c.l.b16 %v1798
        %v2264 = vunpack.c.h.b16 %v1798
        %v2265 = vunpack.c.l.b16 %v1799
        %v2266 = vunpack.c.h.b16 %v1799
        %v2267 = vunpack.c.l.b16 %v1800
        %v2268 = vunpack.c.h.b16 %v1800
        %v2269 = vunpack.c.l.b16 %v1801
        %v2270 = vunpack.c.h.b16 %v1801
        %v2271 = vunpack.c.l.b16 %v1802
        %v2272 = vunpack.c.h.b16 %v1802
        %v2273 = vunpack.c.l.b16 %v1803
        %v2274 = vunpack.c.h.b16 %v1803
        %v2275 = vunpack.c.l.b16 %v1804
        %v2276 = vunpack.c.h.b16 %v1804
        %v2277 = vunpack.c.l.b16 %v1805
        %v2278 = vunpack.c.h.b16 %v1805
        %v2279 = vunpack.c.l.b16 %v1806
        %v2280 = vunpack.c.h.b16 %v1806
        %v2281 = vunpack.c.l.b16 %v1807
        %v2282 = vunpack.c.h.b16 %v1807
        %v2283 = vunpack.c.l.b16 %v1808
        %v2284 = vunpack.c.h.b16 %v1808
        %v2285 = vunpack.c.l.b16 %v1809
        %v2286 = vunpack.c.h.b16 %v1809
        %v2287 = vunpack.c.l.b16 %v1810
        %v2288 = vunpack.c.h.b16 %v1810
        %v2289 = vunpack.c.l.b16 %v1811
        %v2290 = vunpack.c.h.b16 %v1811
        %v2291 = vunpack.c.l.b16 %v1812
        %v2292 = vunpack.c.h.b16 %v1812
        %v2293 = vunpack.c.l.b16 %v1813
        %v2294 = vunpack.c.h.b16 %v1813
        %v2295 = vunpack.c.l.b16 %v1814
        %v2296 = vunpack.c.h.b16 %v1814
        %v2297 = vunpack.c.l.b16 %v1815
        %v2298 = vunpack.c.h.b16 %v1815
        %v2299 = vunpack.c.l.b16 %v1816
        %v2300 = vunpack.c.h.b16 %v1816
        %v2301 = vunpack.c.l.b16 %v1817
        %v2302 = vunpack.c.h.b16 %v1817
        %v2303 = vunpack.c.l.b16 %v1818
        %v2304 = vunpack.c.h.b16 %v1818
        %v2305 = vunpack.c.l.b16 %v1819
        %v2306 = vunpack.c.h.b16 %v1819
        %v2307 = vunpack.c.l.b16 %v1820
        %v2308 = vunpack.c.h.b16 %v1820
        %v2309 = vunpack.c.l.b16 %v1821
        %v2310 = vunpack.c.h.b16 %v1821
        %v2311 = vunpack.c.l.b16 %v1822
        %v2312 = vunpack.c.h.b16 %v1822
        %v2313 = vunpack.c.l.b16 %v1823
        %v2314 = vunpack.c.h.b16 %v1823
        %v2315 = vunpack.c.l.b16 %v1824
        %v2316 = vunpack.c.h.b16 %v1824
        %v2317 = vunpack.c.l.b16 %v1825
        %v2318 = vunpack.c.h.b16 %v1825
        %v2319 = vpack.c.b16 %v2261, %v2259
        %v2320 = vpack.c.b16 %v2262, %v2260
        %v2321 = vpack.c.b16 %v2265, %v2263
        %v2322 = vpack.c.b16 %v2266, %v2264
        %v2323 = vpack.c.b16 %v2269, %v2267
        %v2324 = vpack.c.b16 %v2270, %v2268
        %v2325 = vpack.c.b16 %v2273, %v2271
        %v2326 = vpack.c.b16 %v2274, %v2272
        %v2327 = vpack.c.b16 %v2277, %v2275
        %v2328 = vpack.c.b16 %v2278, %v2276
        %v2329 = vpack.c.b16 %v2281, %v2279
        %v2330 = vpack.c.b16 %v2282, %v2280
        %v2331 = vpack.c.b16 %v2285, %v2283
        %v2332 = vpack.c.b16 %v2286, %v2284
        %v2333 = vpack.c.b16 %v2289, %v2287
        %v2334 = vpack.c.b16 %v2290, %v2288
        %v2335 = vpack.c.b16 %v2293, %v2291
        %v2336 = vpack.c.b16 %v2294, %v2292
        %v2337 = vpack.c.b16 %v2297, %v2295
        %v2338 = vpack.c.b16 %v2298, %v2296
        %v2339 = vpack.c.b16 %v2301, %v2299
        %v2340 = vpack.c.b16 %v2302, %v2300
        %v2341 = vpack.c.b16 %v2305, %v2303
        %v2342 = vpack.c.b16 %v2306, %v2304
        %v2343 = vpack.c.b16 %v2309, %v2307
        %v2344 = vpack.c.b16 %v2310, %v2308
        %v2345 = vpack.c.b16 %v2313, %v2311
        %v2346 = vpack.c.b16 %v2314, %v2312
        %v2347 = vpack.c.b16 %v2317, %v2315
        %v2348 = vpack.c.b16 %v2318, %v2316
        %v2380 = vsel %vm712, %v1789, 0
        %v2383 = vsel %vm712, %v1791, 0
        %v2386 = vsel %vm712, %v1793, 0
        %v2389 = vsel %vm712, %v1795, 0
        %2391 = vmatprep.subr.bf16.mxu0 %v2334
        %2392 = vmatpush1.bf16.msra.mxu0 %v2333
        %2393 = vmatprep.subr.bf16.mxu0 %v2332
        %2394 = vmatpush1.bf16.msra.mxu0 %v2331
        %2395 = vmatprep.subr.bf16.mxu0 %v2330
        %2396 = vmatpush1.bf16.msra.mxu0 %v2329
        %2397 = vmatprep.subr.bf16.mxu0 %v2328
        %2398 = vmatpush1.bf16.msra.mxu0 %v2327
        %2399 = vmatprep.subr.bf16.mxu0 %v2326
        %2400 = vmatpush1.bf16.msra.mxu0 %v2325
        %2401 = vmatprep.subr.bf16.mxu0 %v2324
        %2402 = vmatpush1.bf16.msra.mxu0 %v2323
        %2403 = vmatprep.subr.bf16.mxu0 %v2322
        %2404 = vmatpush1.bf16.msra.mxu0 %v2321
        %2405 = vmatprep.subr.bf16.mxu0 %v2320
        %2406 = vmatpush1.bf16.msra.mxu0 %v2319
        %2407 = vmatprep.subr.bf16.mxu0 0
        %2408 = vmatpush2.bf16.msra.mxu0 0
        %2409 = vmatprep.subr.bf16.mxu0 %v2348
        %2410 = vmatpush2.bf16.msra.mxu0 %v2347
        %2411 = vmatprep.subr.bf16.mxu0 %v2346
        %2412 = vmatpush2.bf16.msra.mxu0 %v2345
        %2413 = vmatprep.subr.bf16.mxu0 %v2344
        %2414 = vmatpush2.bf16.msra.mxu0 %v2343
        %2415 = vmatprep.subr.bf16.mxu0 %v2342
        %2416 = vmatpush2.bf16.msra.mxu0 %v2341
        %2417 = vmatprep.subr.bf16.mxu0 %v2340
        %2418 = vmatpush2.bf16.msra.mxu0 %v2339
        %2419 = vmatprep.subr.bf16.mxu0 %v2338
        %2420 = vmatpush2.bf16.msra.mxu0 %v2337
        %2421 = vmatprep.subr.bf16.mxu0 %v2336
        %2422 = vmatpush2.bf16.msra.mxu0 %v2335
        %2423 = vmatprep.mubr.bf16.mxu0 %v2380
        %2424 = vmatmul.mubr.bf16.gmra.mxu0 %v1788
        %v2425 = vpop.f32.mrf.mxu0
        %v2426 = vadd.f32 %v2191, %v2425
        %v2427 = vpop.f32.mrf.mxu0
        %v2428 = vadd.f32 %v2193, %v2427
        %v2429 = vpop.f32.mrf.mxu0
        %v2430 = vadd.f32 %v2195, %v2429
        %v2431 = vpop.f32.mrf.mxu0
        %v2432 = vadd.f32 %v2197, %v2431
        %2433 = vmatprep.mubr.bf16.mxu0 %v2383
        %2434 = vmatmul.mubr.bf16.gmra.mxu0 %v1790
        %v2435 = vpop.f32.mrf.mxu0
        %v2436 = vadd.f32 %v2201, %v2435
        %v2437 = vpop.f32.mrf.mxu0
        %v2438 = vadd.f32 %v2203, %v2437
        %v2439 = vpop.f32.mrf.mxu0
        %v2440 = vadd.f32 %v2205, %v2439
        %v2441 = vpop.f32.mrf.mxu0
        %v2442 = vadd.f32 %v2207, %v2441
        %2443 = vmatprep.mubr.bf16.mxu0 %v2386
        %2444 = vmatmul.mubr.bf16.gmra.mxu0 %v1792
        %v2445 = vpop.f32.mrf.mxu0
        %v2446 = vadd.f32 %v2211, %v2445
        %v2447 = vpop.f32.mrf.mxu0
        %v2448 = vadd.f32 %v2213, %v2447
        %v2449 = vpop.f32.mrf.mxu0
        %v2450 = vadd.f32 %v2215, %v2449
        %v2451 = vpop.f32.mrf.mxu0
        %v2452 = vadd.f32 %v2217, %v2451
        %2453 = vmatprep.mubr.bf16.mxu0 %v2389
        %2454 = vmatmul.mubr.bf16.gmra.mxu0 %v1794
        %v2455 = vpop.f32.mrf.mxu0
        %v2456 = vadd.f32 %v2221, %v2455
        %v2457 = vpop.f32.mrf.mxu0
        %v2458 = vadd.f32 %v2223, %v2457
        %v2459 = vpop.f32.mrf.mxu0
        %v2460 = vadd.f32 %v2225, %v2459
        %v2461 = vpop.f32.mrf.mxu0
        %v2462 = vadd.f32 %v2227, %v2461
        %2463 = vdwg.mxu0
        %v2464 = vld [vmem:[#allocation2] sm:$0xfc]
        %v2465 = vld [vmem:[#allocation2 + $0x8] sm:$0xfc]
        %v2466 = vld [vmem:[#allocation2 + $0x10] sm:$0x3]
        %v2467 = vld [vmem:[#allocation2 + $0x18] sm:$0x3]
        %v2468 = vld [vmem:[#allocation2 + $0x20] sm:$0xfc]
        %v2469 = vld [vmem:[#allocation2 + $0x28] sm:$0xfc]
        %v2470 = vld [vmem:[#allocation2 + $0x30] sm:$0x3]
        %v2471 = vld [vmem:[#allocation2 + $0x38] sm:$0x3]
        %v2472 = vld [vmem:[#allocation2 + $0x40] sm:$0xfc]
        %v2473 = vld [vmem:[#allocation2 + $0x48] sm:$0xfc]
        %v2474 = vld [vmem:[#allocation2 + $0x50] sm:$0x3]
        %v2475 = vld [vmem:[#allocation2 + $0x58] sm:$0x3]
        %v2476 = vld [vmem:[#allocation2 + $0x60] sm:$0xfc]
        %v2477 = vld [vmem:[#allocation2 + $0x68] sm:$0xfc]
        %v2478 = vld [vmem:[#allocation2 + $0x70] sm:$0x3]
        %v2479 = vld [vmem:[#allocation2 + $0x78] sm:$0x3]
        %v2480 = vld [vmem:[#allocation2 + $0x80] sm:$0xfc]
        %v2481 = vld [vmem:[#allocation2 + $0x88] sm:$0xfc]
        %v2482 = vld [vmem:[#allocation2 + $0x90] sm:$0x3]
        %v2483 = vld [vmem:[#allocation2 + $0x98] sm:$0x3]
        %v2484 = vld [vmem:[#allocation2 + $0xa0] sm:$0xfc]
        %v2485 = vld [vmem:[#allocation2 + $0xa8] sm:$0xfc]
        %v2486 = vld [vmem:[#allocation2 + $0xb0] sm:$0x3]
        %v2487 = vld [vmem:[#allocation2 + $0xb8] sm:$0x3]
        %v2488 = vld [vmem:[#allocation2 + $0xc0] sm:$0xfc]
        %v2489 = vld [vmem:[#allocation2 + $0xc8] sm:$0xfc]
        %v2490 = vld [vmem:[#allocation2 + $0xd0] sm:$0x3]
        %v2491 = vld [vmem:[#allocation2 + $0xd8] sm:$0x3]
        %v2492 = vld [vmem:[#allocation2 + $0xe0] sm:$0xfc]
        %v2493 = vld [vmem:[#allocation2 + $0xe8] sm:$0xfc]
        %v2494 = vld [vmem:[#allocation2 + $0xf0] sm:$0x3]
        %v2495 = vld [vmem:[#allocation2 + $0xf8] sm:$0x3]
        %vm2528 = vcmask 1045504
        %v2529 = vrot.slane %v2464, 2
        %v2530 = vrot.slane %v2466, 2
        %v2531 = vsel %vm2528, %v2529, %v2530
        %v2532 = vrot.slane %v2465, 2
        %v2533 = vrot.slane %v2467, 2
        %v2534 = vsel %vm2528, %v2532, %v2533
        %v2535 = vrot.slane %v2468, 2
        %v2536 = vrot.slane %v2470, 2
        %v2537 = vsel %vm2528, %v2535, %v2536
        %v2538 = vrot.slane %v2469, 2
        %v2539 = vrot.slane %v2471, 2
        %v2540 = vsel %vm2528, %v2538, %v2539
        %v2541 = vrot.slane %v2472, 2
        %v2542 = vrot.slane %v2474, 2
        %v2543 = vsel %vm2528, %v2541, %v2542
        %v2544 = vrot.slane %v2473, 2
        %v2545 = vrot.slane %v2475, 2
        %v2546 = vsel %vm2528, %v2544, %v2545
        %v2547 = vrot.slane %v2476, 2
        %v2548 = vrot.slane %v2478, 2
        %v2549 = vsel %vm2528, %v2547, %v2548
        %v2550 = vrot.slane %v2477, 2
        %v2551 = vrot.slane %v2479, 2
        %v2552 = vsel %vm2528, %v2550, %v2551
        %v2553 = vrot.slane %v2480, 2
        %v2554 = vrot.slane %v2482, 2
        %v2555 = vsel %vm2528, %v2553, %v2554
        %v2556 = vrot.slane %v2481, 2
        %v2557 = vrot.slane %v2483, 2
        %v2558 = vsel %vm2528, %v2556, %v2557
        %v2559 = vrot.slane %v2484, 2
        %v2560 = vrot.slane %v2486, 2
        %v2561 = vsel %vm2528, %v2559, %v2560
        %v2562 = vrot.slane %v2485, 2
        %v2563 = vrot.slane %v2487, 2
        %v2564 = vsel %vm2528, %v2562, %v2563
        %v2565 = vrot.slane %v2488, 2
        %v2566 = vrot.slane %v2490, 2
        %v2567 = vsel %vm2528, %v2565, %v2566
        %v2568 = vrot.slane %v2489, 2
        %v2569 = vrot.slane %v2491, 2
        %v2570 = vsel %vm2528, %v2568, %v2569
        %v2571 = vrot.slane %v2492, 2
        %v2572 = vrot.slane %v2494, 2
        %v2573 = vsel %vm2528, %v2571, %v2572
        %v2574 = vrot.slane %v2493, 2
        %v2575 = vrot.slane %v2495, 2
        %v2576 = vsel %vm2528, %v2574, %v2575
        %v2593 = vpack.c.bf16 %v2537, %v2531
        %v2594 = vpack.c.bf16 %v2540, %v2534
        %v2595 = vpack.c.bf16 %v2549, %v2543
        %v2596 = vpack.c.bf16 %v2552, %v2546
        %v2597 = vpack.c.bf16 %v2561, %v2555
        %v2598 = vpack.c.bf16 %v2564, %v2558
        %v2599 = vpack.c.bf16 %v2573, %v2567
        %v2600 = vpack.c.bf16 %v2576, %v2570
        %s2601 = scalar_lea.vmem %s3, 480
        %v2602 = vld [vmem:[%s2601] sm:$0xff]
        %v2603 = vld [vmem:[%s2601 + $0x8] sm:$0xff]
        %v2604 = vld [vmem:[%s2601 + $0x10] sm:$0xff]
        %v2605 = vld [vmem:[%s2601 + $0x18] sm:$0xff]
        %v2606 = vld [vmem:[%s2601 + $0x20] sm:$0xff]
        %v2607 = vld [vmem:[%s2601 + $0x28] sm:$0xff]
        %v2608 = vld [vmem:[%s2601 + $0x30] sm:$0xff]
        %v2609 = vld [vmem:[%s2601 + $0x38] sm:$0xff]
        %v2610 = vld [vmem:[%s2601 + $0x40] sm:$0xff]
        %v2611 = vld [vmem:[%s2601 + $0x48] sm:$0xff]
        %v2612 = vld [vmem:[%s2601 + $0x50] sm:$0xff]
        %v2613 = vld [vmem:[%s2601 + $0x58] sm:$0xff]
        %v2614 = vld [vmem:[%s2601 + $0x60] sm:$0xff]
        %v2615 = vld [vmem:[%s2601 + $0x68] sm:$0xff]
        %v2616 = vld [vmem:[%s2601 + $0x70] sm:$0xff]
        %v2617 = vld [vmem:[%s2601 + $0x78] sm:$0xff]
        %v2618 = vld [vmem:[%s2601 + $0x80] sm:$0xff]
        %v2619 = vld [vmem:[%s2601 + $0x88] sm:$0xff]
        %v2620 = vld [vmem:[%s2601 + $0x90] sm:$0xff]
        %v2621 = vld [vmem:[%s2601 + $0x98] sm:$0xff]
        %v2622 = vld [vmem:[%s2601 + $0xa0] sm:$0xff]
        %v2623 = vld [vmem:[%s2601 + $0xa8] sm:$0xff]
        %v2624 = vld [vmem:[%s2601 + $0xb0] sm:$0xff]
        %v2625 = vld [vmem:[%s2601 + $0xb8] sm:$0xff]
        %v2626 = vld [vmem:[%s2601 + $0xc0] sm:$0xff]
        %v2627 = vld [vmem:[%s2601 + $0xc8] sm:$0xff]
        %v2628 = vld [vmem:[%s2601 + $0xd0] sm:$0xff]
        %v2629 = vld [vmem:[%s2601 + $0xd8] sm:$0xff]
        %v2630 = vld [vmem:[%s2601 + $0xe0] sm:$0xff]
        %v2631 = vld [vmem:[%s2601 + $0xe8] sm:$0xff]
        %v2662 = vunpack.c.l.b16 %v2602
        %v2663 = vunpack.c.h.b16 %v2602
        %v2664 = vunpack.c.l.b16 %v2603
        %v2665 = vunpack.c.h.b16 %v2603
        %v2666 = vunpack.c.l.b16 %v2604
        %v2667 = vunpack.c.h.b16 %v2604
        %v2668 = vunpack.c.l.b16 %v2605
        %v2669 = vunpack.c.h.b16 %v2605
        %v2670 = vunpack.c.l.b16 %v2606
        %v2671 = vunpack.c.h.b16 %v2606
        %v2672 = vunpack.c.l.b16 %v2607
        %v2673 = vunpack.c.h.b16 %v2607
        %v2674 = vunpack.c.l.b16 %v2608
        %v2675 = vunpack.c.h.b16 %v2608
        %v2676 = vunpack.c.l.b16 %v2609
        %v2677 = vunpack.c.h.b16 %v2609
        %v2678 = vunpack.c.l.b16 %v2610
        %v2679 = vunpack.c.h.b16 %v2610
        %v2680 = vunpack.c.l.b16 %v2611
        %v2681 = vunpack.c.h.b16 %v2611
        %v2682 = vunpack.c.l.b16 %v2612
        %v2683 = vunpack.c.h.b16 %v2612
        %v2684 = vunpack.c.l.b16 %v2613
        %v2685 = vunpack.c.h.b16 %v2613
        %v2686 = vunpack.c.l.b16 %v2614
        %v2687 = vunpack.c.h.b16 %v2614
        %v2688 = vunpack.c.l.b16 %v2615
        %v2689 = vunpack.c.h.b16 %v2615
        %v2690 = vunpack.c.l.b16 %v2616
        %v2691 = vunpack.c.h.b16 %v2616
        %v2692 = vunpack.c.l.b16 %v2617
        %v2693 = vunpack.c.h.b16 %v2617
        %v2694 = vunpack.c.l.b16 %v2618
        %v2695 = vunpack.c.h.b16 %v2618
        %v2696 = vunpack.c.l.b16 %v2619
        %v2697 = vunpack.c.h.b16 %v2619
        %v2698 = vunpack.c.l.b16 %v2620
        %v2699 = vunpack.c.h.b16 %v2620
        %v2700 = vunpack.c.l.b16 %v2621
        %v2701 = vunpack.c.h.b16 %v2621
        %v2702 = vunpack.c.l.b16 %v2622
        %v2703 = vunpack.c.h.b16 %v2622
        %v2704 = vunpack.c.l.b16 %v2623
        %v2705 = vunpack.c.h.b16 %v2623
        %v2706 = vunpack.c.l.b16 %v2624
        %v2707 = vunpack.c.h.b16 %v2624
        %v2708 = vunpack.c.l.b16 %v2625
        %v2709 = vunpack.c.h.b16 %v2625
        %v2710 = vunpack.c.l.b16 %v2626
        %v2711 = vunpack.c.h.b16 %v2626
        %v2712 = vunpack.c.l.b16 %v2627
        %v2713 = vunpack.c.h.b16 %v2627
        %v2714 = vunpack.c.l.b16 %v2628
        %v2715 = vunpack.c.h.b16 %v2628
        %v2716 = vunpack.c.l.b16 %v2629
        %v2717 = vunpack.c.h.b16 %v2629
        %v2718 = vunpack.c.l.b16 %v2630
        %v2719 = vunpack.c.h.b16 %v2630
        %v2720 = vunpack.c.l.b16 %v2631
        %v2721 = vunpack.c.h.b16 %v2631
        %v2722 = vpack.c.b16 %v2664, %v2662
        %v2723 = vpack.c.b16 %v2665, %v2663
        %v2724 = vpack.c.b16 %v2668, %v2666
        %v2725 = vpack.c.b16 %v2669, %v2667
        %v2726 = vpack.c.b16 %v2672, %v2670
        %v2727 = vpack.c.b16 %v2673, %v2671
        %v2728 = vpack.c.b16 %v2676, %v2674
        %v2729 = vpack.c.b16 %v2677, %v2675
        %v2730 = vpack.c.b16 %v2680, %v2678
        %v2731 = vpack.c.b16 %v2681, %v2679
        %v2732 = vpack.c.b16 %v2684, %v2682
        %v2733 = vpack.c.b16 %v2685, %v2683
        %v2734 = vpack.c.b16 %v2688, %v2686
        %v2735 = vpack.c.b16 %v2689, %v2687
        %v2736 = vpack.c.b16 %v2692, %v2690
        %v2737 = vpack.c.b16 %v2693, %v2691
        %v2738 = vpack.c.b16 %v2696, %v2694
        %v2739 = vpack.c.b16 %v2697, %v2695
        %v2740 = vpack.c.b16 %v2700, %v2698
        %v2741 = vpack.c.b16 %v2701, %v2699
        %v2742 = vpack.c.b16 %v2704, %v2702
        %v2743 = vpack.c.b16 %v2705, %v2703
        %v2744 = vpack.c.b16 %v2708, %v2706
        %v2745 = vpack.c.b16 %v2709, %v2707
        %v2746 = vpack.c.b16 %v2712, %v2710
        %v2747 = vpack.c.b16 %v2713, %v2711
        %v2748 = vpack.c.b16 %v2716, %v2714
        %v2749 = vpack.c.b16 %v2717, %v2715
        %v2750 = vpack.c.b16 %v2720, %v2718
        %v2751 = vpack.c.b16 %v2721, %v2719
        %v2783 = vsel %vm712, %v2594, 0
        %v2786 = vsel %vm712, %v2596, 0
        %v2789 = vsel %vm712, %v2598, 0
        %v2792 = vsel %vm712, %v2600, 0
        %2794 = vmatprep.subr.bf16.mxu0 %v2737
        %2795 = vmatpush1.bf16.msra.mxu0 %v2736
        %2796 = vmatprep.subr.bf16.mxu0 %v2735
        %2797 = vmatpush1.bf16.msra.mxu0 %v2734
        %2798 = vmatprep.subr.bf16.mxu0 %v2733
        %2799 = vmatpush1.bf16.msra.mxu0 %v2732
        %2800 = vmatprep.subr.bf16.mxu0 %v2731
        %2801 = vmatpush1.bf16.msra.mxu0 %v2730
        %2802 = vmatprep.subr.bf16.mxu0 %v2729
        %2803 = vmatpush1.bf16.msra.mxu0 %v2728
        %2804 = vmatprep.subr.bf16.mxu0 %v2727
        %2805 = vmatpush1.bf16.msra.mxu0 %v2726
        %2806 = vmatprep.subr.bf16.mxu0 %v2725
        %2807 = vmatpush1.bf16.msra.mxu0 %v2724
        %2808 = vmatprep.subr.bf16.mxu0 %v2723
        %2809 = vmatpush1.bf16.msra.mxu0 %v2722
        %2810 = vmatprep.subr.bf16.mxu0 0
        %2811 = vmatpush2.bf16.msra.mxu0 0
        %2812 = vmatprep.subr.bf16.mxu0 %v2751
        %2813 = vmatpush2.bf16.msra.mxu0 %v2750
        %2814 = vmatprep.subr.bf16.mxu0 %v2749
        %2815 = vmatpush2.bf16.msra.mxu0 %v2748
        %2816 = vmatprep.subr.bf16.mxu0 %v2747
        %2817 = vmatpush2.bf16.msra.mxu0 %v2746
        %2818 = vmatprep.subr.bf16.mxu0 %v2745
        %2819 = vmatpush2.bf16.msra.mxu0 %v2744
        %2820 = vmatprep.subr.bf16.mxu0 %v2743
        %2821 = vmatpush2.bf16.msra.mxu0 %v2742
        %2822 = vmatprep.subr.bf16.mxu0 %v2741
        %2823 = vmatpush2.bf16.msra.mxu0 %v2740
        %2824 = vmatprep.subr.bf16.mxu0 %v2739
        %2825 = vmatpush2.bf16.msra.mxu0 %v2738
        %2826 = vmatprep.mubr.bf16.mxu0 %v2783
        %2827 = vmatmul.mubr.bf16.gmra.mxu0 %v2593
        %v2828 = vpop.f32.mrf.mxu0
        %v2829 = vadd.f32 0.0, %v2828
        %v2830 = vpop.f32.mrf.mxu0
        %v2831 = vadd.f32 0.0, %v2830
        %v2832 = vpop.f32.mrf.mxu0
        %v2833 = vadd.f32 0.0, %v2832
        %v2834 = vpop.f32.mrf.mxu0
        %v2835 = vadd.f32 0.0, %v2834
        %2836 = vmatprep.mubr.bf16.mxu0 %v2786
        %2837 = vmatmul.mubr.bf16.gmra.mxu0 %v2595
        %v2838 = vpop.f32.mrf.mxu0
        %v2839 = vadd.f32 0.0, %v2838
        %v2840 = vpop.f32.mrf.mxu0
        %v2841 = vadd.f32 0.0, %v2840
        %v2842 = vpop.f32.mrf.mxu0
        %v2843 = vadd.f32 0.0, %v2842
        %v2844 = vpop.f32.mrf.mxu0
        %v2845 = vadd.f32 0.0, %v2844
        %2846 = vmatprep.mubr.bf16.mxu0 %v2789
        %2847 = vmatmul.mubr.bf16.gmra.mxu0 %v2597
        %v2848 = vpop.f32.mrf.mxu0
        %v2849 = vadd.f32 0.0, %v2848
        %v2850 = vpop.f32.mrf.mxu0
        %v2851 = vadd.f32 0.0, %v2850
        %v2852 = vpop.f32.mrf.mxu0
        %v2853 = vadd.f32 0.0, %v2852
        %v2854 = vpop.f32.mrf.mxu0
        %v2855 = vadd.f32 0.0, %v2854
        %2856 = vmatprep.mubr.bf16.mxu0 %v2792
        %2857 = vmatmul.mubr.bf16.gmra.mxu0 %v2599
        %v2858 = vpop.f32.mrf.mxu0
        %v2859 = vadd.f32 0.0, %v2858
        %v2860 = vpop.f32.mrf.mxu0
        %v2861 = vadd.f32 0.0, %v2860
        %v2862 = vpop.f32.mrf.mxu0
        %v2863 = vadd.f32 0.0, %v2862
        %v2864 = vpop.f32.mrf.mxu0
        %v2865 = vadd.f32 0.0, %v2864
        %2866 = vdwg.mxu0
        %v2867 = vadd.f32 %v2426, %v2829
        %v2868 = vadd.f32 %v2428, %v2831
        %v2869 = vadd.f32 %v2430, %v2833
        %v2870 = vadd.f32 %v2432, %v2835
        %v2871 = vadd.f32 %v2436, %v2839
        %v2872 = vadd.f32 %v2438, %v2841
        %v2873 = vadd.f32 %v2440, %v2843
        %v2874 = vadd.f32 %v2442, %v2845
        %v2875 = vadd.f32 %v2446, %v2849
        %v2876 = vadd.f32 %v2448, %v2851
        %v2877 = vadd.f32 %v2450, %v2853
        %v2878 = vadd.f32 %v2452, %v2855
        %v2879 = vadd.f32 %v2456, %v2859
        %v2880 = vadd.f32 %v2458, %v2861
        %v2881 = vadd.f32 %v2460, %v2863
        %v2882 = vadd.f32 %v2462, %v2865
        %v2883 = vld [vmem:[%s4] sm:$0x3]
        %v2885 = vlaneseq
        %v2886 = vshrl.u32 %v2885, 7
        %v2887 = vsub.s32 0, %v2886
        %v2888 = vrot.slane %v2883, %v2887
        %v2889 = vlaneseq
        %v2890 = vshrl.u32 %v2889, 7
        %v2891 = vsub.s32 1, %v2890
        %v2892 = vrot.slane %v2883, %v2891
        %v2895 = vadd.f32 %v2867, %v2888
        %v2896 = vadd.f32 %v2868, %v2892
        %v2897 = vadd.f32 %v2869, %v2888
        %v2898 = vadd.f32 %v2870, %v2892
        %v2899 = vadd.f32 %v2871, %v2888
        %v2900 = vadd.f32 %v2872, %v2892
        %v2901 = vadd.f32 %v2873, %v2888
        %v2902 = vadd.f32 %v2874, %v2892
        %v2903 = vadd.f32 %v2875, %v2888
        %v2904 = vadd.f32 %v2876, %v2892
        %v2905 = vadd.f32 %v2877, %v2888
        %v2906 = vadd.f32 %v2878, %v2892
        %v2907 = vadd.f32 %v2879, %v2888
        %v2908 = vadd.f32 %v2880, %v2892
        %v2909 = vadd.f32 %v2881, %v2888
        %v2910 = vadd.f32 %v2882, %v2892
        %v2911 = vmax.f32 %v2895, 0.0
        %v2912 = vmax.f32 %v2896, 0.0
        %v2913 = vmax.f32 %v2897, 0.0
        %v2914 = vmax.f32 %v2898, 0.0
        %v2915 = vmax.f32 %v2899, 0.0
        %v2916 = vmax.f32 %v2900, 0.0
        %v2917 = vmax.f32 %v2901, 0.0
        %v2918 = vmax.f32 %v2902, 0.0
        %v2919 = vmax.f32 %v2903, 0.0
        %v2920 = vmax.f32 %v2904, 0.0
        %v2921 = vmax.f32 %v2905, 0.0
        %v2922 = vmax.f32 %v2906, 0.0
        %v2923 = vmax.f32 %v2907, 0.0
        %v2924 = vmax.f32 %v2908, 0.0
        %v2925 = vmax.f32 %v2909, 0.0
        %v2926 = vmax.f32 %v2910, 0.0
        %2943 = vrot.lane.b32.xlu0 %v2911, 96
        %v2944 = vpop.permute.xlu0 %2943
        %2945 = vrot.lane.b32.xlu0 %v2912, 96
        %v2946 = vpop.permute.xlu0 %2945
        %2947 = vrot.lane.b32.xlu0 %v2913, 96
        %v2948 = vpop.permute.xlu0 %2947
        %2949 = vrot.lane.b32.xlu0 %v2914, 96
        %v2950 = vpop.permute.xlu0 %2949
        %2951 = vrot.lane.b32.xlu0 %v2915, 96
        %v2952 = vpop.permute.xlu0 %2951
        %2953 = vrot.lane.b32.xlu0 %v2916, 96
        %v2954 = vpop.permute.xlu0 %2953
        %2955 = vrot.lane.b32.xlu0 %v2917, 96
        %v2956 = vpop.permute.xlu0 %2955
        %2957 = vrot.lane.b32.xlu0 %v2918, 96
        %v2958 = vpop.permute.xlu0 %2957
        %2959 = vrot.lane.b32.xlu0 %v2919, 96
        %v2960 = vpop.permute.xlu0 %2959
        %2961 = vrot.lane.b32.xlu0 %v2920, 96
        %v2962 = vpop.permute.xlu0 %2961
        %2963 = vrot.lane.b32.xlu0 %v2921, 96
        %v2964 = vpop.permute.xlu0 %2963
        %2965 = vrot.lane.b32.xlu0 %v2922, 96
        %v2966 = vpop.permute.xlu0 %2965
        %2967 = vrot.lane.b32.xlu0 %v2923, 96
        %v2968 = vpop.permute.xlu0 %2967
        %2969 = vrot.lane.b32.xlu0 %v2924, 96
        %v2970 = vpop.permute.xlu0 %2969
        %2971 = vrot.lane.b32.xlu0 %v2925, 96
        %v2972 = vpop.permute.xlu0 %2971
        %2973 = vrot.lane.b32.xlu0 %v2926, 96
        %v2974 = vpop.permute.xlu0 %2973
        %vm2975 = vcmask 785408
        %v2976 = vsel %vm2975, %v2944, %v2946
        %v2977 = vsel %vm2975, %v2948, %v2950
        %v2978 = vsel %vm2975, %v2952, %v2954
        %v2979 = vsel %vm2975, %v2956, %v2958
        %v2980 = vsel %vm2975, %v2960, %v2962
        %v2981 = vsel %vm2975, %v2964, %v2966
        %v2982 = vsel %vm2975, %v2968, %v2970
        %v2983 = vsel %vm2975, %v2972, %v2974
        %v3000 = vmax.f32 %v2911, %v2976
        %v3001 = vmax.f32 %v2912, %v2946
        %v3002 = vmax.f32 %v2913, %v2977
        %v3003 = vmax.f32 %v2914, %v2950
        %v3004 = vmax.f32 %v2915, %v2978
        %v3005 = vmax.f32 %v2916, %v2954
        %v3006 = vmax.f32 %v2917, %v2979
        %v3007 = vmax.f32 %v2918, %v2958
        %v3008 = vmax.f32 %v2919, %v2980
        %v3009 = vmax.f32 %v2920, %v2962
        %v3010 = vmax.f32 %v2921, %v2981
        %v3011 = vmax.f32 %v2922, %v2966
        %v3012 = vmax.f32 %v2923, %v2982
        %v3013 = vmax.f32 %v2924, %v2970
        %v3014 = vmax.f32 %v2925, %v2983
        %v3015 = vmax.f32 %v2926, %v2974
        %vm3016 = vcmp.lt.s32.totalorder %v793, 224
        %vm3017 = vmand %vm794, %vm3016
        %3018 = vst.msk [vmem:[#allocation3] ss:$8 sm:$0x3] %vm3017, 0.0
        %3019 = vst.msk [vmem:[#allocation3] ss:$8 sm:$0x0] %vm3017, 0.0
        %s3020 = scalar_lea.vmem [#allocation3], 32
        %3021 = vst.msk [vmem:[%s3020] ss:$8 sm:$0x3] %vm3017, 0.0
        %3022 = vst.msk [vmem:[%s3020] ss:$8 sm:$0x0] %vm3017, 0.0
        %s3023 = scalar_lea.vmem [#allocation3], 64
        %3024 = vst.msk [vmem:[%s3023] ss:$8 sm:$0x3] %vm3017, 0.0
        %3025 = vst.msk [vmem:[%s3023] ss:$8 sm:$0x0] %vm3017, 0.0
        %s3026 = scalar_lea.vmem [#allocation3], 96
        %3027 = vst.msk [vmem:[%s3026] ss:$8 sm:$0x3] %vm3017, 0.0
        %3028 = vst.msk [vmem:[%s3026] ss:$8 sm:$0x0] %vm3017, 0.0
        %s3029 = scalar_lea.vmem [#allocation3], 128
        %3030 = vst.msk [vmem:[%s3029] ss:$8 sm:$0x3] %vm3017, 0.0
        %3031 = vst.msk [vmem:[%s3029] ss:$8 sm:$0x0] %vm3017, 0.0
        %s3032 = scalar_lea.vmem [#allocation3], 160
        %3033 = vst.msk [vmem:[%s3032] ss:$8 sm:$0x3] %vm3017, 0.0
        %3034 = vst.msk [vmem:[%s3032] ss:$8 sm:$0x0] %vm3017, 0.0
        %s3035 = scalar_lea.vmem [#allocation3], 192
        %3036 = vst.msk [vmem:[%s3035] ss:$8 sm:$0x3] %vm3017, 0.0
        %3037 = vst.msk [vmem:[%s3035] ss:$8 sm:$0x0] %vm3017, 0.0
        %s3038 = scalar_lea.vmem [#allocation3], 224
        %3039 = vst.msk [vmem:[%s3038] ss:$8 sm:$0x3] %vm3017, 0.0
        %3040 = vst.msk [vmem:[%s3038] ss:$8 sm:$0x0] %vm3017, 0.0
        %3041 = vst [vmem:[#allocation3] sm:$0xe0] 0.0
        %vm3042 = vcmask 785413
        %3043 = vst.msk [vmem:[#allocation3 + $0x8] sm:$0xe0] %vm3042, 0.0
        %3044 = vst [vmem:[#allocation3 + $0x10] sm:$0x3] 0.0
        %vm3045 = vcmask 779264
        %3046 = vst.msk [vmem:[#allocation3 + $0x18] sm:$0x3] %vm3045, 0.0
        %3047 = vst [vmem:[#allocation3 + $0x20] sm:$0xe0] 0.0
        %3048 = vst.msk [vmem:[#allocation3 + $0x28] sm:$0xe0] %vm3042, 0.0
        %3049 = vst [vmem:[#allocation3 + $0x30] sm:$0x3] 0.0
        %3050 = vst.msk [vmem:[#allocation3 + $0x38] sm:$0x3] %vm3045, 0.0
        %3051 = vst [vmem:[#allocation3 + $0x40] sm:$0xe0] 0.0
        %3052 = vst.msk [vmem:[#allocation3 + $0x48] sm:$0xe0] %vm3042, 0.0
        %3053 = vst [vmem:[#allocation3 + $0x50] sm:$0x3] 0.0
        %3054 = vst.msk [vmem:[#allocation3 + $0x58] sm:$0x3] %vm3045, 0.0
        %3055 = vst [vmem:[#allocation3 + $0x60] sm:$0xe0] 0.0
        %3056 = vst.msk [vmem:[#allocation3 + $0x68] sm:$0xe0] %vm3042, 0.0
        %3057 = vst [vmem:[#allocation3 + $0x70] sm:$0x3] 0.0
        %3058 = vst.msk [vmem:[#allocation3 + $0x78] sm:$0x3] %vm3045, 0.0
        %3059 = vst [vmem:[#allocation3 + $0x80] sm:$0xe0] 0.0
        %3060 = vst.msk [vmem:[#allocation3 + $0x88] sm:$0xe0] %vm3042, 0.0
        %3061 = vst [vmem:[#allocation3 + $0x90] sm:$0x3] 0.0
        %3062 = vst.msk [vmem:[#allocation3 + $0x98] sm:$0x3] %vm3045, 0.0
        %3063 = vst [vmem:[#allocation3 + $0xa0] sm:$0xe0] 0.0
        %3064 = vst.msk [vmem:[#allocation3 + $0xa8] sm:$0xe0] %vm3042, 0.0
        %3065 = vst [vmem:[#allocation3 + $0xb0] sm:$0x3] 0.0
        %3066 = vst.msk [vmem:[#allocation3 + $0xb8] sm:$0x3] %vm3045, 0.0
        %3067 = vst [vmem:[#allocation3 + $0xc0] sm:$0xe0] 0.0
        %3068 = vst.msk [vmem:[#allocation3 + $0xc8] sm:$0xe0] %vm3042, 0.0
        %3069 = vst [vmem:[#allocation3 + $0xd0] sm:$0x3] 0.0
        %3070 = vst.msk [vmem:[#allocation3 + $0xd8] sm:$0x3] %vm3045, 0.0
        %3071 = vst [vmem:[#allocation3 + $0xe0] sm:$0xe0] 0.0
        %3072 = vst.msk [vmem:[#allocation3 + $0xe8] sm:$0xe0] %vm3042, 0.0
        %3073 = vst [vmem:[#allocation3 + $0xf0] sm:$0x3] 0.0
        %3074 = vst.msk [vmem:[#allocation3 + $0xf8] sm:$0x3] %vm3045, 0.0
        %v3091 = vrot.slane %v3000, 1
        %v3092 = vrot.slane %v3001, 1
        %v3093 = vrot.slane %v3002, 1
        %v3094 = vrot.slane %v3003, 1
        %v3095 = vrot.slane %v3004, 1
        %v3096 = vrot.slane %v3005, 1
        %v3097 = vrot.slane %v3006, 1
        %v3098 = vrot.slane %v3007, 1
        %v3099 = vrot.slane %v3008, 1
        %v3100 = vrot.slane %v3009, 1
        %v3101 = vrot.slane %v3010, 1
        %v3102 = vrot.slane %v3011, 1
        %v3103 = vrot.slane %v3012, 1
        %v3104 = vrot.slane %v3013, 1
        %v3105 = vrot.slane %v3014, 1
        %v3106 = vrot.slane %v3015, 1
        %v3123 = vmax.f32 %v3000, %v3091
        %v3124 = vmax.f32 %v3001, %v3092
        %v3125 = vmax.f32 %v3002, %v3093
        %v3126 = vmax.f32 %v3003, %v3094
        %v3127 = vmax.f32 %v3004, %v3095
        %v3128 = vmax.f32 %v3005, %v3096
        %v3129 = vmax.f32 %v3006, %v3097
        %v3130 = vmax.f32 %v3007, %v3098
        %v3131 = vmax.f32 %v3008, %v3099
        %v3132 = vmax.f32 %v3009, %v3100
        %v3133 = vmax.f32 %v3010, %v3101
        %v3134 = vmax.f32 %v3011, %v3102
        %v3135 = vmax.f32 %v3012, %v3103
        %v3136 = vmax.f32 %v3013, %v3104
        %v3137 = vmax.f32 %v3014, %v3105
        %v3138 = vmax.f32 %v3015, %v3106
        %v3155 = vcombine.low %v3123, %v3124
        %v3157 = vunpack.c.l.s4 1966171168
        %v3158 = vunpack.c.0.s8 %v3157
        %v3159 = vlaneseq
        %v3160 = vshrl.u32 %v3159, 7
        %v3161 = vsub.s32 %v3158, %v3160
        %v3162 = vrot.slane %v3155, %v3161
        %v3164 = vunpack.c.l.s4 1966171168
        %v3165 = vunpack.c.0.s8 %v3164
        %v3166 = vlaneseq
        %v3167 = vshrl.u32 %v3166, 7
        %v3168 = vsub.s32 %v3165, %v3167
        %v3169 = vrot.slane %v3162, %v3168
        %v3170 = vcombine.low %v3125, %v3126
        %v3172 = vunpack.c.l.s4 1966171168
        %v3173 = vunpack.c.0.s8 %v3172
        %v3174 = vlaneseq
        %v3175 = vshrl.u32 %v3174, 7
        %v3176 = vsub.s32 %v3173, %v3175
        %v3177 = vrot.slane %v3170, %v3176
        %v3179 = vunpack.c.l.s4 1966171168
        %v3180 = vunpack.c.0.s8 %v3179
        %v3181 = vlaneseq
        %v3182 = vshrl.u32 %v3181, 7
        %v3183 = vsub.s32 %v3180, %v3182
        %v3184 = vrot.slane %v3177, %v3183
        %v3185 = vcombine.low %v3127, %v3128
        %v3187 = vunpack.c.l.s4 1966171168
        %v3188 = vunpack.c.0.s8 %v3187
        %v3189 = vlaneseq
        %v3190 = vshrl.u32 %v3189, 7
        %v3191 = vsub.s32 %v3188, %v3190
        %v3192 = vrot.slane %v3185, %v3191
        %v3194 = vunpack.c.l.s4 1966171168
        %v3195 = vunpack.c.0.s8 %v3194
        %v3196 = vlaneseq
        %v3197 = vshrl.u32 %v3196, 7
        %v3198 = vsub.s32 %v3195, %v3197
        %v3199 = vrot.slane %v3192, %v3198
        %v3200 = vcombine.low %v3129, %v3130
        %v3202 = vunpack.c.l.s4 1966171168
        %v3203 = vunpack.c.0.s8 %v3202
        %v3204 = vlaneseq
        %v3205 = vshrl.u32 %v3204, 7
        %v3206 = vsub.s32 %v3203, %v3205
        %v3207 = vrot.slane %v3200, %v3206
        %v3209 = vunpack.c.l.s4 1966171168
        %v3210 = vunpack.c.0.s8 %v3209
        %v3211 = vlaneseq
        %v3212 = vshrl.u32 %v3211, 7
        %v3213 = vsub.s32 %v3210, %v3212
        %v3214 = vrot.slane %v3207, %v3213
        %v3215 = vcombine.low %v3131, %v3132
        %v3217 = vunpack.c.l.s4 1966171168
        %v3218 = vunpack.c.0.s8 %v3217
        %v3219 = vlaneseq
        %v3220 = vshrl.u32 %v3219, 7
        %v3221 = vsub.s32 %v3218, %v3220
        %v3222 = vrot.slane %v3215, %v3221
        %v3224 = vunpack.c.l.s4 1966171168
        %v3225 = vunpack.c.0.s8 %v3224
        %v3226 = vlaneseq
        %v3227 = vshrl.u32 %v3226, 7
        %v3228 = vsub.s32 %v3225, %v3227
        %v3229 = vrot.slane %v3222, %v3228
        %v3230 = vcombine.low %v3133, %v3134
        %v3232 = vunpack.c.l.s4 1966171168
        %v3233 = vunpack.c.0.s8 %v3232
        %v3234 = vlaneseq
        %v3235 = vshrl.u32 %v3234, 7
        %v3236 = vsub.s32 %v3233, %v3235
        %v3237 = vrot.slane %v3230, %v3236
        %v3239 = vunpack.c.l.s4 1966171168
        %v3240 = vunpack.c.0.s8 %v3239
        %v3241 = vlaneseq
        %v3242 = vshrl.u32 %v3241, 7
        %v3243 = vsub.s32 %v3240, %v3242
        %v3244 = vrot.slane %v3237, %v3243
        %v3245 = vcombine.low %v3135, %v3136
        %v3247 = vunpack.c.l.s4 1966171168
        %v3248 = vunpack.c.0.s8 %v3247
        %v3249 = vlaneseq
        %v3250 = vshrl.u32 %v3249, 7
        %v3251 = vsub.s32 %v3248, %v3250
        %v3252 = vrot.slane %v3245, %v3251
        %v3254 = vunpack.c.l.s4 1966171168
        %v3255 = vunpack.c.0.s8 %v3254
        %v3256 = vlaneseq
        %v3257 = vshrl.u32 %v3256, 7
        %v3258 = vsub.s32 %v3255, %v3257
        %v3259 = vrot.slane %v3252, %v3258
        %v3260 = vcombine.low %v3137, %v3138
        %v3262 = vunpack.c.l.s4 1966171168
        %v3263 = vunpack.c.0.s8 %v3262
        %v3264 = vlaneseq
        %v3265 = vshrl.u32 %v3264, 7
        %v3266 = vsub.s32 %v3263, %v3265
        %v3267 = vrot.slane %v3260, %v3266
        %v3269 = vunpack.c.l.s4 1966171168
        %v3270 = vunpack.c.0.s8 %v3269
        %v3271 = vlaneseq
        %v3272 = vshrl.u32 %v3271, 7
        %v3273 = vsub.s32 %v3270, %v3272
        %v3274 = vrot.slane %v3267, %v3273
        %s3283 = scalar_lea.vmem [#allocation3], 1
        %3284 = vst.msk [vmem:[%s3283] ss:$8 sm:$0x3] %vm3017, %v3169
        %3285 = vst.msk [vmem:[%s3283] ss:$8 sm:$0x0] %vm3017, %v3169
        %s3286 = scalar_lea.vmem [#allocation3], 33
        %3287 = vst.msk [vmem:[%s3286] ss:$8 sm:$0x3] %vm3017, %v3184
        %3288 = vst.msk [vmem:[%s3286] ss:$8 sm:$0x0] %vm3017, %v3184
        %s3289 = scalar_lea.vmem [#allocation3], 65
        %3290 = vst.msk [vmem:[%s3289] ss:$8 sm:$0x3] %vm3017, %v3199
        %3291 = vst.msk [vmem:[%s3289] ss:$8 sm:$0x0] %vm3017, %v3199
        %s3292 = scalar_lea.vmem [#allocation3], 97
        %3293 = vst.msk [vmem:[%s3292] ss:$8 sm:$0x3] %vm3017, %v3214
        %3294 = vst.msk [vmem:[%s3292] ss:$8 sm:$0x0] %vm3017, %v3214
        %s3295 = scalar_lea.vmem [#allocation3], 129
        %3296 = vst.msk [vmem:[%s3295] ss:$8 sm:$0x3] %vm3017, %v3229
        %3297 = vst.msk [vmem:[%s3295] ss:$8 sm:$0x0] %vm3017, %v3229
        %s3298 = scalar_lea.vmem [#allocation3], 161
        %3299 = vst.msk [vmem:[%s3298] ss:$8 sm:$0x3] %vm3017, %v3244
        %3300 = vst.msk [vmem:[%s3298] ss:$8 sm:$0x0] %vm3017, %v3244
        %s3301 = scalar_lea.vmem [#allocation3], 193
        %3302 = vst.msk [vmem:[%s3301] ss:$8 sm:$0x3] %vm3017, %v3259
        %3303 = vst.msk [vmem:[%s3301] ss:$8 sm:$0x0] %vm3017, %v3259
        %s3304 = scalar_lea.vmem [#allocation3], 225
        %3305 = vst.msk [vmem:[%s3304] ss:$8 sm:$0x3] %vm3017, %v3274
        %3306 = vst.msk [vmem:[%s3304] ss:$8 sm:$0x0] %vm3017, %v3274
        %v3307 = vcombine.high %v3169, %v3169
        %v3308 = vcombine.high %v3184, %v3184
        %v3309 = vcombine.high %v3199, %v3199
        %v3310 = vcombine.high %v3214, %v3214
        %v3311 = vcombine.high %v3229, %v3229
        %v3312 = vcombine.high %v3244, %v3244
        %v3313 = vcombine.high %v3259, %v3259
        %v3314 = vcombine.high %v3274, %v3274
        %s3323 = scalar_lea.vmem [#allocation3], 2
        %3324 = vst.msk [vmem:[%s3323] ss:$8 sm:$0x3] %vm3017, %v3307
        %3325 = vst.msk [vmem:[%s3323] ss:$8 sm:$0x0] %vm3017, %v3307
        %s3326 = scalar_lea.vmem [#allocation3], 34
        %3327 = vst.msk [vmem:[%s3326] ss:$8 sm:$0x3] %vm3017, %v3308
        %3328 = vst.msk [vmem:[%s3326] ss:$8 sm:$0x0] %vm3017, %v3308
        %s3329 = scalar_lea.vmem [#allocation3], 66
        %3330 = vst.msk [vmem:[%s3329] ss:$8 sm:$0x3] %vm3017, %v3309
        %3331 = vst.msk [vmem:[%s3329] ss:$8 sm:$0x0] %vm3017, %v3309
        %s3332 = scalar_lea.vmem [#allocation3], 98
        %3333 = vst.msk [vmem:[%s3332] ss:$8 sm:$0x3] %vm3017, %v3310
        %3334 = vst.msk [vmem:[%s3332] ss:$8 sm:$0x0] %vm3017, %v3310
        %s3335 = scalar_lea.vmem [#allocation3], 130
        %3336 = vst.msk [vmem:[%s3335] ss:$8 sm:$0x3] %vm3017, %v3311
        %3337 = vst.msk [vmem:[%s3335] ss:$8 sm:$0x0] %vm3017, %v3311
        %s3338 = scalar_lea.vmem [#allocation3], 162
        %3339 = vst.msk [vmem:[%s3338] ss:$8 sm:$0x3] %vm3017, %v3312
        %3340 = vst.msk [vmem:[%s3338] ss:$8 sm:$0x0] %vm3017, %v3312
        %s3341 = scalar_lea.vmem [#allocation3], 194
        %3342 = vst.msk [vmem:[%s3341] ss:$8 sm:$0x3] %vm3017, %v3313
        %3343 = vst.msk [vmem:[%s3341] ss:$8 sm:$0x0] %vm3017, %v3313
        %s3344 = scalar_lea.vmem [#allocation3], 226
        %3345 = vst.msk [vmem:[%s3344] ss:$8 sm:$0x3] %vm3017, %v3314
        %3346 = vst.msk [vmem:[%s3344] ss:$8 sm:$0x0] %vm3017, %v3314
        %v3347 = vcombine.high %v3123, %v3124
        %v3349 = vunpack.c.l.s4 1966171168
        %v3350 = vunpack.c.0.s8 %v3349
        %v3351 = vlaneseq
        %v3352 = vshrl.u32 %v3351, 7
        %v3353 = vsub.s32 %v3350, %v3352
        %v3354 = vrot.slane %v3347, %v3353
        %v3356 = vunpack.c.l.s4 1966171168
        %v3357 = vunpack.c.0.s8 %v3356
        %v3358 = vlaneseq
        %v3359 = vshrl.u32 %v3358, 7
        %v3360 = vsub.s32 %v3357, %v3359
        %v3361 = vrot.slane %v3354, %v3360
        %v3362 = vcombine.high %v3125, %v3126
        %v3364 = vunpack.c.l.s4 1966171168
        %v3365 = vunpack.c.0.s8 %v3364
        %v3366 = vlaneseq
        %v3367 = vshrl.u32 %v3366, 7
        %v3368 = vsub.s32 %v3365, %v3367
        %v3369 = vrot.slane %v3362, %v3368
        %v3371 = vunpack.c.l.s4 1966171168
        %v3372 = vunpack.c.0.s8 %v3371
        %v3373 = vlaneseq
        %v3374 = vshrl.u32 %v3373, 7
        %v3375 = vsub.s32 %v3372, %v3374
        %v3376 = vrot.slane %v3369, %v3375
        %v3377 = vcombine.high %v3127, %v3128
        %v3379 = vunpack.c.l.s4 1966171168
        %v3380 = vunpack.c.0.s8 %v3379
        %v3381 = vlaneseq
        %v3382 = vshrl.u32 %v3381, 7
        %v3383 = vsub.s32 %v3380, %v3382
        %v3384 = vrot.slane %v3377, %v3383
        %v3386 = vunpack.c.l.s4 1966171168
        %v3387 = vunpack.c.0.s8 %v3386
        %v3388 = vlaneseq
        %v3389 = vshrl.u32 %v3388, 7
        %v3390 = vsub.s32 %v3387, %v3389
        %v3391 = vrot.slane %v3384, %v3390
        %v3392 = vcombine.high %v3129, %v3130
        %v3394 = vunpack.c.l.s4 1966171168
        %v3395 = vunpack.c.0.s8 %v3394
        %v3396 = vlaneseq
        %v3397 = vshrl.u32 %v3396, 7
        %v3398 = vsub.s32 %v3395, %v3397
        %v3399 = vrot.slane %v3392, %v3398
        %v3401 = vunpack.c.l.s4 1966171168
        %v3402 = vunpack.c.0.s8 %v3401
        %v3403 = vlaneseq
        %v3404 = vshrl.u32 %v3403, 7
        %v3405 = vsub.s32 %v3402, %v3404
        %v3406 = vrot.slane %v3399, %v3405
        %v3407 = vcombine.high %v3131, %v3132
        %v3409 = vunpack.c.l.s4 1966171168
        %v3410 = vunpack.c.0.s8 %v3409
        %v3411 = vlaneseq
        %v3412 = vshrl.u32 %v3411, 7
        %v3413 = vsub.s32 %v3410, %v3412
        %v3414 = vrot.slane %v3407, %v3413
        %v3416 = vunpack.c.l.s4 1966171168
        %v3417 = vunpack.c.0.s8 %v3416
        %v3418 = vlaneseq
        %v3419 = vshrl.u32 %v3418, 7
        %v3420 = vsub.s32 %v3417, %v3419
        %v3421 = vrot.slane %v3414, %v3420
        %v3422 = vcombine.high %v3133, %v3134
        %v3424 = vunpack.c.l.s4 1966171168
        %v3425 = vunpack.c.0.s8 %v3424
        %v3426 = vlaneseq
        %v3427 = vshrl.u32 %v3426, 7
        %v3428 = vsub.s32 %v3425, %v3427
        %v3429 = vrot.slane %v3422, %v3428
        %v3431 = vunpack.c.l.s4 1966171168
        %v3432 = vunpack.c.0.s8 %v3431
        %v3433 = vlaneseq
        %v3434 = vshrl.u32 %v3433, 7
        %v3435 = vsub.s32 %v3432, %v3434
        %v3436 = vrot.slane %v3429, %v3435
        %v3437 = vcombine.high %v3135, %v3136
        %v3439 = vunpack.c.l.s4 1966171168
        %v3440 = vunpack.c.0.s8 %v3439
        %v3441 = vlaneseq
        %v3442 = vshrl.u32 %v3441, 7
        %v3443 = vsub.s32 %v3440, %v3442
        %v3444 = vrot.slane %v3437, %v3443
        %v3446 = vunpack.c.l.s4 1966171168
        %v3447 = vunpack.c.0.s8 %v3446
        %v3448 = vlaneseq
        %v3449 = vshrl.u32 %v3448, 7
        %v3450 = vsub.s32 %v3447, %v3449
        %v3451 = vrot.slane %v3444, %v3450
        %v3452 = vcombine.high %v3137, %v3138
        %v3454 = vunpack.c.l.s4 1966171168
        %v3455 = vunpack.c.0.s8 %v3454
        %v3456 = vlaneseq
        %v3457 = vshrl.u32 %v3456, 7
        %v3458 = vsub.s32 %v3455, %v3457
        %v3459 = vrot.slane %v3452, %v3458
        %v3461 = vunpack.c.l.s4 1966171168
        %v3462 = vunpack.c.0.s8 %v3461
        %v3463 = vlaneseq
        %v3464 = vshrl.u32 %v3463, 7
        %v3465 = vsub.s32 %v3462, %v3464
        %v3466 = vrot.slane %v3459, %v3465
        %s3475 = scalar_lea.vmem [#allocation3], 3
        %3476 = vst.msk [vmem:[%s3475] ss:$8 sm:$0x3] %vm3017, %v3361
        %3477 = vst.msk [vmem:[%s3475] ss:$8 sm:$0x0] %vm3017, %v3361
        %s3478 = scalar_lea.vmem [#allocation3], 35
        %3479 = vst.msk [vmem:[%s3478] ss:$8 sm:$0x3] %vm3017, %v3376
        %3480 = vst.msk [vmem:[%s3478] ss:$8 sm:$0x0] %vm3017, %v3376
        %s3481 = scalar_lea.vmem [#allocation3], 67
        %3482 = vst.msk [vmem:[%s3481] ss:$8 sm:$0x3] %vm3017, %v3391
        %3483 = vst.msk [vmem:[%s3481] ss:$8 sm:$0x0] %vm3017, %v3391
        %s3484 = scalar_lea.vmem [#allocation3], 99
        %3485 = vst.msk [vmem:[%s3484] ss:$8 sm:$0x3] %vm3017, %v3406
        %3486 = vst.msk [vmem:[%s3484] ss:$8 sm:$0x0] %vm3017, %v3406
        %s3487 = scalar_lea.vmem [#allocation3], 131
        %3488 = vst.msk [vmem:[%s3487] ss:$8 sm:$0x3] %vm3017, %v3421
        %3489 = vst.msk [vmem:[%s3487] ss:$8 sm:$0x0] %vm3017, %v3421
        %s3490 = scalar_lea.vmem [#allocation3], 163
        %3491 = vst.msk [vmem:[%s3490] ss:$8 sm:$0x3] %vm3017, %v3436
        %3492 = vst.msk [vmem:[%s3490] ss:$8 sm:$0x0] %vm3017, %v3436
        %s3493 = scalar_lea.vmem [#allocation3], 195
        %3494 = vst.msk [vmem:[%s3493] ss:$8 sm:$0x3] %vm3017, %v3451
        %3495 = vst.msk [vmem:[%s3493] ss:$8 sm:$0x0] %vm3017, %v3451
        %s3496 = scalar_lea.vmem [#allocation3], 227
        %3497 = vst.msk [vmem:[%s3496] ss:$8 sm:$0x3] %vm3017, %v3466
        %3498 = vst.msk [vmem:[%s3496] ss:$8 sm:$0x0] %vm3017, %v3466
        %v3499 = vcombine.high %v3361, %v3361
        %v3500 = vcombine.high %v3376, %v3376
        %v3501 = vcombine.high %v3391, %v3391
        %v3502 = vcombine.high %v3406, %v3406
        %v3503 = vcombine.high %v3421, %v3421
        %v3504 = vcombine.high %v3436, %v3436
        %v3505 = vcombine.high %v3451, %v3451
        %v3506 = vcombine.high %v3466, %v3466
        %s3515 = scalar_lea.vmem [#allocation3], 4
        %3516 = vst.msk [vmem:[%s3515] ss:$8 sm:$0x3] %vm3017, %v3499
        %3517 = vst.msk [vmem:[%s3515] ss:$8 sm:$0x0] %vm3017, %v3499
        %s3518 = scalar_lea.vmem [#allocation3], 36
        %3519 = vst.msk [vmem:[%s3518] ss:$8 sm:$0x3] %vm3017, %v3500
        %3520 = vst.msk [vmem:[%s3518] ss:$8 sm:$0x0] %vm3017, %v3500
        %s3521 = scalar_lea.vmem [#allocation3], 68
        %3522 = vst.msk [vmem:[%s3521] ss:$8 sm:$0x3] %vm3017, %v3501
        %3523 = vst.msk [vmem:[%s3521] ss:$8 sm:$0x0] %vm3017, %v3501
        %s3524 = scalar_lea.vmem [#allocation3], 100
        %3525 = vst.msk [vmem:[%s3524] ss:$8 sm:$0x3] %vm3017, %v3502
        %3526 = vst.msk [vmem:[%s3524] ss:$8 sm:$0x0] %vm3017, %v3502
        %s3527 = scalar_lea.vmem [#allocation3], 132
        %3528 = vst.msk [vmem:[%s3527] ss:$8 sm:$0x3] %vm3017, %v3503
        %3529 = vst.msk [vmem:[%s3527] ss:$8 sm:$0x0] %vm3017, %v3503
        %s3530 = scalar_lea.vmem [#allocation3], 164
        %3531 = vst.msk [vmem:[%s3530] ss:$8 sm:$0x3] %vm3017, %v3504
        %3532 = vst.msk [vmem:[%s3530] ss:$8 sm:$0x0] %vm3017, %v3504
        %s3533 = scalar_lea.vmem [#allocation3], 196
        %3534 = vst.msk [vmem:[%s3533] ss:$8 sm:$0x3] %vm3017, %v3505
        %3535 = vst.msk [vmem:[%s3533] ss:$8 sm:$0x0] %vm3017, %v3505
        %s3536 = scalar_lea.vmem [#allocation3], 228
        %3537 = vst.msk [vmem:[%s3536] ss:$8 sm:$0x3] %vm3017, %v3506
        %3538 = vst.msk [vmem:[%s3536] ss:$8 sm:$0x0] %vm3017, %v3506
        %v3539 = vld [vmem:[#allocation3] sm:$0xff]
        %v3540 = vld [vmem:[#allocation3 + $0x8] sm:$0xff]
        %v3541 = vld [vmem:[#allocation3 + $0x20] sm:$0xff]
        %v3542 = vld [vmem:[#allocation3 + $0x28] sm:$0xff]
        %v3543 = vld [vmem:[#allocation3 + $0x40] sm:$0xff]
        %v3544 = vld [vmem:[#allocation3 + $0x48] sm:$0xff]
        %v3545 = vld [vmem:[#allocation3 + $0x60] sm:$0xff]
        %v3546 = vld [vmem:[#allocation3 + $0x68] sm:$0xff]
        %v3547 = vld [vmem:[#allocation3 + $0x80] sm:$0xff]
        %v3548 = vld [vmem:[#allocation3 + $0x88] sm:$0xff]
        %v3549 = vld [vmem:[#allocation3 + $0xa0] sm:$0xff]
        %v3550 = vld [vmem:[#allocation3 + $0xa8] sm:$0xff]
        %v3551 = vld [vmem:[#allocation3 + $0xc0] sm:$0xff]
        %v3552 = vld [vmem:[#allocation3 + $0xc8] sm:$0xff]
        %v3553 = vld [vmem:[#allocation3 + $0xe0] sm:$0xff]
        %v3554 = vld [vmem:[#allocation3 + $0xe8] sm:$0xff]
        %v3555 = vpack.c.bf16 %v3541, %v3539
        %v3556 = vpack.c.bf16 %v3542, %v3540
        %v3557 = vpack.c.bf16 %v3545, %v3543
        %v3558 = vpack.c.bf16 %v3546, %v3544
        %v3559 = vpack.c.bf16 %v3549, %v3547
        %v3560 = vpack.c.bf16 %v3550, %v3548
        %v3561 = vpack.c.bf16 %v3553, %v3551
        %v3562 = vpack.c.bf16 %v3554, %v3552
        %v3563 = vld [vmem:[%s5] sm:$0xff]
        %v3564 = vld [vmem:[%s5 + $0x8] sm:$0xff]
        %v3565 = vld [vmem:[%s5 + $0x10] sm:$0xff]
        %v3566 = vld [vmem:[%s5 + $0x18] sm:$0xff]
        %v3567 = vld [vmem:[%s5 + $0x20] sm:$0xff]
        %v3568 = vld [vmem:[%s5 + $0x28] sm:$0xff]
        %v3569 = vld [vmem:[%s5 + $0x30] sm:$0xff]
        %v3570 = vld [vmem:[%s5 + $0x38] sm:$0xff]
        %v3571 = vld [vmem:[%s5 + $0x40] sm:$0xff]
        %v3572 = vld [vmem:[%s5 + $0x48] sm:$0xff]
        %v3573 = vld [vmem:[%s5 + $0x50] sm:$0xff]
        %v3574 = vld [vmem:[%s5 + $0x58] sm:$0xff]
        %v3575 = vld [vmem:[%s5 + $0x60] sm:$0xff]
        %v3576 = vld [vmem:[%s5 + $0x68] sm:$0xff]
        %v3577 = vld [vmem:[%s5 + $0x70] sm:$0xff]
        %v3578 = vld [vmem:[%s5 + $0x78] sm:$0xff]
        %v3579 = vld [vmem:[%s5 + $0x80] sm:$0xff]
        %v3580 = vld [vmem:[%s5 + $0x88] sm:$0xff]
        %v3581 = vld [vmem:[%s5 + $0x90] sm:$0xff]
        %v3582 = vld [vmem:[%s5 + $0x98] sm:$0xff]
        %v3583 = vld [vmem:[%s5 + $0xa0] sm:$0xff]
        %v3584 = vld [vmem:[%s5 + $0xa8] sm:$0xff]
        %v3585 = vld [vmem:[%s5 + $0xb0] sm:$0xff]
        %v3586 = vld [vmem:[%s5 + $0xb8] sm:$0xff]
        %v3587 = vld [vmem:[%s5 + $0xc0] sm:$0xff]
        %v3588 = vld [vmem:[%s5 + $0xc8] sm:$0xff]
        %v3589 = vld [vmem:[%s5 + $0xd0] sm:$0xff]
        %v3590 = vld [vmem:[%s5 + $0xd8] sm:$0xff]
        %v3591 = vld [vmem:[#allocation3] sm:$0xfe]
        %v3592 = vld [vmem:[#allocation3 + $0x8] sm:$0xfe]
        %v3593 = vld [vmem:[#allocation3 + $0x10] sm:$0x1]
        %v3594 = vld [vmem:[#allocation3 + $0x18] sm:$0x1]
        %v3595 = vld [vmem:[#allocation3 + $0x20] sm:$0xfe]
        %v3596 = vld [vmem:[#allocation3 + $0x28] sm:$0xfe]
        %v3597 = vld [vmem:[#allocation3 + $0x30] sm:$0x1]
        %v3598 = vld [vmem:[#allocation3 + $0x38] sm:$0x1]
        %v3599 = vld [vmem:[#allocation3 + $0x40] sm:$0xfe]
        %v3600 = vld [vmem:[#allocation3 + $0x48] sm:$0xfe]
        %v3601 = vld [vmem:[#allocation3 + $0x50] sm:$0x1]
        %v3602 = vld [vmem:[#allocation3 + $0x58] sm:$0x1]
        %v3603 = vld [vmem:[#allocation3 + $0x60] sm:$0xfe]
        %v3604 = vld [vmem:[#allocation3 + $0x68] sm:$0xfe]
        %v3605 = vld [vmem:[#allocation3 + $0x70] sm:$0x1]
        %v3606 = vld [vmem:[#allocation3 + $0x78] sm:$0x1]
        %v3607 = vld [vmem:[#allocation3 + $0x80] sm:$0xfe]
        %v3608 = vld [vmem:[#allocation3 + $0x88] sm:$0xfe]
        %v3609 = vld [vmem:[#allocation3 + $0x90] sm:$0x1]
        %v3610 = vld [vmem:[#allocation3 + $0x98] sm:$0x1]
        %v3611 = vld [vmem:[#allocation3 + $0xa0] sm:$0xfe]
        %v3612 = vld [vmem:[#allocation3 + $0xa8] sm:$0xfe]
        %v3613 = vld [vmem:[#allocation3 + $0xb0] sm:$0x1]
        %v3614 = vld [vmem:[#allocation3 + $0xb8] sm:$0x1]
        %v3615 = vld [vmem:[#allocation3 + $0xc0] sm:$0xfe]
        %v3616 = vld [vmem:[#allocation3 + $0xc8] sm:$0xfe]
        %v3617 = vld [vmem:[#allocation3 + $0xd0] sm:$0x1]
        %v3618 = vld [vmem:[#allocation3 + $0xd8] sm:$0x1]
        %v3619 = vld [vmem:[#allocation3 + $0xe0] sm:$0xfe]
        %v3620 = vld [vmem:[#allocation3 + $0xe8] sm:$0xfe]
        %v3621 = vld [vmem:[#allocation3 + $0xf0] sm:$0x1]
        %v3622 = vld [vmem:[#allocation3 + $0xf8] sm:$0x1]
        %v3655 = vrot.slane %v3591, 1
        %v3656 = vrot.slane %v3593, 1
        %v3657 = vsel %vm1890, %v3655, %v3656
        %v3658 = vrot.slane %v3592, 1
        %v3659 = vrot.slane %v3594, 1
        %v3660 = vsel %vm1890, %v3658, %v3659
        %v3661 = vrot.slane %v3595, 1
        %v3662 = vrot.slane %v3597, 1
        %v3663 = vsel %vm1890, %v3661, %v3662
        %v3664 = vrot.slane %v3596, 1
        %v3665 = vrot.slane %v3598, 1
        %v3666 = vsel %vm1890, %v3664, %v3665
        %v3667 = vrot.slane %v3599, 1
        %v3668 = vrot.slane %v3601, 1
        %v3669 = vsel %vm1890, %v3667, %v3668
        %v3670 = vrot.slane %v3600, 1
        %v3671 = vrot.slane %v3602, 1
        %v3672 = vsel %vm1890, %v3670, %v3671
        %v3673 = vrot.slane %v3603, 1
        %v3674 = vrot.slane %v3605, 1
        %v3675 = vsel %vm1890, %v3673, %v3674
        %v3676 = vrot.slane %v3604, 1
        %v3677 = vrot.slane %v3606, 1
        %v3678 = vsel %vm1890, %v3676, %v3677
        %v3679 = vrot.slane %v3607, 1
        %v3680 = vrot.slane %v3609, 1
        %v3681 = vsel %vm1890, %v3679, %v3680
        %v3682 = vrot.slane %v3608, 1
        %v3683 = vrot.slane %v3610, 1
        %v3684 = vsel %vm1890, %v3682, %v3683
        %v3685 = vrot.slane %v3611, 1
        %v3686 = vrot.slane %v3613, 1
        %v3687 = vsel %vm1890, %v3685, %v3686
        %v3688 = vrot.slane %v3612, 1
        %v3689 = vrot.slane %v3614, 1
        %v3690 = vsel %vm1890, %v3688, %v3689
        %v3691 = vrot.slane %v3615, 1
        %v3692 = vrot.slane %v3617, 1
        %v3693 = vsel %vm1890, %v3691, %v3692
        %v3694 = vrot.slane %v3616, 1
        %v3695 = vrot.slane %v3618, 1
        %v3696 = vsel %vm1890, %v3694, %v3695
        %v3697 = vrot.slane %v3619, 1
        %v3698 = vrot.slane %v3621, 1
        %v3699 = vsel %vm1890, %v3697, %v3698
        %v3700 = vrot.slane %v3620, 1
        %v3701 = vrot.slane %v3622, 1
        %v3702 = vsel %vm1890, %v3700, %v3701
        %v3719 = vpack.c.bf16 %v3663, %v3657
        %v3720 = vpack.c.bf16 %v3666, %v3660
        %v3721 = vpack.c.bf16 %v3675, %v3669
        %v3722 = vpack.c.bf16 %v3678, %v3672
        %v3723 = vpack.c.bf16 %v3687, %v3681
        %v3724 = vpack.c.bf16 %v3690, %v3684
        %v3725 = vpack.c.bf16 %v3699, %v3693
        %v3726 = vpack.c.bf16 %v3702, %v3696
        %s3727 = scalar_lea.vmem %s5, 224
        %v3728 = vld [vmem:[%s3727] sm:$0xff]
        %v3729 = vld [vmem:[%s3727 + $0x8] sm:$0xff]
        %v3730 = vld [vmem:[%s3727 + $0x10] sm:$0xff]
        %v3731 = vld [vmem:[%s3727 + $0x18] sm:$0xff]
        %v3732 = vld [vmem:[%s3727 + $0x20] sm:$0xff]
        %v3733 = vld [vmem:[%s3727 + $0x28] sm:$0xff]
        %v3734 = vld [vmem:[%s3727 + $0x30] sm:$0xff]
        %v3735 = vld [vmem:[%s3727 + $0x38] sm:$0xff]
        %v3736 = vld [vmem:[%s3727 + $0x40] sm:$0xff]
        %v3737 = vld [vmem:[%s3727 + $0x48] sm:$0xff]
        %v3738 = vld [vmem:[%s3727 + $0x50] sm:$0xff]
        %v3739 = vld [vmem:[%s3727 + $0x58] sm:$0xff]
        %v3740 = vld [vmem:[%s3727 + $0x60] sm:$0xff]
        %v3741 = vld [vmem:[%s3727 + $0x68] sm:$0xff]
        %v3742 = vld [vmem:[%s3727 + $0x70] sm:$0xff]
        %v3743 = vld [vmem:[%s3727 + $0x78] sm:$0xff]
        %v3744 = vld [vmem:[%s3727 + $0x80] sm:$0xff]
        %v3745 = vld [vmem:[%s3727 + $0x88] sm:$0xff]
        %v3746 = vld [vmem:[%s3727 + $0x90] sm:$0xff]
        %v3747 = vld [vmem:[%s3727 + $0x98] sm:$0xff]
        %v3748 = vld [vmem:[%s3727 + $0xa0] sm:$0xff]
        %v3749 = vld [vmem:[%s3727 + $0xa8] sm:$0xff]
        %v3750 = vld [vmem:[%s3727 + $0xb0] sm:$0xff]
        %v3751 = vld [vmem:[%s3727 + $0xb8] sm:$0xff]
        %v3752 = vld [vmem:[%s3727 + $0xc0] sm:$0xff]
        %v3753 = vld [vmem:[%s3727 + $0xc8] sm:$0xff]
        %v3754 = vld [vmem:[%s3727 + $0xd0] sm:$0xff]
        %v3755 = vld [vmem:[%s3727 + $0xd8] sm:$0xff]
        %v3784 = vunpack.c.l.b16 %v3728
        %v3785 = vunpack.c.h.b16 %v3728
        %v3786 = vunpack.c.l.b16 %v3729
        %v3787 = vunpack.c.h.b16 %v3729
        %v3788 = vunpack.c.l.b16 %v3730
        %v3789 = vunpack.c.h.b16 %v3730
        %v3790 = vunpack.c.l.b16 %v3731
        %v3791 = vunpack.c.h.b16 %v3731
        %v3792 = vunpack.c.l.b16 %v3732
        %v3793 = vunpack.c.h.b16 %v3732
        %v3794 = vunpack.c.l.b16 %v3733
        %v3795 = vunpack.c.h.b16 %v3733
        %v3796 = vunpack.c.l.b16 %v3734
        %v3797 = vunpack.c.h.b16 %v3734
        %v3798 = vunpack.c.l.b16 %v3735
        %v3799 = vunpack.c.h.b16 %v3735
        %v3800 = vunpack.c.l.b16 %v3736
        %v3801 = vunpack.c.h.b16 %v3736
        %v3802 = vunpack.c.l.b16 %v3737
        %v3803 = vunpack.c.h.b16 %v3737
        %v3804 = vunpack.c.l.b16 %v3738
        %v3805 = vunpack.c.h.b16 %v3738
        %v3806 = vunpack.c.l.b16 %v3739
        %v3807 = vunpack.c.h.b16 %v3739
        %v3808 = vunpack.c.l.b16 %v3740
        %v3809 = vunpack.c.h.b16 %v3740
        %v3810 = vunpack.c.l.b16 %v3741
        %v3811 = vunpack.c.h.b16 %v3741
        %v3812 = vunpack.c.l.b16 %v3742
        %v3813 = vunpack.c.h.b16 %v3742
        %v3814 = vunpack.c.l.b16 %v3743
        %v3815 = vunpack.c.h.b16 %v3743
        %v3816 = vunpack.c.l.b16 %v3744
        %v3817 = vunpack.c.h.b16 %v3744
        %v3818 = vunpack.c.l.b16 %v3745
        %v3819 = vunpack.c.h.b16 %v3745
        %v3820 = vunpack.c.l.b16 %v3746
        %v3821 = vunpack.c.h.b16 %v3746
        %v3822 = vunpack.c.l.b16 %v3747
        %v3823 = vunpack.c.h.b16 %v3747
        %v3824 = vunpack.c.l.b16 %v3748
        %v3825 = vunpack.c.h.b16 %v3748
        %v3826 = vunpack.c.l.b16 %v3749
        %v3827 = vunpack.c.h.b16 %v3749
        %v3828 = vunpack.c.l.b16 %v3750
        %v3829 = vunpack.c.h.b16 %v3750
        %v3830 = vunpack.c.l.b16 %v3751
        %v3831 = vunpack.c.h.b16 %v3751
        %v3832 = vunpack.c.l.b16 %v3752
        %v3833 = vunpack.c.h.b16 %v3752
        %v3834 = vunpack.c.l.b16 %v3753
        %v3835 = vunpack.c.h.b16 %v3753
        %v3836 = vunpack.c.l.b16 %v3754
        %v3837 = vunpack.c.h.b16 %v3754
        %v3838 = vunpack.c.l.b16 %v3755
        %v3839 = vunpack.c.h.b16 %v3755
        %v3840 = vpack.c.b16 %v3786, %v3784
        %v3841 = vpack.c.b16 %v3787, %v3785
        %v3842 = vpack.c.b16 %v3790, %v3788
        %v3843 = vpack.c.b16 %v3791, %v3789
        %v3844 = vpack.c.b16 %v3794, %v3792
        %v3845 = vpack.c.b16 %v3795, %v3793
        %v3846 = vpack.c.b16 %v3798, %v3796
        %v3847 = vpack.c.b16 %v3799, %v3797
        %v3848 = vpack.c.b16 %v3802, %v3800
        %v3849 = vpack.c.b16 %v3803, %v3801
        %v3850 = vpack.c.b16 %v3806, %v3804
        %v3851 = vpack.c.b16 %v3807, %v3805
        %v3852 = vpack.c.b16 %v3810, %v3808
        %v3853 = vpack.c.b16 %v3811, %v3809
        %v3854 = vpack.c.b16 %v3814, %v3812
        %v3855 = vpack.c.b16 %v3815, %v3813
        %v3856 = vpack.c.b16 %v3818, %v3816
        %v3857 = vpack.c.b16 %v3819, %v3817
        %v3858 = vpack.c.b16 %v3822, %v3820
        %v3859 = vpack.c.b16 %v3823, %v3821
        %v3860 = vpack.c.b16 %v3826, %v3824
        %v3861 = vpack.c.b16 %v3827, %v3825
        %v3862 = vpack.c.b16 %v3830, %v3828
        %v3863 = vpack.c.b16 %v3831, %v3829
        %v3864 = vpack.c.b16 %v3834, %v3832
        %v3865 = vpack.c.b16 %v3835, %v3833
        %v3866 = vpack.c.b16 %v3838, %v3836
        %v3867 = vpack.c.b16 %v3839, %v3837
        %v3897 = vsel %vm2975, %v3720, 0
        %v3900 = vsel %vm2975, %v3722, 0
        %v3903 = vsel %vm2975, %v3724, 0
        %v3906 = vsel %vm2975, %v3726, 0
        %3908 = vmatprep.subr.bf16.mxu0 %v3855
        %3909 = vmatpush1.bf16.msra.mxu0 %v3854
        %3910 = vmatprep.subr.bf16.mxu0 %v3853
        %3911 = vmatpush1.bf16.msra.mxu0 %v3852
        %3912 = vmatprep.subr.bf16.mxu0 %v3851
        %3913 = vmatpush1.bf16.msra.mxu0 %v3850
        %3914 = vmatprep.subr.bf16.mxu0 %v3849
        %3915 = vmatpush1.bf16.msra.mxu0 %v3848
        %3916 = vmatprep.subr.bf16.mxu0 %v3847
        %3917 = vmatpush1.bf16.msra.mxu0 %v3846
        %3918 = vmatprep.subr.bf16.mxu0 %v3845
        %3919 = vmatpush1.bf16.msra.mxu0 %v3844
        %3920 = vmatprep.subr.bf16.mxu0 %v3843
        %3921 = vmatpush1.bf16.msra.mxu0 %v3842
        %3922 = vmatprep.subr.bf16.mxu0 %v3841
        %3923 = vmatpush1.bf16.msra.mxu0 %v3840
        %3924 = vmatprep.subr.bf16.mxu0 0
        %3925 = vmatpush2.bf16.msra.mxu0 0
        %3926 = vmatprep.subr.bf16.mxu0 0
        %3927 = vmatpush2.bf16.msra.mxu0 0
        %3928 = vmatprep.subr.bf16.mxu0 %v3867
        %3929 = vmatpush2.bf16.msra.mxu0 %v3866
        %3930 = vmatprep.subr.bf16.mxu0 %v3865
        %3931 = vmatpush2.bf16.msra.mxu0 %v3864
        %3932 = vmatprep.subr.bf16.mxu0 %v3863
        %3933 = vmatpush2.bf16.msra.mxu0 %v3862
        %3934 = vmatprep.subr.bf16.mxu0 %v3861
        %3935 = vmatpush2.bf16.msra.mxu0 %v3860
        %3936 = vmatprep.subr.bf16.mxu0 %v3859
        %3937 = vmatpush2.bf16.msra.mxu0 %v3858
        %3938 = vmatprep.subr.bf16.mxu0 %v3857
        %3939 = vmatpush2.bf16.msra.mxu0 %v3856
        %3940 = vmatprep.mubr.bf16.mxu0 %v3897
        %3941 = vmatmul.mubr.bf16.gmra.mxu0 %v3719
        %v3942 = vpop.f32.mrf.mxu0
        %v3943 = vadd.f32 0.0, %v3942
        %v3944 = vpop.f32.mrf.mxu0
        %v3945 = vadd.f32 0.0, %v3944
        %v3946 = vpop.f32.mrf.mxu0
        %v3947 = vadd.f32 0.0, %v3946
        %v3948 = vpop.f32.mrf.mxu0
        %v3949 = vadd.f32 0.0, %v3948
        %3950 = vmatprep.mubr.bf16.mxu0 %v3900
        %3951 = vmatmul.mubr.bf16.gmra.mxu0 %v3721
        %v3952 = vpop.f32.mrf.mxu0
        %v3953 = vadd.f32 0.0, %v3952
        %v3954 = vpop.f32.mrf.mxu0
        %v3955 = vadd.f32 0.0, %v3954
        %v3956 = vpop.f32.mrf.mxu0
        %v3957 = vadd.f32 0.0, %v3956
        %v3958 = vpop.f32.mrf.mxu0
        %v3959 = vadd.f32 0.0, %v3958
        %3960 = vmatprep.mubr.bf16.mxu0 %v3903
        %3961 = vmatmul.mubr.bf16.gmra.mxu0 %v3723
        %v3962 = vpop.f32.mrf.mxu0
        %v3963 = vadd.f32 0.0, %v3962
        %v3964 = vpop.f32.mrf.mxu0
        %v3965 = vadd.f32 0.0, %v3964
        %v3966 = vpop.f32.mrf.mxu0
        %v3967 = vadd.f32 0.0, %v3966
        %v3968 = vpop.f32.mrf.mxu0
        %v3969 = vadd.f32 0.0, %v3968
        %3970 = vmatprep.mubr.bf16.mxu0 %v3906
        %3971 = vmatmul.mubr.bf16.gmra.mxu0 %v3725
        %v3972 = vpop.f32.mrf.mxu0
        %v3973 = vadd.f32 0.0, %v3972
        %v3974 = vpop.f32.mrf.mxu0
        %v3975 = vadd.f32 0.0, %v3974
        %v3976 = vpop.f32.mrf.mxu0
        %v3977 = vadd.f32 0.0, %v3976
        %v3978 = vpop.f32.mrf.mxu0
        %v3979 = vadd.f32 0.0, %v3978
        %3980 = vdwg.mxu0
        %v4009 = vunpack.c.l.b16 %v3563
        %v4010 = vunpack.c.h.b16 %v3563
        %v4011 = vunpack.c.l.b16 %v3564
        %v4012 = vunpack.c.h.b16 %v3564
        %v4013 = vunpack.c.l.b16 %v3565
        %v4014 = vunpack.c.h.b16 %v3565
        %v4015 = vunpack.c.l.b16 %v3566
        %v4016 = vunpack.c.h.b16 %v3566
        %v4017 = vunpack.c.l.b16 %v3567
        %v4018 = vunpack.c.h.b16 %v3567
        %v4019 = vunpack.c.l.b16 %v3568
        %v4020 = vunpack.c.h.b16 %v3568
        %v4021 = vunpack.c.l.b16 %v3569
        %v4022 = vunpack.c.h.b16 %v3569
        %v4023 = vunpack.c.l.b16 %v3570
        %v4024 = vunpack.c.h.b16 %v3570
        %v4025 = vunpack.c.l.b16 %v3571
        %v4026 = vunpack.c.h.b16 %v3571
        %v4027 = vunpack.c.l.b16 %v3572
        %v4028 = vunpack.c.h.b16 %v3572
        %v4029 = vunpack.c.l.b16 %v3573
        %v4030 = vunpack.c.h.b16 %v3573
        %v4031 = vunpack.c.l.b16 %v3574
        %v4032 = vunpack.c.h.b16 %v3574
        %v4033 = vunpack.c.l.b16 %v3575
        %v4034 = vunpack.c.h.b16 %v3575
        %v4035 = vunpack.c.l.b16 %v3576
        %v4036 = vunpack.c.h.b16 %v3576
        %v4037 = vunpack.c.l.b16 %v3577
        %v4038 = vunpack.c.h.b16 %v3577
        %v4039 = vunpack.c.l.b16 %v3578
        %v4040 = vunpack.c.h.b16 %v3578
        %v4041 = vunpack.c.l.b16 %v3579
        %v4042 = vunpack.c.h.b16 %v3579
        %v4043 = vunpack.c.l.b16 %v3580
        %v4044 = vunpack.c.h.b16 %v3580
        %v4045 = vunpack.c.l.b16 %v3581
        %v4046 = vunpack.c.h.b16 %v3581
        %v4047 = vunpack.c.l.b16 %v3582
        %v4048 = vunpack.c.h.b16 %v3582
        %v4049 = vunpack.c.l.b16 %v3583
        %v4050 = vunpack.c.h.b16 %v3583
        %v4051 = vunpack.c.l.b16 %v3584
        %v4052 = vunpack.c.h.b16 %v3584
        %v4053 = vunpack.c.l.b16 %v3585
        %v4054 = vunpack.c.h.b16 %v3585
        %v4055 = vunpack.c.l.b16 %v3586
        %v4056 = vunpack.c.h.b16 %v3586
        %v4057 = vunpack.c.l.b16 %v3587
        %v4058 = vunpack.c.h.b16 %v3587
        %v4059 = vunpack.c.l.b16 %v3588
        %v4060 = vunpack.c.h.b16 %v3588
        %v4061 = vunpack.c.l.b16 %v3589
        %v4062 = vunpack.c.h.b16 %v3589
        %v4063 = vunpack.c.l.b16 %v3590
        %v4064 = vunpack.c.h.b16 %v3590
        %v4065 = vpack.c.b16 %v4011, %v4009
        %v4066 = vpack.c.b16 %v4012, %v4010
        %v4067 = vpack.c.b16 %v4015, %v4013
        %v4068 = vpack.c.b16 %v4016, %v4014
        %v4069 = vpack.c.b16 %v4019, %v4017
        %v4070 = vpack.c.b16 %v4020, %v4018
        %v4071 = vpack.c.b16 %v4023, %v4021
        %v4072 = vpack.c.b16 %v4024, %v4022
        %v4073 = vpack.c.b16 %v4027, %v4025
        %v4074 = vpack.c.b16 %v4028, %v4026
        %v4075 = vpack.c.b16 %v4031, %v4029
        %v4076 = vpack.c.b16 %v4032, %v4030
        %v4077 = vpack.c.b16 %v4035, %v4033
        %v4078 = vpack.c.b16 %v4036, %v4034
        %v4079 = vpack.c.b16 %v4039, %v4037
        %v4080 = vpack.c.b16 %v4040, %v4038
        %v4081 = vpack.c.b16 %v4043, %v4041
        %v4082 = vpack.c.b16 %v4044, %v4042
        %v4083 = vpack.c.b16 %v4047, %v4045
        %v4084 = vpack.c.b16 %v4048, %v4046
        %v4085 = vpack.c.b16 %v4051, %v4049
        %v4086 = vpack.c.b16 %v4052, %v4050
        %v4087 = vpack.c.b16 %v4055, %v4053
        %v4088 = vpack.c.b16 %v4056, %v4054
        %v4089 = vpack.c.b16 %v4059, %v4057
        %v4090 = vpack.c.b16 %v4060, %v4058
        %v4091 = vpack.c.b16 %v4063, %v4061
        %v4092 = vpack.c.b16 %v4064, %v4062
        %v4122 = vsel %vm2975, %v3556, 0
        %v4125 = vsel %vm2975, %v3558, 0
        %v4128 = vsel %vm2975, %v3560, 0
        %v4131 = vsel %vm2975, %v3562, 0
        %4133 = vmatprep.subr.bf16.mxu0 %v4080
        %4134 = vmatpush1.bf16.msra.mxu0 %v4079
        %4135 = vmatprep.subr.bf16.mxu0 %v4078
        %4136 = vmatpush1.bf16.msra.mxu0 %v4077
        %4137 = vmatprep.subr.bf16.mxu0 %v4076
        %4138 = vmatpush1.bf16.msra.mxu0 %v4075
        %4139 = vmatprep.subr.bf16.mxu0 %v4074
        %4140 = vmatpush1.bf16.msra.mxu0 %v4073
        %4141 = vmatprep.subr.bf16.mxu0 %v4072
        %4142 = vmatpush1.bf16.msra.mxu0 %v4071
        %4143 = vmatprep.subr.bf16.mxu0 %v4070
        %4144 = vmatpush1.bf16.msra.mxu0 %v4069
        %4145 = vmatprep.subr.bf16.mxu0 %v4068
        %4146 = vmatpush1.bf16.msra.mxu0 %v4067
        %4147 = vmatprep.subr.bf16.mxu0 %v4066
        %4148 = vmatpush1.bf16.msra.mxu0 %v4065
        %4149 = vmatprep.subr.bf16.mxu0 0
        %4150 = vmatpush2.bf16.msra.mxu0 0
        %4151 = vmatprep.subr.bf16.mxu0 0
        %4152 = vmatpush2.bf16.msra.mxu0 0
        %4153 = vmatprep.subr.bf16.mxu0 %v4092
        %4154 = vmatpush2.bf16.msra.mxu0 %v4091
        %4155 = vmatprep.subr.bf16.mxu0 %v4090
        %4156 = vmatpush2.bf16.msra.mxu0 %v4089
        %4157 = vmatprep.subr.bf16.mxu0 %v4088
        %4158 = vmatpush2.bf16.msra.mxu0 %v4087
        %4159 = vmatprep.subr.bf16.mxu0 %v4086
        %4160 = vmatpush2.bf16.msra.mxu0 %v4085
        %4161 = vmatprep.subr.bf16.mxu0 %v4084
        %4162 = vmatpush2.bf16.msra.mxu0 %v4083
        %4163 = vmatprep.subr.bf16.mxu0 %v4082
        %4164 = vmatpush2.bf16.msra.mxu0 %v4081
        %4165 = vmatprep.mubr.bf16.mxu0 %v4122
        %4166 = vmatmul.mubr.bf16.gmra.mxu0 %v3555
        %v4167 = vpop.f32.mrf.mxu0
        %v4168 = vadd.f32 %v3943, %v4167
        %v4169 = vpop.f32.mrf.mxu0
        %v4170 = vadd.f32 %v3945, %v4169
        %v4171 = vpop.f32.mrf.mxu0
        %v4172 = vadd.f32 %v3947, %v4171
        %v4173 = vpop.f32.mrf.mxu0
        %v4174 = vadd.f32 %v3949, %v4173
        %4175 = vmatprep.mubr.bf16.mxu0 %v4125
        %4176 = vmatmul.mubr.bf16.gmra.mxu0 %v3557
        %v4177 = vpop.f32.mrf.mxu0
        %v4178 = vadd.f32 %v3953, %v4177
        %v4179 = vpop.f32.mrf.mxu0
        %v4180 = vadd.f32 %v3955, %v4179
        %v4181 = vpop.f32.mrf.mxu0
        %v4182 = vadd.f32 %v3957, %v4181
        %v4183 = vpop.f32.mrf.mxu0
        %v4184 = vadd.f32 %v3959, %v4183
        %4185 = vmatprep.mubr.bf16.mxu0 %v4128
        %4186 = vmatmul.mubr.bf16.gmra.mxu0 %v3559
        %v4187 = vpop.f32.mrf.mxu0
        %v4188 = vadd.f32 %v3963, %v4187
        %v4189 = vpop.f32.mrf.mxu0
        %v4190 = vadd.f32 %v3965, %v4189
        %v4191 = vpop.f32.mrf.mxu0
        %v4192 = vadd.f32 %v3967, %v4191
        %v4193 = vpop.f32.mrf.mxu0
        %v4194 = vadd.f32 %v3969, %v4193
        %4195 = vmatprep.mubr.bf16.mxu0 %v4131
        %4196 = vmatmul.mubr.bf16.gmra.mxu0 %v3561
        %v4197 = vpop.f32.mrf.mxu0
        %v4198 = vadd.f32 %v3973, %v4197
        %v4199 = vpop.f32.mrf.mxu0
        %v4200 = vadd.f32 %v3975, %v4199
        %v4201 = vpop.f32.mrf.mxu0
        %v4202 = vadd.f32 %v3977, %v4201
        %v4203 = vpop.f32.mrf.mxu0
        %v4204 = vadd.f32 %v3979, %v4203
        %4205 = vdwg.mxu0
        %v4206 = vld [vmem:[#allocation3] sm:$0xfc]
        %v4207 = vld [vmem:[#allocation3 + $0x8] sm:$0xfc]
        %v4208 = vld [vmem:[#allocation3 + $0x10] sm:$0x3]
        %v4209 = vld [vmem:[#allocation3 + $0x18] sm:$0x3]
        %v4210 = vld [vmem:[#allocation3 + $0x20] sm:$0xfc]
        %v4211 = vld [vmem:[#allocation3 + $0x28] sm:$0xfc]
        %v4212 = vld [vmem:[#allocation3 + $0x30] sm:$0x3]
        %v4213 = vld [vmem:[#allocation3 + $0x38] sm:$0x3]
        %v4214 = vld [vmem:[#allocation3 + $0x40] sm:$0xfc]
        %v4215 = vld [vmem:[#allocation3 + $0x48] sm:$0xfc]
        %v4216 = vld [vmem:[#allocation3 + $0x50] sm:$0x3]
        %v4217 = vld [vmem:[#allocation3 + $0x58] sm:$0x3]
        %v4218 = vld [vmem:[#allocation3 + $0x60] sm:$0xfc]
        %v4219 = vld [vmem:[#allocation3 + $0x68] sm:$0xfc]
        %v4220 = vld [vmem:[#allocation3 + $0x70] sm:$0x3]
        %v4221 = vld [vmem:[#allocation3 + $0x78] sm:$0x3]
        %v4222 = vld [vmem:[#allocation3 + $0x80] sm:$0xfc]
        %v4223 = vld [vmem:[#allocation3 + $0x88] sm:$0xfc]
        %v4224 = vld [vmem:[#allocation3 + $0x90] sm:$0x3]
        %v4225 = vld [vmem:[#allocation3 + $0x98] sm:$0x3]
        %v4226 = vld [vmem:[#allocation3 + $0xa0] sm:$0xfc]
        %v4227 = vld [vmem:[#allocation3 + $0xa8] sm:$0xfc]
        %v4228 = vld [vmem:[#allocation3 + $0xb0] sm:$0x3]
        %v4229 = vld [vmem:[#allocation3 + $0xb8] sm:$0x3]
        %v4230 = vld [vmem:[#allocation3 + $0xc0] sm:$0xfc]
        %v4231 = vld [vmem:[#allocation3 + $0xc8] sm:$0xfc]
        %v4232 = vld [vmem:[#allocation3 + $0xd0] sm:$0x3]
        %v4233 = vld [vmem:[#allocation3 + $0xd8] sm:$0x3]
        %v4234 = vld [vmem:[#allocation3 + $0xe0] sm:$0xfc]
        %v4235 = vld [vmem:[#allocation3 + $0xe8] sm:$0xfc]
        %v4236 = vld [vmem:[#allocation3 + $0xf0] sm:$0x3]
        %v4237 = vld [vmem:[#allocation3 + $0xf8] sm:$0x3]
        %v4270 = vrot.slane %v4206, 2
        %v4271 = vrot.slane %v4208, 2
        %v4272 = vsel %vm2528, %v4270, %v4271
        %v4273 = vrot.slane %v4207, 2
        %v4274 = vrot.slane %v4209, 2
        %v4275 = vsel %vm2528, %v4273, %v4274
        %v4276 = vrot.slane %v4210, 2
        %v4277 = vrot.slane %v4212, 2
        %v4278 = vsel %vm2528, %v4276, %v4277
        %v4279 = vrot.slane %v4211, 2
        %v4280 = vrot.slane %v4213, 2
        %v4281 = vsel %vm2528, %v4279, %v4280
        %v4282 = vrot.slane %v4214, 2
        %v4283 = vrot.slane %v4216, 2
        %v4284 = vsel %vm2528, %v4282, %v4283
        %v4285 = vrot.slane %v4215, 2
        %v4286 = vrot.slane %v4217, 2
        %v4287 = vsel %vm2528, %v4285, %v4286
        %v4288 = vrot.slane %v4218, 2
        %v4289 = vrot.slane %v4220, 2
        %v4290 = vsel %vm2528, %v4288, %v4289
        %v4291 = vrot.slane %v4219, 2
        %v4292 = vrot.slane %v4221, 2
        %v4293 = vsel %vm2528, %v4291, %v4292
        %v4294 = vrot.slane %v4222, 2
        %v4295 = vrot.slane %v4224, 2
        %v4296 = vsel %vm2528, %v4294, %v4295
        %v4297 = vrot.slane %v4223, 2
        %v4298 = vrot.slane %v4225, 2
        %v4299 = vsel %vm2528, %v4297, %v4298
        %v4300 = vrot.slane %v4226, 2
        %v4301 = vrot.slane %v4228, 2
        %v4302 = vsel %vm2528, %v4300, %v4301
        %v4303 = vrot.slane %v4227, 2
        %v4304 = vrot.slane %v4229, 2
        %v4305 = vsel %vm2528, %v4303, %v4304
        %v4306 = vrot.slane %v4230, 2
        %v4307 = vrot.slane %v4232, 2
        %v4308 = vsel %vm2528, %v4306, %v4307
        %v4309 = vrot.slane %v4231, 2
        %v4310 = vrot.slane %v4233, 2
        %v4311 = vsel %vm2528, %v4309, %v4310
        %v4312 = vrot.slane %v4234, 2
        %v4313 = vrot.slane %v4236, 2
        %v4314 = vsel %vm2528, %v4312, %v4313
        %v4315 = vrot.slane %v4235, 2
        %v4316 = vrot.slane %v4237, 2
        %v4317 = vsel %vm2528, %v4315, %v4316
        %v4334 = vpack.c.bf16 %v4278, %v4272
        %v4335 = vpack.c.bf16 %v4281, %v4275
        %v4336 = vpack.c.bf16 %v4290, %v4284
        %v4337 = vpack.c.bf16 %v4293, %v4287
        %v4338 = vpack.c.bf16 %v4302, %v4296
        %v4339 = vpack.c.bf16 %v4305, %v4299
        %v4340 = vpack.c.bf16 %v4314, %v4308
        %v4341 = vpack.c.bf16 %v4317, %v4311
        %s4342 = scalar_lea.vmem %s5, 448
        %v4343 = vld [vmem:[%s4342] sm:$0xff]
        %v4344 = vld [vmem:[%s4342 + $0x8] sm:$0xff]
        %v4345 = vld [vmem:[%s4342 + $0x10] sm:$0xff]
        %v4346 = vld [vmem:[%s4342 + $0x18] sm:$0xff]
        %v4347 = vld [vmem:[%s4342 + $0x20] sm:$0xff]
        %v4348 = vld [vmem:[%s4342 + $0x28] sm:$0xff]
        %v4349 = vld [vmem:[%s4342 + $0x30] sm:$0xff]
        %v4350 = vld [vmem:[%s4342 + $0x38] sm:$0xff]
        %v4351 = vld [vmem:[%s4342 + $0x40] sm:$0xff]
        %v4352 = vld [vmem:[%s4342 + $0x48] sm:$0xff]
        %v4353 = vld [vmem:[%s4342 + $0x50] sm:$0xff]
        %v4354 = vld [vmem:[%s4342 + $0x58] sm:$0xff]
        %v4355 = vld [vmem:[%s4342 + $0x60] sm:$0xff]
        %v4356 = vld [vmem:[%s4342 + $0x68] sm:$0xff]
        %v4357 = vld [vmem:[%s4342 + $0x70] sm:$0xff]
        %v4358 = vld [vmem:[%s4342 + $0x78] sm:$0xff]
        %v4359 = vld [vmem:[%s4342 + $0x80] sm:$0xff]
        %v4360 = vld [vmem:[%s4342 + $0x88] sm:$0xff]
        %v4361 = vld [vmem:[%s4342 + $0x90] sm:$0xff]
        %v4362 = vld [vmem:[%s4342 + $0x98] sm:$0xff]
        %v4363 = vld [vmem:[%s4342 + $0xa0] sm:$0xff]
        %v4364 = vld [vmem:[%s4342 + $0xa8] sm:$0xff]
        %v4365 = vld [vmem:[%s4342 + $0xb0] sm:$0xff]
        %v4366 = vld [vmem:[%s4342 + $0xb8] sm:$0xff]
        %v4367 = vld [vmem:[%s4342 + $0xc0] sm:$0xff]
        %v4368 = vld [vmem:[%s4342 + $0xc8] sm:$0xff]
        %v4369 = vld [vmem:[%s4342 + $0xd0] sm:$0xff]
        %v4370 = vld [vmem:[%s4342 + $0xd8] sm:$0xff]
        %v4399 = vunpack.c.l.b16 %v4343
        %v4400 = vunpack.c.h.b16 %v4343
        %v4401 = vunpack.c.l.b16 %v4344
        %v4402 = vunpack.c.h.b16 %v4344
        %v4403 = vunpack.c.l.b16 %v4345
        %v4404 = vunpack.c.h.b16 %v4345
        %v4405 = vunpack.c.l.b16 %v4346
        %v4406 = vunpack.c.h.b16 %v4346
        %v4407 = vunpack.c.l.b16 %v4347
        %v4408 = vunpack.c.h.b16 %v4347
        %v4409 = vunpack.c.l.b16 %v4348
        %v4410 = vunpack.c.h.b16 %v4348
        %v4411 = vunpack.c.l.b16 %v4349
        %v4412 = vunpack.c.h.b16 %v4349
        %v4413 = vunpack.c.l.b16 %v4350
        %v4414 = vunpack.c.h.b16 %v4350
        %v4415 = vunpack.c.l.b16 %v4351
        %v4416 = vunpack.c.h.b16 %v4351
        %v4417 = vunpack.c.l.b16 %v4352
        %v4418 = vunpack.c.h.b16 %v4352
        %v4419 = vunpack.c.l.b16 %v4353
        %v4420 = vunpack.c.h.b16 %v4353
        %v4421 = vunpack.c.l.b16 %v4354
        %v4422 = vunpack.c.h.b16 %v4354
        %v4423 = vunpack.c.l.b16 %v4355
        %v4424 = vunpack.c.h.b16 %v4355
        %v4425 = vunpack.c.l.b16 %v4356
        %v4426 = vunpack.c.h.b16 %v4356
        %v4427 = vunpack.c.l.b16 %v4357
        %v4428 = vunpack.c.h.b16 %v4357
        %v4429 = vunpack.c.l.b16 %v4358
        %v4430 = vunpack.c.h.b16 %v4358
        %v4431 = vunpack.c.l.b16 %v4359
        %v4432 = vunpack.c.h.b16 %v4359
        %v4433 = vunpack.c.l.b16 %v4360
        %v4434 = vunpack.c.h.b16 %v4360
        %v4435 = vunpack.c.l.b16 %v4361
        %v4436 = vunpack.c.h.b16 %v4361
        %v4437 = vunpack.c.l.b16 %v4362
        %v4438 = vunpack.c.h.b16 %v4362
        %v4439 = vunpack.c.l.b16 %v4363
        %v4440 = vunpack.c.h.b16 %v4363
        %v4441 = vunpack.c.l.b16 %v4364
        %v4442 = vunpack.c.h.b16 %v4364
        %v4443 = vunpack.c.l.b16 %v4365
        %v4444 = vunpack.c.h.b16 %v4365
        %v4445 = vunpack.c.l.b16 %v4366
        %v4446 = vunpack.c.h.b16 %v4366
        %v4447 = vunpack.c.l.b16 %v4367
        %v4448 = vunpack.c.h.b16 %v4367
        %v4449 = vunpack.c.l.b16 %v4368
        %v4450 = vunpack.c.h.b16 %v4368
        %v4451 = vunpack.c.l.b16 %v4369
        %v4452 = vunpack.c.h.b16 %v4369
        %v4453 = vunpack.c.l.b16 %v4370
        %v4454 = vunpack.c.h.b16 %v4370
        %v4455 = vpack.c.b16 %v4401, %v4399
        %v4456 = vpack.c.b16 %v4402, %v4400
        %v4457 = vpack.c.b16 %v4405, %v4403
        %v4458 = vpack.c.b16 %v4406, %v4404
        %v4459 = vpack.c.b16 %v4409, %v4407
        %v4460 = vpack.c.b16 %v4410, %v4408
        %v4461 = vpack.c.b16 %v4413, %v4411
        %v4462 = vpack.c.b16 %v4414, %v4412
        %v4463 = vpack.c.b16 %v4417, %v4415
        %v4464 = vpack.c.b16 %v4418, %v4416
        %v4465 = vpack.c.b16 %v4421, %v4419
        %v4466 = vpack.c.b16 %v4422, %v4420
        %v4467 = vpack.c.b16 %v4425, %v4423
        %v4468 = vpack.c.b16 %v4426, %v4424
        %v4469 = vpack.c.b16 %v4429, %v4427
        %v4470 = vpack.c.b16 %v4430, %v4428
        %v4471 = vpack.c.b16 %v4433, %v4431
        %v4472 = vpack.c.b16 %v4434, %v4432
        %v4473 = vpack.c.b16 %v4437, %v4435
        %v4474 = vpack.c.b16 %v4438, %v4436
        %v4475 = vpack.c.b16 %v4441, %v4439
        %v4476 = vpack.c.b16 %v4442, %v4440
        %v4477 = vpack.c.b16 %v4445, %v4443
        %v4478 = vpack.c.b16 %v4446, %v4444
        %v4479 = vpack.c.b16 %v4449, %v4447
        %v4480 = vpack.c.b16 %v4450, %v4448
        %v4481 = vpack.c.b16 %v4453, %v4451
        %v4482 = vpack.c.b16 %v4454, %v4452
        %v4512 = vsel %vm2975, %v4335, 0
        %v4515 = vsel %vm2975, %v4337, 0
        %v4518 = vsel %vm2975, %v4339, 0
        %v4521 = vsel %vm2975, %v4341, 0
        %4523 = vmatprep.subr.bf16.mxu0 %v4470
        %4524 = vmatpush1.bf16.msra.mxu0 %v4469
        %4525 = vmatprep.subr.bf16.mxu0 %v4468
        %4526 = vmatpush1.bf16.msra.mxu0 %v4467
        %4527 = vmatprep.subr.bf16.mxu0 %v4466
        %4528 = vmatpush1.bf16.msra.mxu0 %v4465
        %4529 = vmatprep.subr.bf16.mxu0 %v4464
        %4530 = vmatpush1.bf16.msra.mxu0 %v4463
        %4531 = vmatprep.subr.bf16.mxu0 %v4462
        %4532 = vmatpush1.bf16.msra.mxu0 %v4461
        %4533 = vmatprep.subr.bf16.mxu0 %v4460
        %4534 = vmatpush1.bf16.msra.mxu0 %v4459
        %4535 = vmatprep.subr.bf16.mxu0 %v4458
        %4536 = vmatpush1.bf16.msra.mxu0 %v4457
        %4537 = vmatprep.subr.bf16.mxu0 %v4456
        %4538 = vmatpush1.bf16.msra.mxu0 %v4455
        %4539 = vmatprep.subr.bf16.mxu0 0
        %4540 = vmatpush2.bf16.msra.mxu0 0
        %4541 = vmatprep.subr.bf16.mxu0 0
        %4542 = vmatpush2.bf16.msra.mxu0 0
        %4543 = vmatprep.subr.bf16.mxu0 %v4482
        %4544 = vmatpush2.bf16.msra.mxu0 %v4481
        %4545 = vmatprep.subr.bf16.mxu0 %v4480
        %4546 = vmatpush2.bf16.msra.mxu0 %v4479
        %4547 = vmatprep.subr.bf16.mxu0 %v4478
        %4548 = vmatpush2.bf16.msra.mxu0 %v4477
        %4549 = vmatprep.subr.bf16.mxu0 %v4476
        %4550 = vmatpush2.bf16.msra.mxu0 %v4475
        %4551 = vmatprep.subr.bf16.mxu0 %v4474
        %4552 = vmatpush2.bf16.msra.mxu0 %v4473
        %4553 = vmatprep.subr.bf16.mxu0 %v4472
        %4554 = vmatpush2.bf16.msra.mxu0 %v4471
        %4555 = vmatprep.mubr.bf16.mxu0 %v4512
        %4556 = vmatmul.mubr.bf16.gmra.mxu0 %v4334
        %v4557 = vpop.f32.mrf.mxu0
        %v4558 = vadd.f32 0.0, %v4557
        %v4559 = vpop.f32.mrf.mxu0
        %v4560 = vadd.f32 0.0, %v4559
        %v4561 = vpop.f32.mrf.mxu0
        %v4562 = vadd.f32 0.0, %v4561
        %v4563 = vpop.f32.mrf.mxu0
        %v4564 = vadd.f32 0.0, %v4563
        %4565 = vmatprep.mubr.bf16.mxu0 %v4515
        %4566 = vmatmul.mubr.bf16.gmra.mxu0 %v4336
        %v4567 = vpop.f32.mrf.mxu0
        %v4568 = vadd.f32 0.0, %v4567
        %v4569 = vpop.f32.mrf.mxu0
        %v4570 = vadd.f32 0.0, %v4569
        %v4571 = vpop.f32.mrf.mxu0
        %v4572 = vadd.f32 0.0, %v4571
        %v4573 = vpop.f32.mrf.mxu0
        %v4574 = vadd.f32 0.0, %v4573
        %4575 = vmatprep.mubr.bf16.mxu0 %v4518
        %4576 = vmatmul.mubr.bf16.gmra.mxu0 %v4338
        %v4577 = vpop.f32.mrf.mxu0
        %v4578 = vadd.f32 0.0, %v4577
        %v4579 = vpop.f32.mrf.mxu0
        %v4580 = vadd.f32 0.0, %v4579
        %v4581 = vpop.f32.mrf.mxu0
        %v4582 = vadd.f32 0.0, %v4581
        %v4583 = vpop.f32.mrf.mxu0
        %v4584 = vadd.f32 0.0, %v4583
        %4585 = vmatprep.mubr.bf16.mxu0 %v4521
        %4586 = vmatmul.mubr.bf16.gmra.mxu0 %v4340
        %v4587 = vpop.f32.mrf.mxu0
        %v4588 = vadd.f32 0.0, %v4587
        %v4589 = vpop.f32.mrf.mxu0
        %v4590 = vadd.f32 0.0, %v4589
        %v4591 = vpop.f32.mrf.mxu0
        %v4592 = vadd.f32 0.0, %v4591
        %v4593 = vpop.f32.mrf.mxu0
        %v4594 = vadd.f32 0.0, %v4593
        %4595 = vdwg.mxu0
        %v4596 = vadd.f32 %v4168, %v4558
        %v4597 = vadd.f32 %v4170, %v4560
        %v4598 = vadd.f32 %v4172, %v4562
        %v4599 = vadd.f32 %v4174, %v4564
        %v4600 = vadd.f32 %v4178, %v4568
        %v4601 = vadd.f32 %v4180, %v4570
        %v4602 = vadd.f32 %v4182, %v4572
        %v4603 = vadd.f32 %v4184, %v4574
        %v4604 = vadd.f32 %v4188, %v4578
        %v4605 = vadd.f32 %v4190, %v4580
        %v4606 = vadd.f32 %v4192, %v4582
        %v4607 = vadd.f32 %v4194, %v4584
        %v4608 = vadd.f32 %v4198, %v4588
        %v4609 = vadd.f32 %v4200, %v4590
        %v4610 = vadd.f32 %v4202, %v4592
        %v4611 = vadd.f32 %v4204, %v4594
        %v4612 = vld [vmem:[%s6] sm:$0x3]
        %v4614 = vlaneseq
        %v4615 = vshrl.u32 %v4614, 7
        %v4616 = vsub.s32 0, %v4615
        %v4617 = vrot.slane %v4612, %v4616
        %v4618 = vlaneseq
        %v4619 = vshrl.u32 %v4618, 7
        %v4620 = vsub.s32 1, %v4619
        %v4621 = vrot.slane %v4612, %v4620
        %v4624 = vadd.f32 %v4596, %v4617
        %v4625 = vadd.f32 %v4597, %v4621
        %v4626 = vadd.f32 %v4598, %v4617
        %v4627 = vadd.f32 %v4599, %v4621
        %v4628 = vadd.f32 %v4600, %v4617
        %v4629 = vadd.f32 %v4601, %v4621
        %v4630 = vadd.f32 %v4602, %v4617
        %v4631 = vadd.f32 %v4603, %v4621
        %v4632 = vadd.f32 %v4604, %v4617
        %v4633 = vadd.f32 %v4605, %v4621
        %v4634 = vadd.f32 %v4606, %v4617
        %v4635 = vadd.f32 %v4607, %v4621
        %v4636 = vadd.f32 %v4608, %v4617
        %v4637 = vadd.f32 %v4609, %v4621
        %v4638 = vadd.f32 %v4610, %v4617
        %v4639 = vadd.f32 %v4611, %v4621
        %v4640 = vmax.f32 %v4624, 0.0
        %v4641 = vmax.f32 %v4625, 0.0
        %v4642 = vmax.f32 %v4626, 0.0
        %v4643 = vmax.f32 %v4627, 0.0
        %v4644 = vmax.f32 %v4628, 0.0
        %v4645 = vmax.f32 %v4629, 0.0
        %v4646 = vmax.f32 %v4630, 0.0
        %v4647 = vmax.f32 %v4631, 0.0
        %v4648 = vmax.f32 %v4632, 0.0
        %v4649 = vmax.f32 %v4633, 0.0
        %v4650 = vmax.f32 %v4634, 0.0
        %v4651 = vmax.f32 %v4635, 0.0
        %v4652 = vmax.f32 %v4636, 0.0
        %v4653 = vmax.f32 %v4637, 0.0
        %v4654 = vmax.f32 %v4638, 0.0
        %v4655 = vmax.f32 %v4639, 0.0
        %4672 = vrot.lane.b32.xlu0 %v4640, 64
        %v4673 = vpop.permute.xlu0 %4672
        %4674 = vrot.lane.b32.xlu0 %v4641, 64
        %v4675 = vpop.permute.xlu0 %4674
        %4676 = vrot.lane.b32.xlu0 %v4642, 64
        %v4677 = vpop.permute.xlu0 %4676
        %4678 = vrot.lane.b32.xlu0 %v4643, 64
        %v4679 = vpop.permute.xlu0 %4678
        %4680 = vrot.lane.b32.xlu0 %v4644, 64
        %v4681 = vpop.permute.xlu0 %4680
        %4682 = vrot.lane.b32.xlu0 %v4645, 64
        %v4683 = vpop.permute.xlu0 %4682
        %4684 = vrot.lane.b32.xlu0 %v4646, 64
        %v4685 = vpop.permute.xlu0 %4684
        %4686 = vrot.lane.b32.xlu0 %v4647, 64
        %v4687 = vpop.permute.xlu0 %4686
        %4688 = vrot.lane.b32.xlu0 %v4648, 64
        %v4689 = vpop.permute.xlu0 %4688
        %4690 = vrot.lane.b32.xlu0 %v4649, 64
        %v4691 = vpop.permute.xlu0 %4690
        %4692 = vrot.lane.b32.xlu0 %v4650, 64
        %v4693 = vpop.permute.xlu0 %4692
        %4694 = vrot.lane.b32.xlu0 %v4651, 64
        %v4695 = vpop.permute.xlu0 %4694
        %4696 = vrot.lane.b32.xlu0 %v4652, 64
        %v4697 = vpop.permute.xlu0 %4696
        %4698 = vrot.lane.b32.xlu0 %v4653, 64
        %v4699 = vpop.permute.xlu0 %4698
        %4700 = vrot.lane.b32.xlu0 %v4654, 64
        %v4701 = vpop.permute.xlu0 %4700
        %4702 = vrot.lane.b32.xlu0 %v4655, 64
        %v4703 = vpop.permute.xlu0 %4702
        %vm4704 = vcmask 523264
        %v4705 = vsel %vm4704, %v4673, %v4675
        %v4706 = vsel %vm4704, %v4677, %v4679
        %v4707 = vsel %vm4704, %v4681, %v4683
        %v4708 = vsel %vm4704, %v4685, %v4687
        %v4709 = vsel %vm4704, %v4689, %v4691
        %v4710 = vsel %vm4704, %v4693, %v4695
        %v4711 = vsel %vm4704, %v4697, %v4699
        %v4712 = vsel %vm4704, %v4701, %v4703
        %v4729 = vmax.f32 %v4640, %v4705
        %v4730 = vmax.f32 %v4641, %v4675
        %v4731 = vmax.f32 %v4642, %v4706
        %v4732 = vmax.f32 %v4643, %v4679
        %v4733 = vmax.f32 %v4644, %v4707
        %v4734 = vmax.f32 %v4645, %v4683
        %v4735 = vmax.f32 %v4646, %v4708
        %v4736 = vmax.f32 %v4647, %v4687
        %v4737 = vmax.f32 %v4648, %v4709
        %v4738 = vmax.f32 %v4649, %v4691
        %v4739 = vmax.f32 %v4650, %v4710
        %v4740 = vmax.f32 %v4651, %v4695
        %v4741 = vmax.f32 %v4652, %v4711
        %v4742 = vmax.f32 %v4653, %v4699
        %v4743 = vmax.f32 %v4654, %v4712
        %v4744 = vmax.f32 %v4655, %v4703
        %v4745 = vld [vmem:[%s7] sm:$0xff]
        %v4746 = vld [vmem:[%s7 + $0x8] sm:$0xff]
        %v4747 = vld [vmem:[%s7 + $0x10] sm:$0xff]
        %v4749 = vsel %vm4704, %v4745, 0
        %v4752 = vsel %vm4704, %v4746, 0
        %v4755 = vsel %vm4704, %v4747, 0
        %4757 = vmatprep.subr.mxu0 0.0
        %4758 = vmatpush1.msra.mxu0 0.0
        %4759 = vmatprep.subr.mxu0 0.0
        %4760 = vmatpush1.msra.mxu0 0.0
        %4761 = vmatprep.subr.mxu0 0.0
        %4762 = vmatpush1.msra.mxu0 0.0
        %4763 = vmatprep.subr.mxu0 0.0
        %4764 = vmatpush1.msra.mxu0 0.0
        %4765 = vmatprep.subr.mxu0 0.0
        %4766 = vmatpush1.msra.mxu0 0.0
        %4767 = vmatprep.subr.mxu0 0.0
        %4768 = vmatpush1.msra.mxu0 0.0
        %4769 = vmatprep.subr.mxu0 0.0
        %4770 = vmatpush1.msra.mxu0 0.0
        %4771 = vmatprep.subr.mxu0 0.0
        %4772 = vmatpush1.msra.mxu0 0.0
        %4773 = vmatprep.subr.mxu0 %v4744
        %4774 = vmatpush1.msra.mxu0 %v4743
        %4775 = vmatprep.subr.mxu0 %v4742
        %4776 = vmatpush1.msra.mxu0 %v4741
        %4777 = vmatprep.subr.mxu0 %v4740
        %4778 = vmatpush1.msra.mxu0 %v4739
        %4779 = vmatprep.subr.mxu0 %v4738
        %4780 = vmatpush1.msra.mxu0 %v4737
        %4781 = vmatprep.subr.mxu0 %v4736
        %4782 = vmatpush1.msra.mxu0 %v4735
        %4783 = vmatprep.subr.mxu0 %v4734
        %4784 = vmatpush1.msra.mxu0 %v4733
        %4785 = vmatprep.subr.mxu0 %v4732
        %4786 = vmatpush1.msra.mxu0 %v4731
        %4787 = vmatprep.subr.mxu0 %v4730
        %4788 = vmatpush1.msra.mxu0 %v4729
        %4789 = vmatprep.subr.mxu0 0.0
        %4790 = vmatpush2.msra.mxu0 0.0
        %4791 = vmatprep.subr.mxu0 0.0
        %4792 = vmatpush2.msra.mxu0 0.0
        %4793 = vmatprep.subr.mxu0 0.0
        %4794 = vmatpush2.msra.mxu0 0.0
        %4795 = vmatprep.subr.mxu0 0.0
        %4796 = vmatpush2.msra.mxu0 0.0
        %4797 = vmatprep.subr.mxu0 0.0
        %4798 = vmatpush2.msra.mxu0 0.0
        %4799 = vmatprep.subr.mxu0 0.0
        %4800 = vmatpush2.msra.mxu0 0.0
        %4801 = vmatprep.subr.mxu0 0.0
        %4802 = vmatpush2.msra.mxu0 0.0
        %4803 = vmatprep.subr.mxu0 0.0
        %4804 = vmatpush2.msra.mxu0 0.0
        %4805 = vmatprep.subr.mxu0 0.0
        %4806 = vmatpush2.msra.mxu0 0.0
        %4807 = vmatprep.subr.mxu0 0.0
        %4808 = vmatpush2.msra.mxu0 0.0
        %4809 = vmatprep.subr.mxu0 0.0
        %4810 = vmatpush2.msra.mxu0 0.0
        %4811 = vmatprep.subr.mxu0 0.0
        %4812 = vmatpush2.msra.mxu0 0.0
        %4813 = vmatprep.subr.mxu0 0.0
        %4814 = vmatpush2.msra.mxu0 0.0
        %4815 = vmatprep.subr.mxu0 0.0
        %4816 = vmatpush2.msra.mxu0 0.0
        %4817 = vmatprep.subr.mxu0 0.0
        %4818 = vmatpush2.msra.mxu0 0.0
        %4819 = vmatprep.subr.mxu0 0.0
        %4820 = vmatpush2.msra.mxu0 0.0
        %4821 = vmatprep.mubr.f32.mxu0 0.0
        %4822 = vmatmul.mubr.f32.gmra.mxu0 %v4749
        %v4823 = vpop.f32.mrf.mxu0
        %v4824 = vadd.f32 0.0, %v4823
        %v4825 = vpop.f32.mrf.mxu0
        %v4826 = vadd.f32 0.0, %v4825
        %4827 = vmatprep.mubr.f32.mxu0 0.0
        %4828 = vmatmul.mubr.f32.gmra.mxu0 %v4752
        %v4829 = vpop.f32.mrf.mxu0
        %v4830 = vadd.f32 0.0, %v4829
        %v4831 = vpop.f32.mrf.mxu0
        %v4832 = vadd.f32 0.0, %v4831
        %4833 = vmatprep.mubr.f32.mxu0 0.0
        %4834 = vmatmul.mubr.f32.gmra.mxu0 %v4755
        %v4835 = vpop.f32.mrf.mxu0
        %v4836 = vadd.f32 0.0, %v4835
        %v4837 = vpop.f32.mrf.mxu0
        %v4838 = vadd.f32 0.0, %v4837
        %4839 = vdwg.mxu0
        %v4840 = vand.u32 2147483647, %v4830
        %v4841 = vand.u32 2147483647, %v4832
        %v4842 = vadd.f32 %v4824, %v4840
        %v4843 = vadd.f32 %v4826, %v4841
        %v4844 = vand.u32 2147483647, %v4836
        %v4845 = vand.u32 2147483647, %v4838
        %v4846 = vadd.f32 %v4842, %v4844
        %v4847 = vadd.f32 %v4843, %v4845
        %v4848 = vmul.f32 %v4846, 0.5
        %v4849 = vmul.f32 %v4847, 0.5
        %v4850 = vld [vmem:[%s8] sm:$0xff]
        %v4851 = vld [vmem:[%s8 + $0x8] sm:$0xff]
        %v4852 = vld [vmem:[%s8 + $0x10] sm:$0xff]
        %v4853 = vld [vmem:[%s8 + $0x18] sm:$0xff]
        %v4854 = vld [vmem:[%s8 + $0x20] sm:$0xff]
        %v4855 = vld [vmem:[%s8 + $0x28] sm:$0xff]
        %v4856 = vld [vmem:[%s8 + $0x30] sm:$0xff]
        %v4857 = vld [vmem:[%s8 + $0x38] sm:$0xff]
        %v4858 = vld [vmem:[%s8 + $0x40] sm:$0xff]
        %v4859 = vld [vmem:[%s8 + $0x48] sm:$0xff]
        %v4860 = vld [vmem:[%s8 + $0x50] sm:$0xff]
        %v4861 = vld [vmem:[%s8 + $0x58] sm:$0xff]
        %v4862 = vld [vmem:[%s8 + $0x60] sm:$0xff]
        %v4863 = vld [vmem:[%s8 + $0x68] sm:$0xff]
        %v4864 = vld [vmem:[%s8 + $0x70] sm:$0xff]
        %v4865 = vld [vmem:[%s8 + $0x78] sm:$0xff]
        %v4866 = vld [vmem:[%s8 + $0x80] sm:$0xff]
        %v4867 = vld [vmem:[%s8 + $0x88] sm:$0xff]
        %v4868 = vld [vmem:[%s8 + $0x90] sm:$0xff]
        %v4869 = vld [vmem:[%s8 + $0x98] sm:$0xff]
        %v4870 = vld [vmem:[%s8 + $0xa0] sm:$0xff]
        %v4871 = vld [vmem:[%s8 + $0xa8] sm:$0xff]
        %v4872 = vld [vmem:[%s8 + $0xb0] sm:$0xff]
        %v4873 = vld [vmem:[%s8 + $0xb8] sm:$0xff]
        %v4874 = vld [vmem:[%s8 + $0xc0] sm:$0xff]
        %v4875 = vld [vmem:[%s8 + $0xc8] sm:$0xff]
        %v4876 = vld [vmem:[%s8 + $0xd0] sm:$0xff]
        %v4877 = vld [vmem:[%s8 + $0xd8] sm:$0xff]
        %v4878 = vld [vmem:[%s8 + $0xe0] sm:$0xff]
        %v4879 = vld [vmem:[%s8 + $0xe8] sm:$0xff]
        %v4880 = vld [vmem:[%s8 + $0xf0] sm:$0xff]
        %v4881 = vld [vmem:[%s8 + $0xf8] sm:$0xff]
        %v4882 = vld [vmem:[%s8 + $0x100] sm:$0xff]
        %v4883 = vld [vmem:[%s8 + $0x108] sm:$0xff]
        %v4884 = vld [vmem:[%s8 + $0x110] sm:$0xff]
        %v4885 = vld [vmem:[%s8 + $0x118] sm:$0xff]
        %v4886 = vld [vmem:[%s8 + $0x120] sm:$0xff]
        %v4887 = vld [vmem:[%s8 + $0x128] sm:$0xff]
        %v4888 = vld [vmem:[%s8 + $0x130] sm:$0xff]
        %v4889 = vld [vmem:[%s8 + $0x138] sm:$0xff]
        %v4890 = vld [vmem:[%s8 + $0x140] sm:$0xff]
        %v4891 = vld [vmem:[%s8 + $0x148] sm:$0xff]
        %v4892 = vld [vmem:[%s8 + $0x150] sm:$0xff]
        %v4893 = vld [vmem:[%s8 + $0x158] sm:$0xff]
        %v4894 = vld [vmem:[%s8 + $0x160] sm:$0xff]
        %v4895 = vld [vmem:[%s8 + $0x168] sm:$0xff]
        %v4896 = vld [vmem:[%s8 + $0x170] sm:$0xff]
        %v4897 = vld [vmem:[%s8 + $0x178] sm:$0xff]
        %v4898 = vld [vmem:[%s9] sm:$0x3]
        %v4900 = vlaneseq
        %v4901 = vshrl.u32 %v4900, 7
        %v4902 = vsub.s32 0, %v4901
        %v4903 = vrot.slane %v4898, %v4902
        %v4904 = vlaneseq
        %v4905 = vshrl.u32 %v4904, 7
        %v4906 = vsub.s32 1, %v4905
        %v4907 = vrot.slane %v4898, %v4906
        %v4911 = vsel %vm4704, %v4849, 0
        %4913 = vmatprep.subr.mxu0 %v4881
        %4914 = vmatpush1.msra.mxu0 %v4880
        %4915 = vmatprep.subr.mxu0 %v4879
        %4916 = vmatpush1.msra.mxu0 %v4878
        %4917 = vmatprep.subr.mxu0 %v4877
        %4918 = vmatpush1.msra.mxu0 %v4876
        %4919 = vmatprep.subr.mxu0 %v4875
        %4920 = vmatpush1.msra.mxu0 %v4874
        %4921 = vmatprep.subr.mxu0 %v4873
        %4922 = vmatpush1.msra.mxu0 %v4872
        %4923 = vmatprep.subr.mxu0 %v4871
        %4924 = vmatpush1.msra.mxu0 %v4870
        %4925 = vmatprep.subr.mxu0 %v4869
        %4926 = vmatpush1.msra.mxu0 %v4868
        %4927 = vmatprep.subr.mxu0 %v4867
        %4928 = vmatpush1.msra.mxu0 %v4866
        %4929 = vmatprep.subr.mxu0 %v4865
        %4930 = vmatpush1.msra.mxu0 %v4864
        %4931 = vmatprep.subr.mxu0 %v4863
        %4932 = vmatpush1.msra.mxu0 %v4862
        %4933 = vmatprep.subr.mxu0 %v4861
        %4934 = vmatpush1.msra.mxu0 %v4860
        %4935 = vmatprep.subr.mxu0 %v4859
        %4936 = vmatpush1.msra.mxu0 %v4858
        %4937 = vmatprep.subr.mxu0 %v4857
        %4938 = vmatpush1.msra.mxu0 %v4856
        %4939 = vmatprep.subr.mxu0 %v4855
        %4940 = vmatpush1.msra.mxu0 %v4854
        %4941 = vmatprep.subr.mxu0 %v4853
        %4942 = vmatpush1.msra.mxu0 %v4852
        %4943 = vmatprep.subr.mxu0 %v4851
        %4944 = vmatpush1.msra.mxu0 %v4850
        %4945 = vmatprep.subr.mxu0 0.0
        %4946 = vmatpush2.msra.mxu0 0.0
        %4947 = vmatprep.subr.mxu0 0.0
        %4948 = vmatpush2.msra.mxu0 0.0
        %4949 = vmatprep.subr.mxu0 0.0
        %4950 = vmatpush2.msra.mxu0 0.0
        %4951 = vmatprep.subr.mxu0 0.0
        %4952 = vmatpush2.msra.mxu0 0.0
        %4953 = vmatprep.subr.mxu0 0.0
        %4954 = vmatpush2.msra.mxu0 0.0
        %4955 = vmatprep.subr.mxu0 0.0
        %4956 = vmatpush2.msra.mxu0 0.0
        %4957 = vmatprep.subr.mxu0 0.0
        %4958 = vmatpush2.msra.mxu0 0.0
        %4959 = vmatprep.subr.mxu0 0.0
        %4960 = vmatpush2.msra.mxu0 0.0
        %4961 = vmatprep.subr.mxu0 %v4897
        %4962 = vmatpush2.msra.mxu0 %v4896
        %4963 = vmatprep.subr.mxu0 %v4895
        %4964 = vmatpush2.msra.mxu0 %v4894
        %4965 = vmatprep.subr.mxu0 %v4893
        %4966 = vmatpush2.msra.mxu0 %v4892
        %4967 = vmatprep.subr.mxu0 %v4891
        %4968 = vmatpush2.msra.mxu0 %v4890
        %4969 = vmatprep.subr.mxu0 %v4889
        %4970 = vmatpush2.msra.mxu0 %v4888
        %4971 = vmatprep.subr.mxu0 %v4887
        %4972 = vmatpush2.msra.mxu0 %v4886
        %4973 = vmatprep.subr.mxu0 %v4885
        %4974 = vmatpush2.msra.mxu0 %v4884
        %4975 = vmatprep.subr.mxu0 %v4883
        %4976 = vmatpush2.msra.mxu0 %v4882
        %4977 = vmatprep.mubr.f32.mxu0 %v4911
        %4978 = vmatmul.mubr.f32.gmra.mxu0 %v4848
        %v4979 = vpop.f32.mrf.mxu0
        %v4980 = vadd.f32 %v4903, %v4979
        %v4981 = vpop.f32.mrf.mxu0
        %v4982 = vadd.f32 %v4907, %v4981
        %4983 = vdwg.mxu0
        %4984 = vst [vmem:[%s353] sm:$0xff] %v4980
        %4985 = vst [vmem:[%s353 + $0x8] sm:$0xff] %v4982
        %s4986 = sand.u32 %s247, 1
        %s4987 = scalar_lea.sflag [#allocation5], %s4986
        %s4988 = sand.u32 %s247, 1
        %s4989 = smul.addr %s4988, 16
        %s4990 = scalar_lea.vmem [#allocation4], %s4989
        // Predicated region
        $region61: #{heatmap_feature_extractor.1} parent=59 // pred_check
          %p4991 = pneg %p257
        $region62: #{heatmap_feature_extractor.1} parent=59 // pred_check_branch
          %4993 = sbr.rel (%p4991) target = $region64
        $region63: #{heatmap_feature_extractor.1} parent=59 // pred_region
          %s4995 = ssub.s32 256, 256
          %4996 = vsyncadd %s4987, %s4995
          %s4997 = smul.addr %s24, 2
          %s4998 = smul.addr %s4997, 128
          %s4999 = scalar_lea.hbm %s10, %s4998
          %s5001 = sshll.u32 %s4990, 4
          %s5002 = int_to_ptr.vmem [resolvable:$true] %s5001
          %5004 = dma.vmem_to_hbm [thread:$0]  %s5002, 256, %s4999, %s4987
        $region64: #{heatmap_feature_extractor.1} parent=59 // pred_fallthru
          _
      $region60: #{heatmap_feature_extractor.1} parent=5 // pred_fallthru
        _
      %p5005 = scmp.le.s32.totalorder 2, %s19
      // Predicated region
      $region65: #{heatmap_feature_extractor.1} parent=5 // pred_check
        %p5006 = pneg %p5005
      $region66: #{heatmap_feature_extractor.1} parent=5 // pred_check_branch
        %5008 = sbr.rel (%p5006) target = $region68
      $region67: #{heatmap_feature_extractor.1} parent=5 // pred_region
        %s5009 = ssub.s32 %s19, 2
        // Predicated region
        $region69: #{heatmap_feature_extractor.1} parent=67 // pred_check
          %p5010 = pneg %p263
        $region70: #{heatmap_feature_extractor.1} parent=67 // pred_check_branch
          %5012 = sbr.rel (%p5010) target = $region72
        $region71: #{heatmap_feature_extractor.1} parent=67 // pred_region
          %s5013 = sand.u32 %s248, 1
          %s5014 = scalar_lea.sflag [#allocation5], %s5013
          %s5015 = sand.u32 %s248, 1
          %s5016 = smul.addr %s5015, 16
          %s5017 = scalar_lea.vmem [#allocation4], %s5016
          %5018 = dma.done %s5014, 256
        $region72: #{heatmap_feature_extractor.1} parent=67 // pred_fallthru
          _
      $region68: #{heatmap_feature_extractor.1} parent=5 // pred_fallthru
        _
    $region6: #{heatmap_feature_extractor.1} parent=1 // loop_footer
      %s23 = sadd.s32 1, %s19
    $region7: #{heatmap_feature_extractor.1} parent=1 // loop_footer_branch
      %18 = sbr.rel target = $region3
    $region8: #{heatmap_feature_extractor.1} parent=1 // loop_exit
      _
    %5019 = vsyncpa [#allocation5], 1
    %s5020 = scalar_lea.sflag [#allocation5], 1
    %5021 = vsyncpa %s5020, 1

</llo_original>
